<compile_context>
chip_gen: v6e
topology: v6e:2x2x1
jax: 0.10.0
libtpu: 0.0.40
codegen_flags: <defaults>
</compile_context>

<pallas_src>
import jax
import jax.numpy as jnp
from jax import lax
from jax.experimental import pallas as pl
from jax.experimental.pallas import tpu as pltpu

# Problem sizes (a Config.num_groups = 8, channels = 128 ResBlock).
N, C, H, W = 2, 128, 8, 8
G = 8                      # num_groups
CG = C // G                # channels per group
EPS = 1e-5                 # nn.GroupNorm default eps
NHW = N * H * W            # 128 flat rows -> sublane dim
HW = H * W                 # 64
assert NHW == C            # lets SEL rows pack into the (., C) constant array


def resblock_kernel(x_ref, w1_ref, p_ref, cpack_ref, rpack_ref, w2_hbm_ref,
                    o_ref, w2_vmem, dma_sem):
    """Fused ResBlock forward on a flattened (NHW, C) activation block.

    cpack rows: 0..5 = b1, g1, bt1, b2, g2, bt2 ; rows 6..7 = SEL (N, NHW).
    rpack cols: 0..7  = border masks (f32 0/1) for the 8 non-center conv taps.
    w1/w2 are tap-stacked (9, Cin, Cout); w2 arrives in HBM and is DMA'd here.
    """
    # Kick off the conv2-weight copy immediately; it overlaps conv1 + GN1 + ReLU.
    w2_copy = pltpu.make_async_copy(w2_hbm_ref, w2_vmem, dma_sem.at[0])
    w2_copy.start()

    sel = cpack_ref[6:6 + N, :]          # (N, NHW) per-image row selector
    p = p_ref[...]                       # (C, C) group block-average (1/(HW*CG) folded)

    def conv3x3(h, w_ref, b_row):
        # Shift/mask the input, accumulate 9 MXU dots (no (NHW, 9C) intermediate).
        acc = jnp.dot(h, w_ref[4], preferred_element_type=jnp.float32)   # center tap
        for t in range(9):
            if t == 4:
                continue
            dy, dx = t // 3 - 1, t % 3 - 1
            k = dy * W + dx                                  # flat row offset of the tap
            col = t if t < 4 else t - 1                      # mask column in rpack
            x_t = (pltpu.roll(h, shift=(-k) % NHW, axis=0)   # rows: r -> r + k
                   * rpack_ref[:, col:col + 1])              # zero out-of-image neighbors
            acc = acc + jnp.dot(x_t, w_ref[t], preferred_element_type=jnp.float32)
        return acc + b_row                                   # (1, C) bias broadcast

    def group_norm(h, g_row, bt_row):
        # Per-(image, group) mean / E[x^2]; reductions done on the MXU via SEL and P,
        # with the two stats matmuls fused into one M=2N push.
        s = jnp.dot(sel, h, preferred_element_type=jnp.float32)          # (N, C)
        ss = jnp.dot(sel, h * h, preferred_element_type=jnp.float32)     # (N, C)
        stats = jnp.dot(jnp.concatenate([s, ss], axis=0), p,
                        preferred_element_type=jnp.float32)              # (2N, C)
        mean_c = stats[0:N, :]
        ex2_c = stats[N:2 * N, :]
        var_c = ex2_c - mean_c * mean_c                      # biased var (matches torch)
        inv_c = lax.rsqrt(var_c + EPS)
        scale = inv_c * g_row                                # (N, C) folded affine
        shift = bt_row - mean_c * scale                      # (N, C)
        h3 = h.reshape(N, HW, C)
        out3 = h3 * scale[:, None, :] + shift[:, None, :]    # 1 mul + 1 add on big tensor
        return out3.reshape(NHW, C)

    x = x_ref[...]                                           # (NHW, C) residual
    h = conv3x3(x, w1_ref, cpack_ref[0:1, :])
    h = jnp.maximum(group_norm(h, cpack_ref[1:2, :], cpack_ref[2:3, :]), 0.0)

    w2_copy.wait()                                           # conv2 weights now in VMEM
    h = conv3x3(h, w2_vmem, cpack_ref[3:4, :])
    h = group_norm(h, cpack_ref[4:5, :], cpack_ref[5:6, :])
    o_ref[...] = jnp.maximum(h + x, 0.0)                     # relu(x + residual)


def prepare_params(params):
    """One-time conversion of PyTorch-layout params to kernel-layout constants.
    Call once and reuse across forward calls (hoisted out of the hot path)."""
    (w1, b1, g1, bt1, w2, b2, g2, bt2) = params
    f32 = lambda a: a.astype(jnp.float32)

    def to_stack(w):
        # torch (Cout, Cin, kH, kW) -> (9, Cin, Cout), tap index t = ky*3 + kx.
        return jnp.transpose(f32(w), (2, 3, 1, 0)).reshape(9, C, C)

    # Group block-average matrix: P[c, c'] = (same group) / (HW * CG).
    gmat = (jnp.arange(C)[:, None] // CG ==
            jnp.arange(G)[None, :]).astype(jnp.float32)           # (C, G)
    p = (gmat @ gmat.T) / float(HW * CG)                          # (C, C)

    # Per-image row selector SEL[n, r] = 1 if flat row r belongs to image n.
    sel = (jnp.arange(NHW)[None, :] // HW ==
           jnp.arange(N)[:, None]).astype(jnp.float32)            # (N, NHW)

    # Packed per-channel constants + SEL rows (valid because NHW == C).
    vecs = jnp.stack([f32(b1), f32(g1), f32(bt1),
                      f32(b2), f32(g2), f32(bt2)], axis=0)        # (6, C)
    cpack = jnp.concatenate([vecs, sel], axis=0)                  # (8, C)

    # Border-validity masks for the 8 non-center taps, lane-packed (NHW, 8) f32.
    r = jnp.arange(NHW)
    yy = (r // W) % H
    xx = r % W
    cols = []
    for t in range(9):
        if t == 4:
            continue
        dy, dx = t // 3 - 1, t % 3 - 1
        cols.append(((yy + dy >= 0) & (yy + dy < H) &
                     (xx + dx >= 0) & (xx + dx < W)).astype(jnp.float32))
    rpack = jnp.stack(cols, axis=1)                               # (NHW, 8)

    return (to_stack(w1), to_stack(w2), p, cpack, rpack)


@jax.jit
def resblock_forward(x_nchw, kparams):
    """NCHW in / NCHW out (PyTorch convention). kparams = prepare_params(params)."""
    w1s, w2s, p, cpack, rpack = kparams
    x = jnp.transpose(x_nchw, (0, 2, 3, 1)).astype(jnp.float32).reshape(NHW, C)

    out = pl.pallas_call(
        resblock_kernel,
        out_shape=jax.ShapeDtypeStruct((NHW, C), jnp.float32),
        in_specs=[
            pl.BlockSpec(memory_space=pltpu.MemorySpace.VMEM),    # x
            pl.BlockSpec(memory_space=pltpu.MemorySpace.VMEM),    # w1 tap stack
            pl.BlockSpec(memory_space=pltpu.MemorySpace.VMEM),    # P
            pl.BlockSpec(memory_space=pltpu.MemorySpace.VMEM),    # cpack (vectors + SEL)
            pl.BlockSpec(memory_space=pltpu.MemorySpace.VMEM),    # rpack (tap masks)
            pl.BlockSpec(memory_space=pl.ANY),                    # w2 tap stack (manual DMA)
        ],
        out_specs=pl.BlockSpec(memory_space=pltpu.MemorySpace.VMEM),
        scratch_shapes=[
            pltpu.VMEM((9, C, C), jnp.float32),                   # w2 landing buffer
            pltpu.SemaphoreType.DMA((1,)),
        ],
    )(x, w1s, p, cpack, rpack, w2s)

    return jnp.transpose(out.reshape(N, H, W, C), (0, 3, 1, 2))   # NHWC -> NCHW


def resblock_reference(x_nchw, params):
    """Pure-JAX reference (same math as the torch module) for correctness checking."""
    (w1, b1, g1, bt1, w2, b2, g2, bt2) = params
    x = jnp.transpose(x_nchw, (0, 2, 3, 1))

    def conv(h, w, b):
        wk = jnp.transpose(w, (2, 3, 1, 0))                       # HWIO
        y = lax.conv_general_dilated(h, wk, window_strides=(1, 1),
                                     padding=((1, 1), (1, 1)),
                                     dimension_numbers=('NHWC', 'HWIO', 'NHWC'))
        return y + b[None, None, None, :]

    def gn(h, gamma, beta):
        hg = h.reshape(N, H, W, G, CG)
        mean = hg.mean(axis=(1, 2, 4), keepdims=True)
        var = ((hg - mean) ** 2).mean(axis=(1, 2, 4), keepdims=True)
        hn = ((hg - mean) / jnp.sqrt(var + EPS)).reshape(N, H, W, C)
        return hn * gamma[None, None, None, :] + beta[None, None, None, :]

    h = jax.nn.relu(gn(conv(x, w1, b1), g1, bt1))
    h = gn(conv(h, w2, b2), g2, bt2)
    out = jax.nn.relu(h + x)
    return jnp.transpose(out, (0, 3, 1, 2))


if __name__ == "__main__":
    key = jax.random.PRNGKey(0)
    ks = jax.random.split(key, 9)
    # Deterministic synthetic parameters (PyTorch shapes: conv (C,C,3,3), bias (C,)).
    x = jax.random.normal(ks[0], (N, C, H, W), jnp.float32)
    w1 = 0.05 * jax.random.normal(ks[1], (C, C, 3, 3), jnp.float32)
    b1 = 0.10 * jax.random.normal(ks[2], (C,), jnp.float32)
    g1 = 1.0 + 0.1 * jax.random.normal(ks[3], (C,), jnp.float32)
    bt1 = 0.10 * jax.random.normal(ks[4], (C,), jnp.float32)
    w2 = 0.05 * jax.random.normal(ks[5], (C, C, 3, 3), jnp.float32)
    b2 = 0.10 * jax.random.normal(ks[6], (C,), jnp.float32)
    g2 = 1.0 + 0.1 * jax.random.normal(ks[7], (C,), jnp.float32)
    bt2 = 0.10 * jax.random.normal(ks[8], (C,), jnp.float32)
    params = (w1, b1, g1, bt1, w2, b2, g2, bt2)

    # One-time parameter preparation (cached across calls in a real training loop).
    kparams = jax.tree_util.tree_map(jax.block_until_ready, prepare_params(params))

    out = resblock_forward(x, kparams)
    out = jax.block_until_ready(out)
    assert out.shape == (N, C, H, W) and out.dtype == jnp.float32

    ref = resblock_reference(x, params)
    max_err = float(jnp.max(jnp.abs(out - ref)))
    if not max_err < 1e-3:
        raise AssertionError(f"kernel vs reference mismatch: max abs err = {max_err}")
    print("KERNEL_OK")
</pallas_src>

<mosaic_0001>
module attributes {stable_mosaic.version = 11 : i64} {
  func.func @resblock_kernel(%arg0: memref<128x128xf32, #tpu.memory_space<vmem>>, %arg1: memref<9x128x128xf32, #tpu.memory_space<vmem>>, %arg2: memref<128x128xf32, #tpu.memory_space<vmem>>, %arg3: memref<8x128xf32, #tpu.memory_space<vmem>>, %arg4: memref<128x8xf32, #tpu.memory_space<vmem>>, %arg5: memref<9x128x128xf32, #tpu.memory_space<any>>, %arg6: memref<128x128xf32, #tpu.memory_space<vmem>>, %arg7: memref<9x128x128xf32, #tpu.memory_space<vmem>>, %arg8: memref<1x!tpu.dma_semaphore, #tpu.memory_space<semaphore_mem>>) attributes {dimension_semantics = [], scalar_prefetch = 0 : i64, scratch_operands = 2 : i64, tpu.core_type = #tpu.core_type<tc>} {
    %c0_i32 = arith.constant 0 : i32
    %0 = tpu.memref_slice %arg8[%c0_i32] : memref<1x!tpu.dma_semaphore, #tpu.memory_space<semaphore_mem>> -> memref<1x!tpu.dma_semaphore, #tpu.memory_space<semaphore_mem>>
    %1 = tpu.memref_squeeze %0 : memref<1x!tpu.dma_semaphore, #tpu.memory_space<semaphore_mem>> -> memref<!tpu.dma_semaphore, #tpu.memory_space<semaphore_mem>>
    tpu.enqueue_dma source(%arg5 : memref<9x128x128xf32, #tpu.memory_space<any>>) target(%arg7 : memref<9x128x128xf32, #tpu.memory_space<vmem>>) target_semaphore(%1 : memref<!tpu.dma_semaphore, #tpu.memory_space<semaphore_mem>>)
    %c6 = arith.constant 6 : index
    %c0 = arith.constant 0 : index
    %2 = vector.load %arg3[%c6, %c0] : memref<8x128xf32, #tpu.memory_space<vmem>>, vector<2x128xf32>
    %c0_0 = arith.constant 0 : index
    %c0_1 = arith.constant 0 : index
    %3 = vector.load %arg2[%c0_0, %c0_1] : memref<128x128xf32, #tpu.memory_space<vmem>>, vector<128x128xf32>
    %c0_2 = arith.constant 0 : index
    %c0_3 = arith.constant 0 : index
    %4 = vector.load %arg0[%c0_2, %c0_3] : memref<128x128xf32, #tpu.memory_space<vmem>>, vector<128x128xf32>
    %c0_4 = arith.constant 0 : index
    %c0_5 = arith.constant 0 : index
    %5 = vector.load %arg3[%c0_4, %c0_5] : memref<8x128xf32, #tpu.memory_space<vmem>>, vector<1x128xf32>
    %c4 = arith.constant 4 : index
    %c0_6 = arith.constant 0 : index
    %c0_7 = arith.constant 0 : index
    %6 = vector.load %arg1[%c4, %c0_6, %c0_7] : memref<9x128x128xf32, #tpu.memory_space<vmem>>, vector<1x128x128xf32>
    %7 = vector.shape_cast %6 : vector<1x128x128xf32> to vector<128x128xf32>
    %cst = arith.constant dense<0.000000e+00> : vector<128x128xf32>
    %8 = tpu.matmul %4, %7, %cst {dimension_numbers = #tpu.dot_dimension_numbers<[1], [0], [0], [1], [0, 0, 1, 1], [], []>} : vector<128x128xf32>, vector<128x128xf32>, vector<128x128xf32> -> vector<128x128xf32>
    %c9_i32 = arith.constant 9 : i32
    %9 = tpu.dynamic_rotate %4 by %c9_i32 dim 0 : vector<128x128xf32>, i32 -> vector<128x128xf32>
    %c0_8 = arith.constant 0 : index
    %c0_9 = arith.constant 0 : index
    %10 = vector.load %arg4[%c0_8, %c0_9] : memref<128x8xf32, #tpu.memory_space<vmem>>, vector<128x1xf32>
    %11 = vector.broadcast %10 : vector<128x1xf32> to vector<128x128xf32>
    %12 = arith.mulf %9, %11 : vector<128x128xf32>
    %c0_10 = arith.constant 0 : index
    %c0_11 = arith.constant 0 : index
    %c0_12 = arith.constant 0 : index
    %13 = vector.load %arg1[%c0_10, %c0_11, %c0_12] : memref<9x128x128xf32, #tpu.memory_space<vmem>>, vector<1x128x128xf32>
    %14 = vector.shape_cast %13 : vector<1x128x128xf32> to vector<128x128xf32>
    %cst_13 = arith.constant dense<0.000000e+00> : vector<128x128xf32>
    %15 = tpu.matmul %12, %14, %cst_13 {dimension_numbers = #tpu.dot_dimension_numbers<[1], [0], [0], [1], [0, 0, 1, 1], [], []>} : vector<128x128xf32>, vector<128x128xf32>, vector<128x128xf32> -> vector<128x128xf32>
    %16 = arith.addf %8, %15 : vector<128x128xf32>
    %c8_i32 = arith.constant 8 : i32
    %17 = tpu.dynamic_rotate %4 by %c8_i32 dim 0 : vector<128x128xf32>, i32 -> vector<128x128xf32>
    %c0_14 = arith.constant 0 : index
    %c1 = arith.constant 1 : index
    %18 = vector.load %arg4[%c0_14, %c1] : memref<128x8xf32, #tpu.memory_space<vmem>>, vector<128x1xf32>
    %19 = vector.broadcast %18 : vector<128x1xf32> to vector<128x128xf32>
    %20 = arith.mulf %17, %19 : vector<128x128xf32>
    %c1_15 = arith.constant 1 : index
    %c0_16 = arith.constant 0 : index
    %c0_17 = arith.constant 0 : index
    %21 = vector.load %arg1[%c1_15, %c0_16, %c0_17] : memref<9x128x128xf32, #tpu.memory_space<vmem>>, vector<1x128x128xf32>
    %22 = vector.shape_cast %21 : vector<1x128x128xf32> to vector<128x128xf32>
    %cst_18 = arith.constant dense<0.000000e+00> : vector<128x128xf32>
    %23 = tpu.matmul %20, %22, %cst_18 {dimension_numbers = #tpu.dot_dimension_numbers<[1], [0], [0], [1], [0, 0, 1, 1], [], []>} : vector<128x128xf32>, vector<128x128xf32>, vector<128x128xf32> -> vector<128x128xf32>
    %24 = arith.addf %16, %23 : vector<128x128xf32>
    %c7_i32 = arith.constant 7 : i32
    %25 = tpu.dynamic_rotate %4 by %c7_i32 dim 0 : vector<128x128xf32>, i32 -> vector<128x128xf32>
    %c0_19 = arith.constant 0 : index
    %c2 = arith.constant 2 : index
    %26 = vector.load %arg4[%c0_19, %c2] : memref<128x8xf32, #tpu.memory_space<vmem>>, vector<128x1xf32>
    %27 = vector.broadcast %26 : vector<128x1xf32> to vector<128x128xf32>
    %28 = arith.mulf %25, %27 : vector<128x128xf32>
    %c2_20 = arith.constant 2 : index
    %c0_21 = arith.constant 0 : index
    %c0_22 = arith.constant 0 : index
    %29 = vector.load %arg1[%c2_20, %c0_21, %c0_22] : memref<9x128x128xf32, #tpu.memory_space<vmem>>, vector<1x128x128xf32>
    %30 = vector.shape_cast %29 : vector<1x128x128xf32> to vector<128x128xf32>
    %cst_23 = arith.constant dense<0.000000e+00> : vector<128x128xf32>
    %31 = tpu.matmul %28, %30, %cst_23 {dimension_numbers = #tpu.dot_dimension_numbers<[1], [0], [0], [1], [0, 0, 1, 1], [], []>} : vector<128x128xf32>, vector<128x128xf32>, vector<128x128xf32> -> vector<128x128xf32>
    %32 = arith.addf %24, %31 : vector<128x128xf32>
    %c1_i32 = arith.constant 1 : i32
    %33 = tpu.dynamic_rotate %4 by %c1_i32 dim 0 : vector<128x128xf32>, i32 -> vector<128x128xf32>
    %c0_24 = arith.constant 0 : index
    %c3 = arith.constant 3 : index
    %34 = vector.load %arg4[%c0_24, %c3] : memref<128x8xf32, #tpu.memory_space<vmem>>, vector<128x1xf32>
    %35 = vector.broadcast %34 : vector<128x1xf32> to vector<128x128xf32>
    %36 = arith.mulf %33, %35 : vector<128x128xf32>
    %c3_25 = arith.constant 3 : index
    %c0_26 = arith.constant 0 : index
    %c0_27 = arith.constant 0 : index
    %37 = vector.load %arg1[%c3_25, %c0_26, %c0_27] : memref<9x128x128xf32, #tpu.memory_space<vmem>>, vector<1x128x128xf32>
    %38 = vector.shape_cast %37 : vector<1x128x128xf32> to vector<128x128xf32>
    %cst_28 = arith.constant dense<0.000000e+00> : vector<128x128xf32>
    %39 = tpu.matmul %36, %38, %cst_28 {dimension_numbers = #tpu.dot_dimension_numbers<[1], [0], [0], [1], [0, 0, 1, 1], [], []>} : vector<128x128xf32>, vector<128x128xf32>, vector<128x128xf32> -> vector<128x128xf32>
    %40 = arith.addf %32, %39 : vector<128x128xf32>
    %c127_i32 = arith.constant 127 : i32
    %41 = tpu.dynamic_rotate %4 by %c127_i32 dim 0 : vector<128x128xf32>, i32 -> vector<128x128xf32>
    %c0_29 = arith.constant 0 : index
    %c4_30 = arith.constant 4 : index
    %42 = vector.load %arg4[%c0_29, %c4_30] : memref<128x8xf32, #tpu.memory_space<vmem>>, vector<128x1xf32>
    %43 = vector.broadcast %42 : vector<128x1xf32> to vector<128x128xf32>
    %44 = arith.mulf %41, %43 : vector<128x128xf32>
    %c5 = arith.constant 5 : index
    %c0_31 = arith.constant 0 : index
    %c0_32 = arith.constant 0 : index
    %45 = vector.load %arg1[%c5, %c0_31, %c0_32] : memref<9x128x128xf32, #tpu.memory_space<vmem>>, vector<1x128x128xf32>
    %46 = vector.shape_cast %45 : vector<1x128x128xf32> to vector<128x128xf32>
    %cst_33 = arith.constant dense<0.000000e+00> : vector<128x128xf32>
    %47 = tpu.matmul %44, %46, %cst_33 {dimension_numbers = #tpu.dot_dimension_numbers<[1], [0], [0], [1], [0, 0, 1, 1], [], []>} : vector<128x128xf32>, vector<128x128xf32>, vector<128x128xf32> -> vector<128x128xf32>
    %48 = arith.addf %40, %47 : vector<128x128xf32>
    %c121_i32 = arith.constant 121 : i32
    %49 = tpu.dynamic_rotate %4 by %c121_i32 dim 0 : vector<128x128xf32>, i32 -> vector<128x128xf32>
    %c0_34 = arith.constant 0 : index
    %c5_35 = arith.constant 5 : index
    %50 = vector.load %arg4[%c0_34, %c5_35] : memref<128x8xf32, #tpu.memory_space<vmem>>, vector<128x1xf32>
    %51 = vector.broadcast %50 : vector<128x1xf32> to vector<128x128xf32>
    %52 = arith.mulf %49, %51 : vector<128x128xf32>
    %c6_36 = arith.constant 6 : index
    %c0_37 = arith.constant 0 : index
    %c0_38 = arith.constant 0 : index
    %53 = vector.load %arg1[%c6_36, %c0_37, %c0_38] : memref<9x128x128xf32, #tpu.memory_space<vmem>>, vector<1x128x128xf32>
    %54 = vector.shape_cast %53 : vector<1x128x128xf32> to vector<128x128xf32>
    %cst_39 = arith.constant dense<0.000000e+00> : vector<128x128xf32>
    %55 = tpu.matmul %52, %54, %cst_39 {dimension_numbers = #tpu.dot_dimension_numbers<[1], [0], [0], [1], [0, 0, 1, 1], [], []>} : vector<128x128xf32>, vector<128x128xf32>, vector<128x128xf32> -> vector<128x128xf32>
    %56 = arith.addf %48, %55 : vector<128x128xf32>
    %c120_i32 = arith.constant 120 : i32
    %57 = tpu.dynamic_rotate %4 by %c120_i32 dim 0 : vector<128x128xf32>, i32 -> vector<128x128xf32>
    %c0_40 = arith.constant 0 : index
    %c6_41 = arith.constant 6 : index
    %58 = vector.load %arg4[%c0_40, %c6_41] : memref<128x8xf32, #tpu.memory_space<vmem>>, vector<128x1xf32>
    %59 = vector.broadcast %58 : vector<128x1xf32> to vector<128x128xf32>
    %60 = arith.mulf %57, %59 : vector<128x128xf32>
    %c7 = arith.constant 7 : index
    %c0_42 = arith.constant 0 : index
    %c0_43 = arith.constant 0 : index
    %61 = vector.load %arg1[%c7, %c0_42, %c0_43] : memref<9x128x128xf32, #tpu.memory_space<vmem>>, vector<1x128x128xf32>
    %62 = vector.shape_cast %61 : vector<1x128x128xf32> to vector<128x128xf32>
    %cst_44 = arith.constant dense<0.000000e+00> : vector<128x128xf32>
    %63 = tpu.matmul %60, %62, %cst_44 {dimension_numbers = #tpu.dot_dimension_numbers<[1], [0], [0], [1], [0, 0, 1, 1], [], []>} : vector<128x128xf32>, vector<128x128xf32>, vector<128x128xf32> -> vector<128x128xf32>
    %64 = arith.addf %56, %63 : vector<128x128xf32>
    %c119_i32 = arith.constant 119 : i32
    %65 = tpu.dynamic_rotate %4 by %c119_i32 dim 0 : vector<128x128xf32>, i32 -> vector<128x128xf32>
    %c0_45 = arith.constant 0 : index
    %c7_46 = arith.constant 7 : index
    %66 = vector.load %arg4[%c0_45, %c7_46] : memref<128x8xf32, #tpu.memory_space<vmem>>, vector<128x1xf32>
    %67 = vector.broadcast %66 : vector<128x1xf32> to vector<128x128xf32>
    %68 = arith.mulf %65, %67 : vector<128x128xf32>
    %c8 = arith.constant 8 : index
    %c0_47 = arith.constant 0 : index
    %c0_48 = arith.constant 0 : index
    %69 = vector.load %arg1[%c8, %c0_47, %c0_48] : memref<9x128x128xf32, #tpu.memory_space<vmem>>, vector<1x128x128xf32>
    %70 = vector.shape_cast %69 : vector<1x128x128xf32> to vector<128x128xf32>
    %cst_49 = arith.constant dense<0.000000e+00> : vector<128x128xf32>
    %71 = tpu.matmul %68, %70, %cst_49 {dimension_numbers = #tpu.dot_dimension_numbers<[1], [0], [0], [1], [0, 0, 1, 1], [], []>} : vector<128x128xf32>, vector<128x128xf32>, vector<128x128xf32> -> vector<128x128xf32>
    %72 = arith.addf %64, %71 : vector<128x128xf32>
    %73 = vector.broadcast %5 : vector<1x128xf32> to vector<128x128xf32>
    %74 = arith.addf %72, %73 : vector<128x128xf32>
    %c1_50 = arith.constant 1 : index
    %c0_51 = arith.constant 0 : index
    %75 = vector.load %arg3[%c1_50, %c0_51] : memref<8x128xf32, #tpu.memory_space<vmem>>, vector<1x128xf32>
    %c2_52 = arith.constant 2 : index
    %c0_53 = arith.constant 0 : index
    %76 = vector.load %arg3[%c2_52, %c0_53] : memref<8x128xf32, #tpu.memory_space<vmem>>, vector<1x128xf32>
    %cst_54 = arith.constant dense<0.000000e+00> : vector<2x128xf32>
    %77 = tpu.matmul %2, %74, %cst_54 {dimension_numbers = #tpu.dot_dimension_numbers<[1], [0], [0], [1], [0, 0, 1, 1], [], []>} : vector<2x128xf32>, vector<128x128xf32>, vector<2x128xf32> -> vector<2x128xf32>
    %78 = arith.mulf %74, %74 : vector<128x128xf32>
    %cst_55 = arith.constant dense<0.000000e+00> : vector<2x128xf32>
    %79 = tpu.matmul %2, %78, %cst_55 {dimension_numbers = #tpu.dot_dimension_numbers<[1], [0], [0], [1], [0, 0, 1, 1], [], []>} : vector<2x128xf32>, vector<128x128xf32>, vector<2x128xf32> -> vector<2x128xf32>
    %80 = tpu.concatenate %77, %79 in 0 : vector<2x128xf32>, vector<2x128xf32> -> vector<4x128xf32>
    %cst_56 = arith.constant dense<0.000000e+00> : vector<4x128xf32>
    %81 = tpu.matmul %80, %3, %cst_56 {dimension_numbers = #tpu.dot_dimension_numbers<[1], [0], [0], [1], [0, 0, 1, 1], [], []>} : vector<4x128xf32>, vector<128x128xf32>, vector<4x128xf32> -> vector<4x128xf32>
    %82 = vector.extract_strided_slice %81 {offsets = [0, 0], sizes = [2, 128], strides = [1, 1]} : vector<4x128xf32> to vector<2x128xf32>
    %83 = vector.extract_strided_slice %81 {offsets = [2, 0], sizes = [2, 128], strides = [1, 1]} : vector<4x128xf32> to vector<2x128xf32>
    %84 = arith.mulf %82, %82 : vector<2x128xf32>
    %85 = arith.subf %83, %84 : vector<2x128xf32>
    %cst_57 = arith.constant 9.99999974E-6 : f32
    %86 = vector.broadcast %cst_57 : f32 to vector<2x128xf32>
    %87 = arith.addf %85, %86 : vector<2x128xf32>
    %88 = math.rsqrt %87 : vector<2x128xf32>
    %89 = vector.broadcast %75 : vector<1x128xf32> to vector<2x128xf32>
    %90 = arith.mulf %88, %89 : vector<2x128xf32>
    %91 = arith.mulf %82, %90 : vector<2x128xf32>
    %92 = vector.broadcast %76 : vector<1x128xf32> to vector<2x128xf32>
    %93 = arith.subf %92, %91 : vector<2x128xf32>
    %94 = vector.shape_cast %74 : vector<128x128xf32> to vector<2x64x128xf32>
    %95 = vector.shape_cast %90 : vector<2x128xf32> to vector<2x1x128xf32>
    %96 = vector.broadcast %95 : vector<2x1x128xf32> to vector<2x64x128xf32>
    %97 = arith.mulf %94, %96 : vector<2x64x128xf32>
    %98 = vector.shape_cast %93 : vector<2x128xf32> to vector<2x1x128xf32>
    %99 = vector.broadcast %98 : vector<2x1x128xf32> to vector<2x64x128xf32>
    %100 = arith.addf %97, %99 : vector<2x64x128xf32>
    %101 = vector.shape_cast %100 : vector<2x64x128xf32> to vector<128x128xf32>
    %cst_58 = arith.constant 0.000000e+00 : f32
    %102 = vector.broadcast %cst_58 : f32 to vector<128x128xf32>
    %103 = arith.maximumf %101, %102 : vector<128x128xf32>
    %c0_i32_59 = arith.constant 0 : i32
    %104 = tpu.memref_slice %arg8[%c0_i32_59] : memref<1x!tpu.dma_semaphore, #tpu.memory_space<semaphore_mem>> -> memref<1x!tpu.dma_semaphore, #tpu.memory_space<semaphore_mem>>
    %105 = tpu.memref_squeeze %104 : memref<1x!tpu.dma_semaphore, #tpu.memory_space<semaphore_mem>> -> memref<!tpu.dma_semaphore, #tpu.memory_space<semaphore_mem>>
    tpu.wait_dma2 semaphore(%105 : memref<!tpu.dma_semaphore, #tpu.memory_space<semaphore_mem>>) src(%arg5 : memref<9x128x128xf32, #tpu.memory_space<any>>) dst(%arg7 : memref<9x128x128xf32, #tpu.memory_space<vmem>>)
    %c3_60 = arith.constant 3 : index
    %c0_61 = arith.constant 0 : index
    %106 = vector.load %arg3[%c3_60, %c0_61] : memref<8x128xf32, #tpu.memory_space<vmem>>, vector<1x128xf32>
    %c4_62 = arith.constant 4 : index
    %c0_63 = arith.constant 0 : index
    %c0_64 = arith.constant 0 : index
    %107 = vector.load %arg7[%c4_62, %c0_63, %c0_64] : memref<9x128x128xf32, #tpu.memory_space<vmem>>, vector<1x128x128xf32>
    %108 = vector.shape_cast %107 : vector<1x128x128xf32> to vector<128x128xf32>
    %cst_65 = arith.constant dense<0.000000e+00> : vector<128x128xf32>
    %109 = tpu.matmul %103, %108, %cst_65 {dimension_numbers = #tpu.dot_dimension_numbers<[1], [0], [0], [1], [0, 0, 1, 1], [], []>} : vector<128x128xf32>, vector<128x128xf32>, vector<128x128xf32> -> vector<128x128xf32>
    %c9_i32_66 = arith.constant 9 : i32
    %110 = tpu.dynamic_rotate %103 by %c9_i32_66 dim 0 : vector<128x128xf32>, i32 -> vector<128x128xf32>
    %c0_67 = arith.constant 0 : index
    %c0_68 = arith.constant 0 : index
    %111 = vector.load %arg4[%c0_67, %c0_68] : memref<128x8xf32, #tpu.memory_space<vmem>>, vector<128x1xf32>
    %112 = vector.broadcast %111 : vector<128x1xf32> to vector<128x128xf32>
    %113 = arith.mulf %110, %112 : vector<128x128xf32>
    %c0_69 = arith.constant 0 : index
    %c0_70 = arith.constant 0 : index
    %c0_71 = arith.constant 0 : index
    %114 = vector.load %arg7[%c0_69, %c0_70, %c0_71] : memref<9x128x128xf32, #tpu.memory_space<vmem>>, vector<1x128x128xf32>
    %115 = vector.shape_cast %114 : vector<1x128x128xf32> to vector<128x128xf32>
    %cst_72 = arith.constant dense<0.000000e+00> : vector<128x128xf32>
    %116 = tpu.matmul %113, %115, %cst_72 {dimension_numbers = #tpu.dot_dimension_numbers<[1], [0], [0], [1], [0, 0, 1, 1], [], []>} : vector<128x128xf32>, vector<128x128xf32>, vector<128x128xf32> -> vector<128x128xf32>
    %117 = arith.addf %109, %116 : vector<128x128xf32>
    %c8_i32_73 = arith.constant 8 : i32
    %118 = tpu.dynamic_rotate %103 by %c8_i32_73 dim 0 : vector<128x128xf32>, i32 -> vector<128x128xf32>
    %c0_74 = arith.constant 0 : index
    %c1_75 = arith.constant 1 : index
    %119 = vector.load %arg4[%c0_74, %c1_75] : memref<128x8xf32, #tpu.memory_space<vmem>>, vector<128x1xf32>
    %120 = vector.broadcast %119 : vector<128x1xf32> to vector<128x128xf32>
    %121 = arith.mulf %118, %120 : vector<128x128xf32>
    %c1_76 = arith.constant 1 : index
    %c0_77 = arith.constant 0 : index
    %c0_78 = arith.constant 0 : index
    %122 = vector.load %arg7[%c1_76, %c0_77, %c0_78] : memref<9x128x128xf32, #tpu.memory_space<vmem>>, vector<1x128x128xf32>
    %123 = vector.shape_cast %122 : vector<1x128x128xf32> to vector<128x128xf32>
    %cst_79 = arith.constant dense<0.000000e+00> : vector<128x128xf32>
    %124 = tpu.matmul %121, %123, %cst_79 {dimension_numbers = #tpu.dot_dimension_numbers<[1], [0], [0], [1], [0, 0, 1, 1], [], []>} : vector<128x128xf32>, vector<128x128xf32>, vector<128x128xf32> -> vector<128x128xf32>
    %125 = arith.addf %117, %124 : vector<128x128xf32>
    %c7_i32_80 = arith.constant 7 : i32
    %126 = tpu.dynamic_rotate %103 by %c7_i32_80 dim 0 : vector<128x128xf32>, i32 -> vector<128x128xf32>
    %c0_81 = arith.constant 0 : index
    %c2_82 = arith.constant 2 : index
    %127 = vector.load %arg4[%c0_81, %c2_82] : memref<128x8xf32, #tpu.memory_space<vmem>>, vector<128x1xf32>
    %128 = vector.broadcast %127 : vector<128x1xf32> to vector<128x128xf32>
    %129 = arith.mulf %126, %128 : vector<128x128xf32>
    %c2_83 = arith.constant 2 : index
    %c0_84 = arith.constant 0 : index
    %c0_85 = arith.constant 0 : index
    %130 = vector.load %arg7[%c2_83, %c0_84, %c0_85] : memref<9x128x128xf32, #tpu.memory_space<vmem>>, vector<1x128x128xf32>
    %131 = vector.shape_cast %130 : vector<1x128x128xf32> to vector<128x128xf32>
    %cst_86 = arith.constant dense<0.000000e+00> : vector<128x128xf32>
    %132 = tpu.matmul %129, %131, %cst_86 {dimension_numbers = #tpu.dot_dimension_numbers<[1], [0], [0], [1], [0, 0, 1, 1], [], []>} : vector<128x128xf32>, vector<128x128xf32>, vector<128x128xf32> -> vector<128x128xf32>
    %133 = arith.addf %125, %132 : vector<128x128xf32>
    %c1_i32_87 = arith.constant 1 : i32
    %134 = tpu.dynamic_rotate %103 by %c1_i32_87 dim 0 : vector<128x128xf32>, i32 -> vector<128x128xf32>
    %c0_88 = arith.constant 0 : index
    %c3_89 = arith.constant 3 : index
    %135 = vector.load %arg4[%c0_88, %c3_89] : memref<128x8xf32, #tpu.memory_space<vmem>>, vector<128x1xf32>
    %136 = vector.broadcast %135 : vector<128x1xf32> to vector<128x128xf32>
    %137 = arith.mulf %134, %136 : vector<128x128xf32>
    %c3_90 = arith.constant 3 : index
    %c0_91 = arith.constant 0 : index
    %c0_92 = arith.constant 0 : index
    %138 = vector.load %arg7[%c3_90, %c0_91, %c0_92] : memref<9x128x128xf32, #tpu.memory_space<vmem>>, vector<1x128x128xf32>
    %139 = vector.shape_cast %138 : vector<1x128x128xf32> to vector<128x128xf32>
    %cst_93 = arith.constant dense<0.000000e+00> : vector<128x128xf32>
    %140 = tpu.matmul %137, %139, %cst_93 {dimension_numbers = #tpu.dot_dimension_numbers<[1], [0], [0], [1], [0, 0, 1, 1], [], []>} : vector<128x128xf32>, vector<128x128xf32>, vector<128x128xf32> -> vector<128x128xf32>
    %141 = arith.addf %133, %140 : vector<128x128xf32>
    %c127_i32_94 = arith.constant 127 : i32
    %142 = tpu.dynamic_rotate %103 by %c127_i32_94 dim 0 : vector<128x128xf32>, i32 -> vector<128x128xf32>
    %c0_95 = arith.constant 0 : index
    %c4_96 = arith.constant 4 : index
    %143 = vector.load %arg4[%c0_95, %c4_96] : memref<128x8xf32, #tpu.memory_space<vmem>>, vector<128x1xf32>
    %144 = vector.broadcast %143 : vector<128x1xf32> to vector<128x128xf32>
    %145 = arith.mulf %142, %144 : vector<128x128xf32>
    %c5_97 = arith.constant 5 : index
    %c0_98 = arith.constant 0 : index
    %c0_99 = arith.constant 0 : index
    %146 = vector.load %arg7[%c5_97, %c0_98, %c0_99] : memref<9x128x128xf32, #tpu.memory_space<vmem>>, vector<1x128x128xf32>
    %147 = vector.shape_cast %146 : vector<1x128x128xf32> to vector<128x128xf32>
    %cst_100 = arith.constant dense<0.000000e+00> : vector<128x128xf32>
    %148 = tpu.matmul %145, %147, %cst_100 {dimension_numbers = #tpu.dot_dimension_numbers<[1], [0], [0], [1], [0, 0, 1, 1], [], []>} : vector<128x128xf32>, vector<128x128xf32>, vector<128x128xf32> -> vector<128x128xf32>
    %149 = arith.addf %141, %148 : vector<128x128xf32>
    %c121_i32_101 = arith.constant 121 : i32
    %150 = tpu.dynamic_rotate %103 by %c121_i32_101 dim 0 : vector<128x128xf32>, i32 -> vector<128x128xf32>
    %c0_102 = arith.constant 0 : index
    %c5_103 = arith.constant 5 : index
    %151 = vector.load %arg4[%c0_102, %c5_103] : memref<128x8xf32, #tpu.memory_space<vmem>>, vector<128x1xf32>
    %152 = vector.broadcast %151 : vector<128x1xf32> to vector<128x128xf32>
    %153 = arith.mulf %150, %152 : vector<128x128xf32>
    %c6_104 = arith.constant 6 : index
    %c0_105 = arith.constant 0 : index
    %c0_106 = arith.constant 0 : index
    %154 = vector.load %arg7[%c6_104, %c0_105, %c0_106] : memref<9x128x128xf32, #tpu.memory_space<vmem>>, vector<1x128x128xf32>
    %155 = vector.shape_cast %154 : vector<1x128x128xf32> to vector<128x128xf32>
    %cst_107 = arith.constant dense<0.000000e+00> : vector<128x128xf32>
    %156 = tpu.matmul %153, %155, %cst_107 {dimension_numbers = #tpu.dot_dimension_numbers<[1], [0], [0], [1], [0, 0, 1, 1], [], []>} : vector<128x128xf32>, vector<128x128xf32>, vector<128x128xf32> -> vector<128x128xf32>
    %157 = arith.addf %149, %156 : vector<128x128xf32>
    %c120_i32_108 = arith.constant 120 : i32
    %158 = tpu.dynamic_rotate %103 by %c120_i32_108 dim 0 : vector<128x128xf32>, i32 -> vector<128x128xf32>
    %c0_109 = arith.constant 0 : index
    %c6_110 = arith.constant 6 : index
    %159 = vector.load %arg4[%c0_109, %c6_110] : memref<128x8xf32, #tpu.memory_space<vmem>>, vector<128x1xf32>
    %160 = vector.broadcast %159 : vector<128x1xf32> to vector<128x128xf32>
    %161 = arith.mulf %158, %160 : vector<128x128xf32>
    %c7_111 = arith.constant 7 : index
    %c0_112 = arith.constant 0 : index
    %c0_113 = arith.constant 0 : index
    %162 = vector.load %arg7[%c7_111, %c0_112, %c0_113] : memref<9x128x128xf32, #tpu.memory_space<vmem>>, vector<1x128x128xf32>
    %163 = vector.shape_cast %162 : vector<1x128x128xf32> to vector<128x128xf32>
    %cst_114 = arith.constant dense<0.000000e+00> : vector<128x128xf32>
    %164 = tpu.matmul %161, %163, %cst_114 {dimension_numbers = #tpu.dot_dimension_numbers<[1], [0], [0], [1], [0, 0, 1, 1], [], []>} : vector<128x128xf32>, vector<128x128xf32>, vector<128x128xf32> -> vector<128x128xf32>
    %165 = arith.addf %157, %164 : vector<128x128xf32>
    %c119_i32_115 = arith.constant 119 : i32
    %166 = tpu.dynamic_rotate %103 by %c119_i32_115 dim 0 : vector<128x128xf32>, i32 -> vector<128x128xf32>
    %c0_116 = arith.constant 0 : index
    %c7_117 = arith.constant 7 : index
    %167 = vector.load %arg4[%c0_116, %c7_117] : memref<128x8xf32, #tpu.memory_space<vmem>>, vector<128x1xf32>
    %168 = vector.broadcast %167 : vector<128x1xf32> to vector<128x128xf32>
    %169 = arith.mulf %166, %168 : vector<128x128xf32>
    %c8_118 = arith.constant 8 : index
    %c0_119 = arith.constant 0 : index
    %c0_120 = arith.constant 0 : index
    %170 = vector.load %arg7[%c8_118, %c0_119, %c0_120] : memref<9x128x128xf32, #tpu.memory_space<vmem>>, vector<1x128x128xf32>
    %171 = vector.shape_cast %170 : vector<1x128x128xf32> to vector<128x128xf32>
    %cst_121 = arith.constant dense<0.000000e+00> : vector<128x128xf32>
    %172 = tpu.matmul %169, %171, %cst_121 {dimension_numbers = #tpu.dot_dimension_numbers<[1], [0], [0], [1], [0, 0, 1, 1], [], []>} : vector<128x128xf32>, vector<128x128xf32>, vector<128x128xf32> -> vector<128x128xf32>
    %173 = arith.addf %165, %172 : vector<128x128xf32>
    %174 = vector.broadcast %106 : vector<1x128xf32> to vector<128x128xf32>
    %175 = arith.addf %173, %174 : vector<128x128xf32>
    %c4_122 = arith.constant 4 : index
    %c0_123 = arith.constant 0 : index
    %176 = vector.load %arg3[%c4_122, %c0_123] : memref<8x128xf32, #tpu.memory_space<vmem>>, vector<1x128xf32>
    %c5_124 = arith.constant 5 : index
    %c0_125 = arith.constant 0 : index
    %177 = vector.load %arg3[%c5_124, %c0_125] : memref<8x128xf32, #tpu.memory_space<vmem>>, vector<1x128xf32>
    %cst_126 = arith.constant dense<0.000000e+00> : vector<2x128xf32>
    %178 = tpu.matmul %2, %175, %cst_126 {dimension_numbers = #tpu.dot_dimension_numbers<[1], [0], [0], [1], [0, 0, 1, 1], [], []>} : vector<2x128xf32>, vector<128x128xf32>, vector<2x128xf32> -> vector<2x128xf32>
    %179 = arith.mulf %175, %175 : vector<128x128xf32>
    %cst_127 = arith.constant dense<0.000000e+00> : vector<2x128xf32>
    %180 = tpu.matmul %2, %179, %cst_127 {dimension_numbers = #tpu.dot_dimension_numbers<[1], [0], [0], [1], [0, 0, 1, 1], [], []>} : vector<2x128xf32>, vector<128x128xf32>, vector<2x128xf32> -> vector<2x128xf32>
    %181 = tpu.concatenate %178, %180 in 0 : vector<2x128xf32>, vector<2x128xf32> -> vector<4x128xf32>
    %cst_128 = arith.constant dense<0.000000e+00> : vector<4x128xf32>
    %182 = tpu.matmul %181, %3, %cst_128 {dimension_numbers = #tpu.dot_dimension_numbers<[1], [0], [0], [1], [0, 0, 1, 1], [], []>} : vector<4x128xf32>, vector<128x128xf32>, vector<4x128xf32> -> vector<4x128xf32>
    %183 = vector.extract_strided_slice %182 {offsets = [0, 0], sizes = [2, 128], strides = [1, 1]} : vector<4x128xf32> to vector<2x128xf32>
    %184 = vector.extract_strided_slice %182 {offsets = [2, 0], sizes = [2, 128], strides = [1, 1]} : vector<4x128xf32> to vector<2x128xf32>
    %185 = arith.mulf %183, %183 : vector<2x128xf32>
    %186 = arith.subf %184, %185 : vector<2x128xf32>
    %cst_129 = arith.constant 9.99999974E-6 : f32
    %187 = vector.broadcast %cst_129 : f32 to vector<2x128xf32>
    %188 = arith.addf %186, %187 : vector<2x128xf32>
    %189 = math.rsqrt %188 : vector<2x128xf32>
    %190 = vector.broadcast %176 : vector<1x128xf32> to vector<2x128xf32>
    %191 = arith.mulf %189, %190 : vector<2x128xf32>
    %192 = arith.mulf %183, %191 : vector<2x128xf32>
    %193 = vector.broadcast %177 : vector<1x128xf32> to vector<2x128xf32>
    %194 = arith.subf %193, %192 : vector<2x128xf32>
    %195 = vector.shape_cast %175 : vector<128x128xf32> to vector<2x64x128xf32>
    %196 = vector.shape_cast %191 : vector<2x128xf32> to vector<2x1x128xf32>
    %197 = vector.broadcast %196 : vector<2x1x128xf32> to vector<2x64x128xf32>
    %198 = arith.mulf %195, %197 : vector<2x64x128xf32>
    %199 = vector.shape_cast %194 : vector<2x128xf32> to vector<2x1x128xf32>
    %200 = vector.broadcast %199 : vector<2x1x128xf32> to vector<2x64x128xf32>
    %201 = arith.addf %198, %200 : vector<2x64x128xf32>
    %202 = vector.shape_cast %201 : vector<2x64x128xf32> to vector<128x128xf32>
    %203 = arith.addf %202, %4 : vector<128x128xf32>
    %cst_130 = arith.constant 0.000000e+00 : f32
    %204 = vector.broadcast %cst_130 : f32 to vector<128x128xf32>
    %205 = arith.maximumf %203, %204 : vector<128x128xf32>
    %c0_131 = arith.constant 0 : index
    %c0_132 = arith.constant 0 : index
    %206 = vector.load %arg6[%c0_131, %c0_132] : memref<128x128xf32, #tpu.memory_space<vmem>>, vector<128x128xf32>
    tpu.vector_store %arg6[%c0_131, %c0_132], %205 {strides = array<i32>} : memref<128x128xf32, #tpu.memory_space<vmem>>, vector<128x128xf32>,
    return
  }
}

</mosaic_0001>

<llo_original>
// kernel: resblock_forward.1
$region0: #{resblock_forward.1}
  #allocation0 [shape = 'u32[]', space=smem, size = 0x4, offset = 0x4, fixed_abs, tag = 'smem constant byte address 0x4 - core index']
  #allocation1 [shape = 'u32[144,128]{1,0:T(1,128)}', space=vmem, size = 0x12000, scoped, tag = 'internal scratch']
  #allocation2 [shape = 'f32[9,128,128]{2,1,0:T(8,128)}', space=vmem, size = 0x90000, scoped, tag = 'scratch operand']
  #allocation3 [shape = 's32[1]{0}', space=sflag, size = 0x4, scoped, tag = 'scratch operand']
  #allocation10 [shape = 's32[]', space=sflag, size = 0x4, offset = 0, fixed_abs, tag = 'sflag constant byte address 0x0 - dummy sync flag']
  #allocation11 [shape = 's32[]', space=sflag, size = 0x4, offset = 0, fixed_abs, tag = 'sflag constant byte address 0x0 - dummy sync flag']
  #allocation12 [shape = 'u32[]', space=smem, size = 0x4, offset = 0x44, fixed_abs, tag = 'smem constant byte address 0x44 - assertion arg 0']
  #allocation13 [shape = 'u32[]', space=smem, size = 0x4, offset = 0x48, fixed_abs, tag = 'smem constant byte address 0x48 - assertion arg 1']
  %s0 = inlined_call_operand.vmem [shape: f32[128,128], index: 0, kind: input, shape index: {}]
  %s1 = inlined_call_operand.hbm [shape: f32[9,128,128], index: 1, kind: input, shape index: {}]
  %s2 = inlined_call_operand.hbm [shape: f32[128,128], index: 2, kind: input, shape index: {}]
  %s3 = inlined_call_operand.vmem [shape: f32[8,128], index: 3, kind: input, shape index: {}]
  %s4 = inlined_call_operand.vmem [shape: f32[128,8], index: 4, kind: input, shape index: {}]
  %s5 = inlined_call_operand.hbm [shape: f32[9,128,128], index: 5, kind: input, shape index: {}]
  %s6 = inlined_call_operand.hbm [shape: f32[128,128], index: 6, kind: output, shape index: {}]
  %s7 = sld [smem:[#allocation0]]
  $region42: #{resblock_forward.1} parent=0
    _
  %s9 = ssub.s32 1, %s7
  %s10 = scalar_select 0, %s9, %s7
  $region1: #{resblock_forward.1} parent=0
    #allocation4 [shape = 'u8[589824]{0}', space=vmem, size = 0x90000, scoped, tag = 'input window, operand 1, single buffered']
    #allocation5 [shape = 's32[1]{0}', space=sflag, size = 0x4, scoped, tag = 'scoped memory for resblock_forward.1']
    #allocation6 [shape = 's32[1]{0}', space=sflag, size = 0x4, scoped, tag = 'scoped memory for resblock_forward.1']
    #allocation7 [shape = 'u8[65536]{0}', space=vmem, size = 0x10000, scoped, tag = 'input window, operand 2, single buffered']
    #allocation8 [shape = 's32[1]{0}', space=sflag, size = 0x4, scoped, tag = 'scoped memory for resblock_forward.1']
    #allocation9 [shape = 'u8[65536]{0}', space=vmem, size = 0x10000, scoped, tag = 'output window, operand 0, single buffered']
    %11 = vsyncpa [#allocation5], 0
    %12 = vsyncpa [#allocation8], 0
    %13 = vsyncpa [#allocation6], 0
    // Predicated region
    $region2: #{resblock_forward.1} parent=1 // pred_check
      _
    $region3: #{resblock_forward.1} parent=1 // pred_check_branch
      %15 = sbr.rel (0) target = $region5
    $region4: #{resblock_forward.1} parent=1 // pred_region
      _
    $region5: #{resblock_forward.1} parent=1 // pred_fallthru
      _
    // Predicated region
    $region6: #{resblock_forward.1} parent=1 // pred_check
      _
    $region7: #{resblock_forward.1} parent=1 // pred_check_branch
      %17 = sbr.rel (0) target = $region9
    $region8: #{resblock_forward.1} parent=1 // pred_region
      %s19 = ssub.s32 18432, 18432
      %20 = vsyncadd [#allocation5], %s19
      %s21 = sshll.u32 [#allocation4], 4
      %s22 = int_to_ptr.vmem [resolvable:$true] %s21
      %27 = dma.hbm_to_vmem [thread:$0]  %s1, 18432, %s22, [#allocation5], 128, 128, 8
    $region9: #{resblock_forward.1} parent=1 // pred_fallthru
      _
    // Predicated region
    $region10: #{resblock_forward.1} parent=1 // pred_check
      _
    $region11: #{resblock_forward.1} parent=1 // pred_check_branch
      %29 = sbr.rel (0) target = $region13
    $region12: #{resblock_forward.1} parent=1 // pred_region
      %s31 = ssub.s32 2048, 2048
      %32 = vsyncadd [#allocation8], %s31
      %s33 = sshll.u32 [#allocation7], 4
      %s34 = int_to_ptr.vmem [resolvable:$true] %s33
      %39 = dma.hbm_to_vmem [thread:$0]  %s2, 2048, %s34, [#allocation8], 128, 128, 8
    $region13: #{resblock_forward.1} parent=1 // pred_fallthru
      _
    // Predicated region
    $region14: #{resblock_forward.1} parent=1 // pred_check
      _
    $region15: #{resblock_forward.1} parent=1 // pred_check_branch
      %41 = sbr.rel (0) target = $region17
    $region16: #{resblock_forward.1} parent=1 // pred_region
      _
    $region17: #{resblock_forward.1} parent=1 // pred_fallthru
      _
    // Predicated region
    $region18: #{resblock_forward.1} parent=1 // pred_check
      _
    $region19: #{resblock_forward.1} parent=1 // pred_check_branch
      %43 = sbr.rel (0) target = $region21
    $region20: #{resblock_forward.1} parent=1 // pred_region
      _
    $region21: #{resblock_forward.1} parent=1 // pred_fallthru
      _
    // Predicated region
    $region22: #{resblock_forward.1} parent=1 // pred_check
      _
    $region23: #{resblock_forward.1} parent=1 // pred_check_branch
      %45 = sbr.rel (0) target = $region25
    $region24: #{resblock_forward.1} parent=1 // pred_region
      %46 = dma.done [#allocation5], 18432
    $region25: #{resblock_forward.1} parent=1 // pred_fallthru
      _
    // Predicated region
    $region26: #{resblock_forward.1} parent=1 // pred_check
      _
    $region27: #{resblock_forward.1} parent=1 // pred_check_branch
      %48 = sbr.rel (0) target = $region29
    $region28: #{resblock_forward.1} parent=1 // pred_region
      %49 = dma.done [#allocation8], 2048
    $region29: #{resblock_forward.1} parent=1 // pred_fallthru
      _
    // Predicated region
    $region30: #{resblock_forward.1} parent=1 // pred_check
      _
    $region31: #{resblock_forward.1} parent=1 // pred_check_branch
      %51 = sbr.rel target = $region33
    $region32: #{resblock_forward.1} parent=1 // pred_region
      %52 = sst [smem:[#allocation12]] [#allocation11]
      %53 = sst [smem:[#allocation13]] [#allocation10]
    $region33: #{resblock_forward.1} parent=1 // pred_fallthru
      _
    %55 = shalt.err (0)
    %s57 = sshll.u32 [#allocation2], 4
    %s58 = int_to_ptr.vmem [resolvable:$true] %s57
    %60 = dma.hbm_to_vmem [thread:$0]  %s5, 18432, %s58, [#allocation3]
    %v61 = vld [vmem:[%s3 + $0x6] sm:$0x3]
    %v62 = vld [vmem:[#allocation7] sm:$0xff]
    %v63 = vld [vmem:[#allocation7 + $0x8] sm:$0xff]
    %v64 = vld [vmem:[#allocation7 + $0x10] sm:$0xff]
    %v65 = vld [vmem:[#allocation7 + $0x18] sm:$0xff]
    %v66 = vld [vmem:[#allocation7 + $0x20] sm:$0xff]
    %v67 = vld [vmem:[#allocation7 + $0x28] sm:$0xff]
    %v68 = vld [vmem:[#allocation7 + $0x30] sm:$0xff]
    %v69 = vld [vmem:[#allocation7 + $0x38] sm:$0xff]
    %v70 = vld [vmem:[#allocation7 + $0x40] sm:$0xff]
    %v71 = vld [vmem:[#allocation7 + $0x48] sm:$0xff]
    %v72 = vld [vmem:[#allocation7 + $0x50] sm:$0xff]
    %v73 = vld [vmem:[#allocation7 + $0x58] sm:$0xff]
    %v74 = vld [vmem:[#allocation7 + $0x60] sm:$0xff]
    %v75 = vld [vmem:[#allocation7 + $0x68] sm:$0xff]
    %v76 = vld [vmem:[#allocation7 + $0x70] sm:$0xff]
    %v77 = vld [vmem:[#allocation7 + $0x78] sm:$0xff]
    %v78 = vld [vmem:[%s0] sm:$0xff]
    %v79 = vld [vmem:[%s0 + $0x8] sm:$0xff]
    %v80 = vld [vmem:[%s0 + $0x10] sm:$0xff]
    %v81 = vld [vmem:[%s0 + $0x18] sm:$0xff]
    %v82 = vld [vmem:[%s0 + $0x20] sm:$0xff]
    %v83 = vld [vmem:[%s0 + $0x28] sm:$0xff]
    %v84 = vld [vmem:[%s0 + $0x30] sm:$0xff]
    %v85 = vld [vmem:[%s0 + $0x38] sm:$0xff]
    %v86 = vld [vmem:[%s0 + $0x40] sm:$0xff]
    %v87 = vld [vmem:[%s0 + $0x48] sm:$0xff]
    %v88 = vld [vmem:[%s0 + $0x50] sm:$0xff]
    %v89 = vld [vmem:[%s0 + $0x58] sm:$0xff]
    %v90 = vld [vmem:[%s0 + $0x60] sm:$0xff]
    %v91 = vld [vmem:[%s0 + $0x68] sm:$0xff]
    %v92 = vld [vmem:[%s0 + $0x70] sm:$0xff]
    %v93 = vld [vmem:[%s0 + $0x78] sm:$0xff]
    %v94 = vld [vmem:[%s3] sm:$0x1]
    %s95 = scalar_lea.vmem [#allocation4], 512
    %v96 = vld [vmem:[%s95] sm:$0xff]
    %v97 = vld [vmem:[%s95 + $0x8] sm:$0xff]
    %v98 = vld [vmem:[%s95 + $0x10] sm:$0xff]
    %v99 = vld [vmem:[%s95 + $0x18] sm:$0xff]
    %v100 = vld [vmem:[%s95 + $0x20] sm:$0xff]
    %v101 = vld [vmem:[%s95 + $0x28] sm:$0xff]
    %v102 = vld [vmem:[%s95 + $0x30] sm:$0xff]
    %v103 = vld [vmem:[%s95 + $0x38] sm:$0xff]
    %v104 = vld [vmem:[%s95 + $0x40] sm:$0xff]
    %v105 = vld [vmem:[%s95 + $0x48] sm:$0xff]
    %v106 = vld [vmem:[%s95 + $0x50] sm:$0xff]
    %v107 = vld [vmem:[%s95 + $0x58] sm:$0xff]
    %v108 = vld [vmem:[%s95 + $0x60] sm:$0xff]
    %v109 = vld [vmem:[%s95 + $0x68] sm:$0xff]
    %v110 = vld [vmem:[%s95 + $0x70] sm:$0xff]
    %v111 = vld [vmem:[%s95 + $0x78] sm:$0xff]
    %v112 = vrot.slane %v78, 7
    %v113 = vrot.slane %v79, 7
    %v114 = vrot.slane %v80, 7
    %v115 = vrot.slane %v81, 7
    %v116 = vrot.slane %v82, 7
    %v117 = vrot.slane %v83, 7
    %v118 = vrot.slane %v84, 7
    %v119 = vrot.slane %v85, 7
    %v120 = vrot.slane %v86, 7
    %v121 = vrot.slane %v87, 7
    %v122 = vrot.slane %v88, 7
    %v123 = vrot.slane %v89, 7
    %v124 = vrot.slane %v90, 7
    %v125 = vrot.slane %v91, 7
    %v126 = vrot.slane %v92, 7
    %v127 = vrot.slane %v93, 7
    %v128 = vlaneseq
    %v129 = vshrl.u32 %v128, 7
    %vm130 = vcmp.lt.s32.totalorder %v129, 1
    %v131 = vsel %vm130, %v126, %v127
    %v132 = vsel %vm130, %v125, %v126
    %v133 = vsel %vm130, %v124, %v125
    %v134 = vsel %vm130, %v123, %v124
    %v135 = vsel %vm130, %v122, %v123
    %v136 = vsel %vm130, %v121, %v122
    %v137 = vsel %vm130, %v120, %v121
    %v138 = vsel %vm130, %v119, %v120
    %v139 = vsel %vm130, %v118, %v119
    %v140 = vsel %vm130, %v117, %v118
    %v141 = vsel %vm130, %v116, %v117
    %v142 = vsel %vm130, %v115, %v116
    %v143 = vsel %vm130, %v114, %v115
    %v144 = vsel %vm130, %v113, %v114
    %v145 = vsel %vm130, %v112, %v113
    %v146 = vsel %vm130, %v127, %v112
    %v147 = vld [vmem:[%s4] sm:$0xff]
    %v148 = vld [vmem:[%s4 + $0x8] sm:$0xff]
    %v149 = vld [vmem:[%s4 + $0x10] sm:$0xff]
    %v150 = vld [vmem:[%s4 + $0x18] sm:$0xff]
    %v151 = vld [vmem:[%s4 + $0x20] sm:$0xff]
    %v152 = vld [vmem:[%s4 + $0x28] sm:$0xff]
    %v153 = vld [vmem:[%s4 + $0x30] sm:$0xff]
    %v154 = vld [vmem:[%s4 + $0x38] sm:$0xff]
    %v155 = vld [vmem:[%s4 + $0x40] sm:$0xff]
    %v156 = vld [vmem:[%s4 + $0x48] sm:$0xff]
    %v157 = vld [vmem:[%s4 + $0x50] sm:$0xff]
    %v158 = vld [vmem:[%s4 + $0x58] sm:$0xff]
    %v159 = vld [vmem:[%s4 + $0x60] sm:$0xff]
    %v160 = vld [vmem:[%s4 + $0x68] sm:$0xff]
    %v161 = vld [vmem:[%s4 + $0x70] sm:$0xff]
    %v162 = vld [vmem:[%s4 + $0x78] sm:$0xff]
    %164 = vset.pattern.permute.xlu0 0
    %165 = vperm.xlu0 %164, %v147
    %v166 = vpop.permute.xlu0 %165
    %169 = vset.pattern.permute.xlu0 0
    %170 = vperm.xlu0 %169, %v148
    %v171 = vpop.permute.xlu0 %170
    %174 = vset.pattern.permute.xlu0 0
    %175 = vperm.xlu0 %174, %v149
    %v176 = vpop.permute.xlu0 %175
    %179 = vset.pattern.permute.xlu0 0
    %180 = vperm.xlu0 %179, %v150
    %v181 = vpop.permute.xlu0 %180
    %184 = vset.pattern.permute.xlu0 0
    %185 = vperm.xlu0 %184, %v151
    %v186 = vpop.permute.xlu0 %185
    %189 = vset.pattern.permute.xlu0 0
    %190 = vperm.xlu0 %189, %v152
    %v191 = vpop.permute.xlu0 %190
    %194 = vset.pattern.permute.xlu0 0
    %195 = vperm.xlu0 %194, %v153
    %v196 = vpop.permute.xlu0 %195
    %199 = vset.pattern.permute.xlu0 0
    %200 = vperm.xlu0 %199, %v154
    %v201 = vpop.permute.xlu0 %200
    %204 = vset.pattern.permute.xlu0 0
    %205 = vperm.xlu0 %204, %v155
    %v206 = vpop.permute.xlu0 %205
    %209 = vset.pattern.permute.xlu0 0
    %210 = vperm.xlu0 %209, %v156
    %v211 = vpop.permute.xlu0 %210
    %214 = vset.pattern.permute.xlu0 0
    %215 = vperm.xlu0 %214, %v157
    %v216 = vpop.permute.xlu0 %215
    %219 = vset.pattern.permute.xlu0 0
    %220 = vperm.xlu0 %219, %v158
    %v221 = vpop.permute.xlu0 %220
    %224 = vset.pattern.permute.xlu0 0
    %225 = vperm.xlu0 %224, %v159
    %v226 = vpop.permute.xlu0 %225
    %229 = vset.pattern.permute.xlu0 0
    %230 = vperm.xlu0 %229, %v160
    %v231 = vpop.permute.xlu0 %230
    %234 = vset.pattern.permute.xlu0 0
    %235 = vperm.xlu0 %234, %v161
    %v236 = vpop.permute.xlu0 %235
    %239 = vset.pattern.permute.xlu0 0
    %240 = vperm.xlu0 %239, %v162
    %v241 = vpop.permute.xlu0 %240
    %v243 = vmul.f32 %v131, %v166
    %v244 = vmul.f32 %v146, %v171
    %v245 = vmul.f32 %v145, %v176
    %v246 = vmul.f32 %v144, %v181
    %v247 = vmul.f32 %v143, %v186
    %v248 = vmul.f32 %v142, %v191
    %v249 = vmul.f32 %v141, %v196
    %v250 = vmul.f32 %v140, %v201
    %v251 = vmul.f32 %v139, %v206
    %v252 = vmul.f32 %v138, %v211
    %v253 = vmul.f32 %v137, %v216
    %v254 = vmul.f32 %v136, %v221
    %v255 = vmul.f32 %v135, %v226
    %v256 = vmul.f32 %v134, %v231
    %v257 = vmul.f32 %v133, %v236
    %v258 = vmul.f32 %v132, %v241
    %v259 = vld [vmem:[#allocation4] sm:$0xff]
    %v260 = vld [vmem:[#allocation4 + $0x8] sm:$0xff]
    %v261 = vld [vmem:[#allocation4 + $0x10] sm:$0xff]
    %v262 = vld [vmem:[#allocation4 + $0x18] sm:$0xff]
    %v263 = vld [vmem:[#allocation4 + $0x20] sm:$0xff]
    %v264 = vld [vmem:[#allocation4 + $0x28] sm:$0xff]
    %v265 = vld [vmem:[#allocation4 + $0x30] sm:$0xff]
    %v266 = vld [vmem:[#allocation4 + $0x38] sm:$0xff]
    %v267 = vld [vmem:[#allocation4 + $0x40] sm:$0xff]
    %v268 = vld [vmem:[#allocation4 + $0x48] sm:$0xff]
    %v269 = vld [vmem:[#allocation4 + $0x50] sm:$0xff]
    %v270 = vld [vmem:[#allocation4 + $0x58] sm:$0xff]
    %v271 = vld [vmem:[#allocation4 + $0x60] sm:$0xff]
    %v272 = vld [vmem:[#allocation4 + $0x68] sm:$0xff]
    %v273 = vld [vmem:[#allocation4 + $0x70] sm:$0xff]
    %v274 = vld [vmem:[#allocation4 + $0x78] sm:$0xff]
    %275 = vmatprep.subr.mxu0 0.0
    %276 = vmatpush1.msra.mxu0 %v274
    %277 = vmatprep.subr.mxu0 0.0
    %278 = vmatpush1.msra.mxu0 %v273
    %279 = vmatprep.subr.mxu0 0.0
    %280 = vmatpush1.msra.mxu0 %v272
    %281 = vmatprep.subr.mxu0 0.0
    %282 = vmatpush1.msra.mxu0 %v271
    %283 = vmatprep.subr.mxu0 0.0
    %284 = vmatpush1.msra.mxu0 %v270
    %285 = vmatprep.subr.mxu0 0.0
    %286 = vmatpush1.msra.mxu0 %v269
    %287 = vmatprep.subr.mxu0 0.0
    %288 = vmatpush1.msra.mxu0 %v268
    %289 = vmatprep.subr.mxu0 0.0
    %290 = vmatpush1.msra.mxu0 %v267
    %291 = vmatprep.subr.mxu0 0.0
    %292 = vmatpush1.msra.mxu0 %v266
    %293 = vmatprep.subr.mxu0 0.0
    %294 = vmatpush1.msra.mxu0 %v265
    %295 = vmatprep.subr.mxu0 0.0
    %296 = vmatpush1.msra.mxu0 %v264
    %297 = vmatprep.subr.mxu0 0.0
    %298 = vmatpush1.msra.mxu0 %v263
    %299 = vmatprep.subr.mxu0 0.0
    %300 = vmatpush1.msra.mxu0 %v262
    %301 = vmatprep.subr.mxu0 0.0
    %302 = vmatpush1.msra.mxu0 %v261
    %303 = vmatprep.subr.mxu0 0.0
    %304 = vmatpush1.msra.mxu0 %v260
    %305 = vmatprep.subr.mxu0 0.0
    %306 = vmatpush1.msra.mxu0 %v259
    %307 = vmatprep.subr.mxu0 0.0
    %308 = vmatpush2.msra.mxu0 0.0
    %309 = vmatprep.subr.mxu0 0.0
    %310 = vmatpush2.msra.mxu0 0.0
    %311 = vmatprep.subr.mxu0 0.0
    %312 = vmatpush2.msra.mxu0 0.0
    %313 = vmatprep.subr.mxu0 0.0
    %314 = vmatpush2.msra.mxu0 0.0
    %315 = vmatprep.subr.mxu0 0.0
    %316 = vmatpush2.msra.mxu0 0.0
    %317 = vmatprep.subr.mxu0 0.0
    %318 = vmatpush2.msra.mxu0 0.0
    %319 = vmatprep.subr.mxu0 0.0
    %320 = vmatpush2.msra.mxu0 0.0
    %321 = vmatprep.subr.mxu0 0.0
    %322 = vmatpush2.msra.mxu0 0.0
    %323 = vmatprep.subr.mxu0 0.0
    %324 = vmatpush2.msra.mxu0 0.0
    %325 = vmatprep.subr.mxu0 0.0
    %326 = vmatpush2.msra.mxu0 0.0
    %327 = vmatprep.subr.mxu0 0.0
    %328 = vmatpush2.msra.mxu0 0.0
    %329 = vmatprep.subr.mxu0 0.0
    %330 = vmatpush2.msra.mxu0 0.0
    %331 = vmatprep.subr.mxu0 0.0
    %332 = vmatpush2.msra.mxu0 0.0
    %333 = vmatprep.subr.mxu0 0.0
    %334 = vmatpush2.msra.mxu0 0.0
    %335 = vmatprep.subr.mxu0 0.0
    %336 = vmatpush2.msra.mxu0 0.0
    %337 = vmatprep.subr.mxu0 0.0
    %338 = vmatpush2.msra.mxu0 0.0
    %339 = vmatprep.mubr.f32.mxu0 0.0
    %340 = vmatmul.mubr.f32.gmra.mxu0 %v243
    %v341 = vpop.f32.mrf.mxu0
    %v342 = vadd.f32 0.0, %v341
    %v343 = vpop.f32.mrf.mxu0
    %344 = vmatprep.mubr.f32.mxu0 0.0
    %345 = vmatmul.mubr.f32.gmra.mxu0 %v244
    %v346 = vpop.f32.mrf.mxu0
    %v347 = vadd.f32 0.0, %v346
    %v348 = vpop.f32.mrf.mxu0
    %349 = vmatprep.mubr.f32.mxu0 0.0
    %350 = vmatmul.mubr.f32.gmra.mxu0 %v245
    %v351 = vpop.f32.mrf.mxu0
    %v352 = vadd.f32 0.0, %v351
    %v353 = vpop.f32.mrf.mxu0
    %354 = vmatprep.mubr.f32.mxu0 0.0
    %355 = vmatmul.mubr.f32.gmra.mxu0 %v246
    %v356 = vpop.f32.mrf.mxu0
    %v357 = vadd.f32 0.0, %v356
    %v358 = vpop.f32.mrf.mxu0
    %359 = vmatprep.mubr.f32.mxu0 0.0
    %360 = vmatmul.mubr.f32.gmra.mxu0 %v247
    %v361 = vpop.f32.mrf.mxu0
    %v362 = vadd.f32 0.0, %v361
    %v363 = vpop.f32.mrf.mxu0
    %364 = vmatprep.mubr.f32.mxu0 0.0
    %365 = vmatmul.mubr.f32.gmra.mxu0 %v248
    %v366 = vpop.f32.mrf.mxu0
    %v367 = vadd.f32 0.0, %v366
    %v368 = vpop.f32.mrf.mxu0
    %369 = vmatprep.mubr.f32.mxu0 0.0
    %370 = vmatmul.mubr.f32.gmra.mxu0 %v249
    %v371 = vpop.f32.mrf.mxu0
    %v372 = vadd.f32 0.0, %v371
    %v373 = vpop.f32.mrf.mxu0
    %374 = vmatprep.mubr.f32.mxu0 0.0
    %375 = vmatmul.mubr.f32.gmra.mxu0 %v250
    %v376 = vpop.f32.mrf.mxu0
    %v377 = vadd.f32 0.0, %v376
    %v378 = vpop.f32.mrf.mxu0
    %379 = vmatprep.mubr.f32.mxu0 0.0
    %380 = vmatmul.mubr.f32.gmra.mxu0 %v251
    %v381 = vpop.f32.mrf.mxu0
    %v382 = vadd.f32 0.0, %v381
    %v383 = vpop.f32.mrf.mxu0
    %384 = vmatprep.mubr.f32.mxu0 0.0
    %385 = vmatmul.mubr.f32.gmra.mxu0 %v252
    %v386 = vpop.f32.mrf.mxu0
    %v387 = vadd.f32 0.0, %v386
    %v388 = vpop.f32.mrf.mxu0
    %389 = vmatprep.mubr.f32.mxu0 0.0
    %390 = vmatmul.mubr.f32.gmra.mxu0 %v253
    %v391 = vpop.f32.mrf.mxu0
    %v392 = vadd.f32 0.0, %v391
    %v393 = vpop.f32.mrf.mxu0
    %394 = vmatprep.mubr.f32.mxu0 0.0
    %395 = vmatmul.mubr.f32.gmra.mxu0 %v254
    %v396 = vpop.f32.mrf.mxu0
    %v397 = vadd.f32 0.0, %v396
    %v398 = vpop.f32.mrf.mxu0
    %399 = vmatprep.mubr.f32.mxu0 0.0
    %400 = vmatmul.mubr.f32.gmra.mxu0 %v255
    %v401 = vpop.f32.mrf.mxu0
    %v402 = vadd.f32 0.0, %v401
    %v403 = vpop.f32.mrf.mxu0
    %404 = vmatprep.mubr.f32.mxu0 0.0
    %405 = vmatmul.mubr.f32.gmra.mxu0 %v256
    %v406 = vpop.f32.mrf.mxu0
    %v407 = vadd.f32 0.0, %v406
    %v408 = vpop.f32.mrf.mxu0
    %409 = vmatprep.mubr.f32.mxu0 0.0
    %410 = vmatmul.mubr.f32.gmra.mxu0 %v257
    %v411 = vpop.f32.mrf.mxu0
    %v412 = vadd.f32 0.0, %v411
    %v413 = vpop.f32.mrf.mxu0
    %414 = vmatprep.mubr.f32.mxu0 0.0
    %415 = vmatmul.mubr.f32.gmra.mxu0 %v258
    %v416 = vpop.f32.mrf.mxu0
    %v417 = vadd.f32 0.0, %v416
    %v418 = vpop.f32.mrf.mxu0
    %419 = vdwg.mxu0
    %420 = vmatprep.subr.mxu0 0.0
    %421 = vmatpush1.msra.mxu0 %v111
    %422 = vmatprep.subr.mxu0 0.0
    %423 = vmatpush1.msra.mxu0 %v110
    %424 = vmatprep.subr.mxu0 0.0
    %425 = vmatpush1.msra.mxu0 %v109
    %426 = vmatprep.subr.mxu0 0.0
    %427 = vmatpush1.msra.mxu0 %v108
    %428 = vmatprep.subr.mxu0 0.0
    %429 = vmatpush1.msra.mxu0 %v107
    %430 = vmatprep.subr.mxu0 0.0
    %431 = vmatpush1.msra.mxu0 %v106
    %432 = vmatprep.subr.mxu0 0.0
    %433 = vmatpush1.msra.mxu0 %v105
    %434 = vmatprep.subr.mxu0 0.0
    %435 = vmatpush1.msra.mxu0 %v104
    %436 = vmatprep.subr.mxu0 0.0
    %437 = vmatpush1.msra.mxu0 %v103
    %438 = vmatprep.subr.mxu0 0.0
    %439 = vmatpush1.msra.mxu0 %v102
    %440 = vmatprep.subr.mxu0 0.0
    %441 = vmatpush1.msra.mxu0 %v101
    %442 = vmatprep.subr.mxu0 0.0
    %443 = vmatpush1.msra.mxu0 %v100
    %444 = vmatprep.subr.mxu0 0.0
    %445 = vmatpush1.msra.mxu0 %v99
    %446 = vmatprep.subr.mxu0 0.0
    %447 = vmatpush1.msra.mxu0 %v98
    %448 = vmatprep.subr.mxu0 0.0
    %449 = vmatpush1.msra.mxu0 %v97
    %450 = vmatprep.subr.mxu0 0.0
    %451 = vmatpush1.msra.mxu0 %v96
    %452 = vmatprep.subr.mxu0 0.0
    %453 = vmatpush2.msra.mxu0 0.0
    %454 = vmatprep.subr.mxu0 0.0
    %455 = vmatpush2.msra.mxu0 0.0
    %456 = vmatprep.subr.mxu0 0.0
    %457 = vmatpush2.msra.mxu0 0.0
    %458 = vmatprep.subr.mxu0 0.0
    %459 = vmatpush2.msra.mxu0 0.0
    %460 = vmatprep.subr.mxu0 0.0
    %461 = vmatpush2.msra.mxu0 0.0
    %462 = vmatprep.subr.mxu0 0.0
    %463 = vmatpush2.msra.mxu0 0.0
    %464 = vmatprep.subr.mxu0 0.0
    %465 = vmatpush2.msra.mxu0 0.0
    %466 = vmatprep.subr.mxu0 0.0
    %467 = vmatpush2.msra.mxu0 0.0
    %468 = vmatprep.subr.mxu0 0.0
    %469 = vmatpush2.msra.mxu0 0.0
    %470 = vmatprep.subr.mxu0 0.0
    %471 = vmatpush2.msra.mxu0 0.0
    %472 = vmatprep.subr.mxu0 0.0
    %473 = vmatpush2.msra.mxu0 0.0
    %474 = vmatprep.subr.mxu0 0.0
    %475 = vmatpush2.msra.mxu0 0.0
    %476 = vmatprep.subr.mxu0 0.0
    %477 = vmatpush2.msra.mxu0 0.0
    %478 = vmatprep.subr.mxu0 0.0
    %479 = vmatpush2.msra.mxu0 0.0
    %480 = vmatprep.subr.mxu0 0.0
    %481 = vmatpush2.msra.mxu0 0.0
    %482 = vmatprep.subr.mxu0 0.0
    %483 = vmatpush2.msra.mxu0 0.0
    %484 = vmatprep.mubr.f32.mxu0 0.0
    %485 = vmatmul.mubr.f32.gmra.mxu0 %v78
    %v486 = vpop.f32.mrf.mxu0
    %v487 = vadd.f32 %v342, %v486
    %v488 = vpop.f32.mrf.mxu0
    %489 = vmatprep.mubr.f32.mxu0 0.0
    %490 = vmatmul.mubr.f32.gmra.mxu0 %v79
    %v491 = vpop.f32.mrf.mxu0
    %v492 = vadd.f32 %v347, %v491
    %v493 = vpop.f32.mrf.mxu0
    %494 = vmatprep.mubr.f32.mxu0 0.0
    %495 = vmatmul.mubr.f32.gmra.mxu0 %v80
    %v496 = vpop.f32.mrf.mxu0
    %v497 = vadd.f32 %v352, %v496
    %v498 = vpop.f32.mrf.mxu0
    %499 = vmatprep.mubr.f32.mxu0 0.0
    %500 = vmatmul.mubr.f32.gmra.mxu0 %v81
    %v501 = vpop.f32.mrf.mxu0
    %v502 = vadd.f32 %v357, %v501
    %v503 = vpop.f32.mrf.mxu0
    %504 = vmatprep.mubr.f32.mxu0 0.0
    %505 = vmatmul.mubr.f32.gmra.mxu0 %v82
    %v506 = vpop.f32.mrf.mxu0
    %v507 = vadd.f32 %v362, %v506
    %v508 = vpop.f32.mrf.mxu0
    %509 = vmatprep.mubr.f32.mxu0 0.0
    %510 = vmatmul.mubr.f32.gmra.mxu0 %v83
    %v511 = vpop.f32.mrf.mxu0
    %v512 = vadd.f32 %v367, %v511
    %v513 = vpop.f32.mrf.mxu0
    %514 = vmatprep.mubr.f32.mxu0 0.0
    %515 = vmatmul.mubr.f32.gmra.mxu0 %v84
    %v516 = vpop.f32.mrf.mxu0
    %v517 = vadd.f32 %v372, %v516
    %v518 = vpop.f32.mrf.mxu0
    %519 = vmatprep.mubr.f32.mxu0 0.0
    %520 = vmatmul.mubr.f32.gmra.mxu0 %v85
    %v521 = vpop.f32.mrf.mxu0
    %v522 = vadd.f32 %v377, %v521
    %v523 = vpop.f32.mrf.mxu0
    %524 = vmatprep.mubr.f32.mxu0 0.0
    %525 = vmatmul.mubr.f32.gmra.mxu0 %v86
    %v526 = vpop.f32.mrf.mxu0
    %v527 = vadd.f32 %v382, %v526
    %v528 = vpop.f32.mrf.mxu0
    %529 = vmatprep.mubr.f32.mxu0 0.0
    %530 = vmatmul.mubr.f32.gmra.mxu0 %v87
    %v531 = vpop.f32.mrf.mxu0
    %v532 = vadd.f32 %v387, %v531
    %v533 = vpop.f32.mrf.mxu0
    %534 = vmatprep.mubr.f32.mxu0 0.0
    %535 = vmatmul.mubr.f32.gmra.mxu0 %v88
    %v536 = vpop.f32.mrf.mxu0
    %v537 = vadd.f32 %v392, %v536
    %v538 = vpop.f32.mrf.mxu0
    %539 = vmatprep.mubr.f32.mxu0 0.0
    %540 = vmatmul.mubr.f32.gmra.mxu0 %v89
    %v541 = vpop.f32.mrf.mxu0
    %v542 = vadd.f32 %v397, %v541
    %v543 = vpop.f32.mrf.mxu0
    %544 = vmatprep.mubr.f32.mxu0 0.0
    %545 = vmatmul.mubr.f32.gmra.mxu0 %v90
    %v546 = vpop.f32.mrf.mxu0
    %v547 = vadd.f32 %v402, %v546
    %v548 = vpop.f32.mrf.mxu0
    %549 = vmatprep.mubr.f32.mxu0 0.0
    %550 = vmatmul.mubr.f32.gmra.mxu0 %v91
    %v551 = vpop.f32.mrf.mxu0
    %v552 = vadd.f32 %v407, %v551
    %v553 = vpop.f32.mrf.mxu0
    %554 = vmatprep.mubr.f32.mxu0 0.0
    %555 = vmatmul.mubr.f32.gmra.mxu0 %v92
    %v556 = vpop.f32.mrf.mxu0
    %v557 = vadd.f32 %v412, %v556
    %v558 = vpop.f32.mrf.mxu0
    %559 = vmatprep.mubr.f32.mxu0 0.0
    %560 = vmatmul.mubr.f32.gmra.mxu0 %v93
    %v561 = vpop.f32.mrf.mxu0
    %v562 = vadd.f32 %v417, %v561
    %v563 = vpop.f32.mrf.mxu0
    %564 = vdwg.mxu0
    %565 = vset.pattern.permute.xlu0 1
    %566 = vperm.xlu0 %565, %v147
    %v567 = vpop.permute.xlu0 %566
    %569 = vset.pattern.permute.xlu0 1
    %570 = vperm.xlu0 %569, %v148
    %v571 = vpop.permute.xlu0 %570
    %573 = vset.pattern.permute.xlu0 1
    %574 = vperm.xlu0 %573, %v149
    %v575 = vpop.permute.xlu0 %574
    %577 = vset.pattern.permute.xlu0 1
    %578 = vperm.xlu0 %577, %v150
    %v579 = vpop.permute.xlu0 %578
    %581 = vset.pattern.permute.xlu0 1
    %582 = vperm.xlu0 %581, %v151
    %v583 = vpop.permute.xlu0 %582
    %585 = vset.pattern.permute.xlu0 1
    %586 = vperm.xlu0 %585, %v152
    %v587 = vpop.permute.xlu0 %586
    %589 = vset.pattern.permute.xlu0 1
    %590 = vperm.xlu0 %589, %v153
    %v591 = vpop.permute.xlu0 %590
    %593 = vset.pattern.permute.xlu0 1
    %594 = vperm.xlu0 %593, %v154
    %v595 = vpop.permute.xlu0 %594
    %597 = vset.pattern.permute.xlu0 1
    %598 = vperm.xlu0 %597, %v155
    %v599 = vpop.permute.xlu0 %598
    %601 = vset.pattern.permute.xlu0 1
    %602 = vperm.xlu0 %601, %v156
    %v603 = vpop.permute.xlu0 %602
    %605 = vset.pattern.permute.xlu0 1
    %606 = vperm.xlu0 %605, %v157
    %v607 = vpop.permute.xlu0 %606
    %609 = vset.pattern.permute.xlu0 1
    %610 = vperm.xlu0 %609, %v158
    %v611 = vpop.permute.xlu0 %610
    %613 = vset.pattern.permute.xlu0 1
    %614 = vperm.xlu0 %613, %v159
    %v615 = vpop.permute.xlu0 %614
    %617 = vset.pattern.permute.xlu0 1
    %618 = vperm.xlu0 %617, %v160
    %v619 = vpop.permute.xlu0 %618
    %621 = vset.pattern.permute.xlu0 1
    %622 = vperm.xlu0 %621, %v161
    %v623 = vpop.permute.xlu0 %622
    %625 = vset.pattern.permute.xlu0 1
    %626 = vperm.xlu0 %625, %v162
    %v627 = vpop.permute.xlu0 %626
    %v629 = vmul.f32 %v93, %v567
    %v630 = vmul.f32 %v78, %v571
    %v631 = vmul.f32 %v79, %v575
    %v632 = vmul.f32 %v80, %v579
    %v633 = vmul.f32 %v81, %v583
    %v634 = vmul.f32 %v82, %v587
    %v635 = vmul.f32 %v83, %v591
    %v636 = vmul.f32 %v84, %v595
    %v637 = vmul.f32 %v85, %v599
    %v638 = vmul.f32 %v86, %v603
    %v639 = vmul.f32 %v87, %v607
    %v640 = vmul.f32 %v88, %v611
    %v641 = vmul.f32 %v89, %v615
    %v642 = vmul.f32 %v90, %v619
    %v643 = vmul.f32 %v91, %v623
    %v644 = vmul.f32 %v92, %v627
    %s645 = scalar_lea.vmem [#allocation4], 128
    %v646 = vld [vmem:[%s645] sm:$0xff]
    %v647 = vld [vmem:[%s645 + $0x8] sm:$0xff]
    %v648 = vld [vmem:[%s645 + $0x10] sm:$0xff]
    %v649 = vld [vmem:[%s645 + $0x18] sm:$0xff]
    %v650 = vld [vmem:[%s645 + $0x20] sm:$0xff]
    %v651 = vld [vmem:[%s645 + $0x28] sm:$0xff]
    %v652 = vld [vmem:[%s645 + $0x30] sm:$0xff]
    %v653 = vld [vmem:[%s645 + $0x38] sm:$0xff]
    %v654 = vld [vmem:[%s645 + $0x40] sm:$0xff]
    %v655 = vld [vmem:[%s645 + $0x48] sm:$0xff]
    %v656 = vld [vmem:[%s645 + $0x50] sm:$0xff]
    %v657 = vld [vmem:[%s645 + $0x58] sm:$0xff]
    %v658 = vld [vmem:[%s645 + $0x60] sm:$0xff]
    %v659 = vld [vmem:[%s645 + $0x68] sm:$0xff]
    %v660 = vld [vmem:[%s645 + $0x70] sm:$0xff]
    %v661 = vld [vmem:[%s645 + $0x78] sm:$0xff]
    %662 = vmatprep.subr.mxu0 0.0
    %663 = vmatpush1.msra.mxu0 %v661
    %664 = vmatprep.subr.mxu0 0.0
    %665 = vmatpush1.msra.mxu0 %v660
    %666 = vmatprep.subr.mxu0 0.0
    %667 = vmatpush1.msra.mxu0 %v659
    %668 = vmatprep.subr.mxu0 0.0
    %669 = vmatpush1.msra.mxu0 %v658
    %670 = vmatprep.subr.mxu0 0.0
    %671 = vmatpush1.msra.mxu0 %v657
    %672 = vmatprep.subr.mxu0 0.0
    %673 = vmatpush1.msra.mxu0 %v656
    %674 = vmatprep.subr.mxu0 0.0
    %675 = vmatpush1.msra.mxu0 %v655
    %676 = vmatprep.subr.mxu0 0.0
    %677 = vmatpush1.msra.mxu0 %v654
    %678 = vmatprep.subr.mxu0 0.0
    %679 = vmatpush1.msra.mxu0 %v653
    %680 = vmatprep.subr.mxu0 0.0
    %681 = vmatpush1.msra.mxu0 %v652
    %682 = vmatprep.subr.mxu0 0.0
    %683 = vmatpush1.msra.mxu0 %v651
    %684 = vmatprep.subr.mxu0 0.0
    %685 = vmatpush1.msra.mxu0 %v650
    %686 = vmatprep.subr.mxu0 0.0
    %687 = vmatpush1.msra.mxu0 %v649
    %688 = vmatprep.subr.mxu0 0.0
    %689 = vmatpush1.msra.mxu0 %v648
    %690 = vmatprep.subr.mxu0 0.0
    %691 = vmatpush1.msra.mxu0 %v647
    %692 = vmatprep.subr.mxu0 0.0
    %693 = vmatpush1.msra.mxu0 %v646
    %694 = vmatprep.subr.mxu0 0.0
    %695 = vmatpush2.msra.mxu0 0.0
    %696 = vmatprep.subr.mxu0 0.0
    %697 = vmatpush2.msra.mxu0 0.0
    %698 = vmatprep.subr.mxu0 0.0
    %699 = vmatpush2.msra.mxu0 0.0
    %700 = vmatprep.subr.mxu0 0.0
    %701 = vmatpush2.msra.mxu0 0.0
    %702 = vmatprep.subr.mxu0 0.0
    %703 = vmatpush2.msra.mxu0 0.0
    %704 = vmatprep.subr.mxu0 0.0
    %705 = vmatpush2.msra.mxu0 0.0
    %706 = vmatprep.subr.mxu0 0.0
    %707 = vmatpush2.msra.mxu0 0.0
    %708 = vmatprep.subr.mxu0 0.0
    %709 = vmatpush2.msra.mxu0 0.0
    %710 = vmatprep.subr.mxu0 0.0
    %711 = vmatpush2.msra.mxu0 0.0
    %712 = vmatprep.subr.mxu0 0.0
    %713 = vmatpush2.msra.mxu0 0.0
    %714 = vmatprep.subr.mxu0 0.0
    %715 = vmatpush2.msra.mxu0 0.0
    %716 = vmatprep.subr.mxu0 0.0
    %717 = vmatpush2.msra.mxu0 0.0
    %718 = vmatprep.subr.mxu0 0.0
    %719 = vmatpush2.msra.mxu0 0.0
    %720 = vmatprep.subr.mxu0 0.0
    %721 = vmatpush2.msra.mxu0 0.0
    %722 = vmatprep.subr.mxu0 0.0
    %723 = vmatpush2.msra.mxu0 0.0
    %724 = vmatprep.subr.mxu0 0.0
    %725 = vmatpush2.msra.mxu0 0.0
    %726 = vmatprep.mubr.f32.mxu0 0.0
    %727 = vmatmul.mubr.f32.gmra.mxu0 %v629
    %v728 = vpop.f32.mrf.mxu0
    %v729 = vadd.f32 0.0, %v728
    %v730 = vpop.f32.mrf.mxu0
    %731 = vmatprep.mubr.f32.mxu0 0.0
    %732 = vmatmul.mubr.f32.gmra.mxu0 %v630
    %v733 = vpop.f32.mrf.mxu0
    %v734 = vadd.f32 0.0, %v733
    %v735 = vpop.f32.mrf.mxu0
    %736 = vmatprep.mubr.f32.mxu0 0.0
    %737 = vmatmul.mubr.f32.gmra.mxu0 %v631
    %v738 = vpop.f32.mrf.mxu0
    %v739 = vadd.f32 0.0, %v738
    %v740 = vpop.f32.mrf.mxu0
    %741 = vmatprep.mubr.f32.mxu0 0.0
    %742 = vmatmul.mubr.f32.gmra.mxu0 %v632
    %v743 = vpop.f32.mrf.mxu0
    %v744 = vadd.f32 0.0, %v743
    %v745 = vpop.f32.mrf.mxu0
    %746 = vmatprep.mubr.f32.mxu0 0.0
    %747 = vmatmul.mubr.f32.gmra.mxu0 %v633
    %v748 = vpop.f32.mrf.mxu0
    %v749 = vadd.f32 0.0, %v748
    %v750 = vpop.f32.mrf.mxu0
    %751 = vmatprep.mubr.f32.mxu0 0.0
    %752 = vmatmul.mubr.f32.gmra.mxu0 %v634
    %v753 = vpop.f32.mrf.mxu0
    %v754 = vadd.f32 0.0, %v753
    %v755 = vpop.f32.mrf.mxu0
    %756 = vmatprep.mubr.f32.mxu0 0.0
    %757 = vmatmul.mubr.f32.gmra.mxu0 %v635
    %v758 = vpop.f32.mrf.mxu0
    %v759 = vadd.f32 0.0, %v758
    %v760 = vpop.f32.mrf.mxu0
    %761 = vmatprep.mubr.f32.mxu0 0.0
    %762 = vmatmul.mubr.f32.gmra.mxu0 %v636
    %v763 = vpop.f32.mrf.mxu0
    %v764 = vadd.f32 0.0, %v763
    %v765 = vpop.f32.mrf.mxu0
    %766 = vmatprep.mubr.f32.mxu0 0.0
    %767 = vmatmul.mubr.f32.gmra.mxu0 %v637
    %v768 = vpop.f32.mrf.mxu0
    %v769 = vadd.f32 0.0, %v768
    %v770 = vpop.f32.mrf.mxu0
    %771 = vmatprep.mubr.f32.mxu0 0.0
    %772 = vmatmul.mubr.f32.gmra.mxu0 %v638
    %v773 = vpop.f32.mrf.mxu0
    %v774 = vadd.f32 0.0, %v773
    %v775 = vpop.f32.mrf.mxu0
    %776 = vmatprep.mubr.f32.mxu0 0.0
    %777 = vmatmul.mubr.f32.gmra.mxu0 %v639
    %v778 = vpop.f32.mrf.mxu0
    %v779 = vadd.f32 0.0, %v778
    %v780 = vpop.f32.mrf.mxu0
    %781 = vmatprep.mubr.f32.mxu0 0.0
    %782 = vmatmul.mubr.f32.gmra.mxu0 %v640
    %v783 = vpop.f32.mrf.mxu0
    %v784 = vadd.f32 0.0, %v783
    %v785 = vpop.f32.mrf.mxu0
    %786 = vmatprep.mubr.f32.mxu0 0.0
    %787 = vmatmul.mubr.f32.gmra.mxu0 %v641
    %v788 = vpop.f32.mrf.mxu0
    %v789 = vadd.f32 0.0, %v788
    %v790 = vpop.f32.mrf.mxu0
    %791 = vmatprep.mubr.f32.mxu0 0.0
    %792 = vmatmul.mubr.f32.gmra.mxu0 %v642
    %v793 = vpop.f32.mrf.mxu0
    %v794 = vadd.f32 0.0, %v793
    %v795 = vpop.f32.mrf.mxu0
    %796 = vmatprep.mubr.f32.mxu0 0.0
    %797 = vmatmul.mubr.f32.gmra.mxu0 %v643
    %v798 = vpop.f32.mrf.mxu0
    %v799 = vadd.f32 0.0, %v798
    %v800 = vpop.f32.mrf.mxu0
    %801 = vmatprep.mubr.f32.mxu0 0.0
    %802 = vmatmul.mubr.f32.gmra.mxu0 %v644
    %v803 = vpop.f32.mrf.mxu0
    %v804 = vadd.f32 0.0, %v803
    %v805 = vpop.f32.mrf.mxu0
    %806 = vdwg.mxu0
    %v807 = vadd.f32 %v487, %v729
    %v808 = vadd.f32 %v492, %v734
    %v809 = vadd.f32 %v497, %v739
    %v810 = vadd.f32 %v502, %v744
    %v811 = vadd.f32 %v507, %v749
    %v812 = vadd.f32 %v512, %v754
    %v813 = vadd.f32 %v517, %v759
    %v814 = vadd.f32 %v522, %v764
    %v815 = vadd.f32 %v527, %v769
    %v816 = vadd.f32 %v532, %v774
    %v817 = vadd.f32 %v537, %v779
    %v818 = vadd.f32 %v542, %v784
    %v819 = vadd.f32 %v547, %v789
    %v820 = vadd.f32 %v552, %v794
    %v821 = vadd.f32 %v557, %v799
    %v822 = vadd.f32 %v562, %v804
    %v823 = vrot.slane %v78, 1
    %v824 = vrot.slane %v79, 1
    %v825 = vrot.slane %v80, 1
    %v826 = vrot.slane %v81, 1
    %v827 = vrot.slane %v82, 1
    %v828 = vrot.slane %v83, 1
    %v829 = vrot.slane %v84, 1
    %v830 = vrot.slane %v85, 1
    %v831 = vrot.slane %v86, 1
    %v832 = vrot.slane %v87, 1
    %v833 = vrot.slane %v88, 1
    %v834 = vrot.slane %v89, 1
    %v835 = vrot.slane %v90, 1
    %v836 = vrot.slane %v91, 1
    %v837 = vrot.slane %v92, 1
    %v838 = vrot.slane %v93, 1
    %vm839 = vcmp.lt.s32.totalorder %v129, 7
    %v840 = vsel %vm839, %v837, %v838
    %v841 = vsel %vm839, %v836, %v837
    %v842 = vsel %vm839, %v835, %v836
    %v843 = vsel %vm839, %v834, %v835
    %v844 = vsel %vm839, %v833, %v834
    %v845 = vsel %vm839, %v832, %v833
    %v846 = vsel %vm839, %v831, %v832
    %v847 = vsel %vm839, %v830, %v831
    %v848 = vsel %vm839, %v829, %v830
    %v849 = vsel %vm839, %v828, %v829
    %v850 = vsel %vm839, %v827, %v828
    %v851 = vsel %vm839, %v826, %v827
    %v852 = vsel %vm839, %v825, %v826
    %v853 = vsel %vm839, %v824, %v825
    %v854 = vsel %vm839, %v823, %v824
    %v855 = vsel %vm839, %v838, %v823
    %856 = vset.pattern.permute.xlu0 2
    %857 = vperm.xlu0 %856, %v147
    %v858 = vpop.permute.xlu0 %857
    %860 = vset.pattern.permute.xlu0 2
    %861 = vperm.xlu0 %860, %v148
    %v862 = vpop.permute.xlu0 %861
    %864 = vset.pattern.permute.xlu0 2
    %865 = vperm.xlu0 %864, %v149
    %v866 = vpop.permute.xlu0 %865
    %868 = vset.pattern.permute.xlu0 2
    %869 = vperm.xlu0 %868, %v150
    %v870 = vpop.permute.xlu0 %869
    %872 = vset.pattern.permute.xlu0 2
    %873 = vperm.xlu0 %872, %v151
    %v874 = vpop.permute.xlu0 %873
    %876 = vset.pattern.permute.xlu0 2
    %877 = vperm.xlu0 %876, %v152
    %v878 = vpop.permute.xlu0 %877
    %880 = vset.pattern.permute.xlu0 2
    %881 = vperm.xlu0 %880, %v153
    %v882 = vpop.permute.xlu0 %881
    %884 = vset.pattern.permute.xlu0 2
    %885 = vperm.xlu0 %884, %v154
    %v886 = vpop.permute.xlu0 %885
    %888 = vset.pattern.permute.xlu0 2
    %889 = vperm.xlu0 %888, %v155
    %v890 = vpop.permute.xlu0 %889
    %892 = vset.pattern.permute.xlu0 2
    %893 = vperm.xlu0 %892, %v156
    %v894 = vpop.permute.xlu0 %893
    %896 = vset.pattern.permute.xlu0 2
    %897 = vperm.xlu0 %896, %v157
    %v898 = vpop.permute.xlu0 %897
    %900 = vset.pattern.permute.xlu0 2
    %901 = vperm.xlu0 %900, %v158
    %v902 = vpop.permute.xlu0 %901
    %904 = vset.pattern.permute.xlu0 2
    %905 = vperm.xlu0 %904, %v159
    %v906 = vpop.permute.xlu0 %905
    %908 = vset.pattern.permute.xlu0 2
    %909 = vperm.xlu0 %908, %v160
    %v910 = vpop.permute.xlu0 %909
    %912 = vset.pattern.permute.xlu0 2
    %913 = vperm.xlu0 %912, %v161
    %v914 = vpop.permute.xlu0 %913
    %916 = vset.pattern.permute.xlu0 2
    %917 = vperm.xlu0 %916, %v162
    %v918 = vpop.permute.xlu0 %917
    %v920 = vmul.f32 %v855, %v858
    %v921 = vmul.f32 %v854, %v862
    %v922 = vmul.f32 %v853, %v866
    %v923 = vmul.f32 %v852, %v870
    %v924 = vmul.f32 %v851, %v874
    %v925 = vmul.f32 %v850, %v878
    %v926 = vmul.f32 %v849, %v882
    %v927 = vmul.f32 %v848, %v886
    %v928 = vmul.f32 %v847, %v890
    %v929 = vmul.f32 %v846, %v894
    %v930 = vmul.f32 %v845, %v898
    %v931 = vmul.f32 %v844, %v902
    %v932 = vmul.f32 %v843, %v906
    %v933 = vmul.f32 %v842, %v910
    %v934 = vmul.f32 %v841, %v914
    %v935 = vmul.f32 %v840, %v918
    %s936 = scalar_lea.vmem [#allocation4], 256
    %v937 = vld [vmem:[%s936] sm:$0xff]
    %v938 = vld [vmem:[%s936 + $0x8] sm:$0xff]
    %v939 = vld [vmem:[%s936 + $0x10] sm:$0xff]
    %v940 = vld [vmem:[%s936 + $0x18] sm:$0xff]
    %v941 = vld [vmem:[%s936 + $0x20] sm:$0xff]
    %v942 = vld [vmem:[%s936 + $0x28] sm:$0xff]
    %v943 = vld [vmem:[%s936 + $0x30] sm:$0xff]
    %v944 = vld [vmem:[%s936 + $0x38] sm:$0xff]
    %v945 = vld [vmem:[%s936 + $0x40] sm:$0xff]
    %v946 = vld [vmem:[%s936 + $0x48] sm:$0xff]
    %v947 = vld [vmem:[%s936 + $0x50] sm:$0xff]
    %v948 = vld [vmem:[%s936 + $0x58] sm:$0xff]
    %v949 = vld [vmem:[%s936 + $0x60] sm:$0xff]
    %v950 = vld [vmem:[%s936 + $0x68] sm:$0xff]
    %v951 = vld [vmem:[%s936 + $0x70] sm:$0xff]
    %v952 = vld [vmem:[%s936 + $0x78] sm:$0xff]
    %953 = vmatprep.subr.mxu0 0.0
    %954 = vmatpush1.msra.mxu0 %v952
    %955 = vmatprep.subr.mxu0 0.0
    %956 = vmatpush1.msra.mxu0 %v951
    %957 = vmatprep.subr.mxu0 0.0
    %958 = vmatpush1.msra.mxu0 %v950
    %959 = vmatprep.subr.mxu0 0.0
    %960 = vmatpush1.msra.mxu0 %v949
    %961 = vmatprep.subr.mxu0 0.0
    %962 = vmatpush1.msra.mxu0 %v948
    %963 = vmatprep.subr.mxu0 0.0
    %964 = vmatpush1.msra.mxu0 %v947
    %965 = vmatprep.subr.mxu0 0.0
    %966 = vmatpush1.msra.mxu0 %v946
    %967 = vmatprep.subr.mxu0 0.0
    %968 = vmatpush1.msra.mxu0 %v945
    %969 = vmatprep.subr.mxu0 0.0
    %970 = vmatpush1.msra.mxu0 %v944
    %971 = vmatprep.subr.mxu0 0.0
    %972 = vmatpush1.msra.mxu0 %v943
    %973 = vmatprep.subr.mxu0 0.0
    %974 = vmatpush1.msra.mxu0 %v942
    %975 = vmatprep.subr.mxu0 0.0
    %976 = vmatpush1.msra.mxu0 %v941
    %977 = vmatprep.subr.mxu0 0.0
    %978 = vmatpush1.msra.mxu0 %v940
    %979 = vmatprep.subr.mxu0 0.0
    %980 = vmatpush1.msra.mxu0 %v939
    %981 = vmatprep.subr.mxu0 0.0
    %982 = vmatpush1.msra.mxu0 %v938
    %983 = vmatprep.subr.mxu0 0.0
    %984 = vmatpush1.msra.mxu0 %v937
    %985 = vmatprep.subr.mxu0 0.0
    %986 = vmatpush2.msra.mxu0 0.0
    %987 = vmatprep.subr.mxu0 0.0
    %988 = vmatpush2.msra.mxu0 0.0
    %989 = vmatprep.subr.mxu0 0.0
    %990 = vmatpush2.msra.mxu0 0.0
    %991 = vmatprep.subr.mxu0 0.0
    %992 = vmatpush2.msra.mxu0 0.0
    %993 = vmatprep.subr.mxu0 0.0
    %994 = vmatpush2.msra.mxu0 0.0
    %995 = vmatprep.subr.mxu0 0.0
    %996 = vmatpush2.msra.mxu0 0.0
    %997 = vmatprep.subr.mxu0 0.0
    %998 = vmatpush2.msra.mxu0 0.0
    %999 = vmatprep.subr.mxu0 0.0
    %1000 = vmatpush2.msra.mxu0 0.0
    %1001 = vmatprep.subr.mxu0 0.0
    %1002 = vmatpush2.msra.mxu0 0.0
    %1003 = vmatprep.subr.mxu0 0.0
    %1004 = vmatpush2.msra.mxu0 0.0
    %1005 = vmatprep.subr.mxu0 0.0
    %1006 = vmatpush2.msra.mxu0 0.0
    %1007 = vmatprep.subr.mxu0 0.0
    %1008 = vmatpush2.msra.mxu0 0.0
    %1009 = vmatprep.subr.mxu0 0.0
    %1010 = vmatpush2.msra.mxu0 0.0
    %1011 = vmatprep.subr.mxu0 0.0
    %1012 = vmatpush2.msra.mxu0 0.0
    %1013 = vmatprep.subr.mxu0 0.0
    %1014 = vmatpush2.msra.mxu0 0.0
    %1015 = vmatprep.subr.mxu0 0.0
    %1016 = vmatpush2.msra.mxu0 0.0
    %1017 = vmatprep.mubr.f32.mxu0 0.0
    %1018 = vmatmul.mubr.f32.gmra.mxu0 %v920
    %v1019 = vpop.f32.mrf.mxu0
    %v1020 = vadd.f32 0.0, %v1019
    %v1021 = vpop.f32.mrf.mxu0
    %1022 = vmatprep.mubr.f32.mxu0 0.0
    %1023 = vmatmul.mubr.f32.gmra.mxu0 %v921
    %v1024 = vpop.f32.mrf.mxu0
    %v1025 = vadd.f32 0.0, %v1024
    %v1026 = vpop.f32.mrf.mxu0
    %1027 = vmatprep.mubr.f32.mxu0 0.0
    %1028 = vmatmul.mubr.f32.gmra.mxu0 %v922
    %v1029 = vpop.f32.mrf.mxu0
    %v1030 = vadd.f32 0.0, %v1029
    %v1031 = vpop.f32.mrf.mxu0
    %1032 = vmatprep.mubr.f32.mxu0 0.0
    %1033 = vmatmul.mubr.f32.gmra.mxu0 %v923
    %v1034 = vpop.f32.mrf.mxu0
    %v1035 = vadd.f32 0.0, %v1034
    %v1036 = vpop.f32.mrf.mxu0
    %1037 = vmatprep.mubr.f32.mxu0 0.0
    %1038 = vmatmul.mubr.f32.gmra.mxu0 %v924
    %v1039 = vpop.f32.mrf.mxu0
    %v1040 = vadd.f32 0.0, %v1039
    %v1041 = vpop.f32.mrf.mxu0
    %1042 = vmatprep.mubr.f32.mxu0 0.0
    %1043 = vmatmul.mubr.f32.gmra.mxu0 %v925
    %v1044 = vpop.f32.mrf.mxu0
    %v1045 = vadd.f32 0.0, %v1044
    %v1046 = vpop.f32.mrf.mxu0
    %1047 = vmatprep.mubr.f32.mxu0 0.0
    %1048 = vmatmul.mubr.f32.gmra.mxu0 %v926
    %v1049 = vpop.f32.mrf.mxu0
    %v1050 = vadd.f32 0.0, %v1049
    %v1051 = vpop.f32.mrf.mxu0
    %1052 = vmatprep.mubr.f32.mxu0 0.0
    %1053 = vmatmul.mubr.f32.gmra.mxu0 %v927
    %v1054 = vpop.f32.mrf.mxu0
    %v1055 = vadd.f32 0.0, %v1054
    %v1056 = vpop.f32.mrf.mxu0
    %1057 = vmatprep.mubr.f32.mxu0 0.0
    %1058 = vmatmul.mubr.f32.gmra.mxu0 %v928
    %v1059 = vpop.f32.mrf.mxu0
    %v1060 = vadd.f32 0.0, %v1059
    %v1061 = vpop.f32.mrf.mxu0
    %1062 = vmatprep.mubr.f32.mxu0 0.0
    %1063 = vmatmul.mubr.f32.gmra.mxu0 %v929
    %v1064 = vpop.f32.mrf.mxu0
    %v1065 = vadd.f32 0.0, %v1064
    %v1066 = vpop.f32.mrf.mxu0
    %1067 = vmatprep.mubr.f32.mxu0 0.0
    %1068 = vmatmul.mubr.f32.gmra.mxu0 %v930
    %v1069 = vpop.f32.mrf.mxu0
    %v1070 = vadd.f32 0.0, %v1069
    %v1071 = vpop.f32.mrf.mxu0
    %1072 = vmatprep.mubr.f32.mxu0 0.0
    %1073 = vmatmul.mubr.f32.gmra.mxu0 %v931
    %v1074 = vpop.f32.mrf.mxu0
    %v1075 = vadd.f32 0.0, %v1074
    %v1076 = vpop.f32.mrf.mxu0
    %1077 = vmatprep.mubr.f32.mxu0 0.0
    %1078 = vmatmul.mubr.f32.gmra.mxu0 %v932
    %v1079 = vpop.f32.mrf.mxu0
    %v1080 = vadd.f32 0.0, %v1079
    %v1081 = vpop.f32.mrf.mxu0
    %1082 = vmatprep.mubr.f32.mxu0 0.0
    %1083 = vmatmul.mubr.f32.gmra.mxu0 %v933
    %v1084 = vpop.f32.mrf.mxu0
    %v1085 = vadd.f32 0.0, %v1084
    %v1086 = vpop.f32.mrf.mxu0
    %1087 = vmatprep.mubr.f32.mxu0 0.0
    %1088 = vmatmul.mubr.f32.gmra.mxu0 %v934
    %v1089 = vpop.f32.mrf.mxu0
    %v1090 = vadd.f32 0.0, %v1089
    %v1091 = vpop.f32.mrf.mxu0
    %1092 = vmatprep.mubr.f32.mxu0 0.0
    %1093 = vmatmul.mubr.f32.gmra.mxu0 %v935
    %v1094 = vpop.f32.mrf.mxu0
    %v1095 = vadd.f32 0.0, %v1094
    %v1096 = vpop.f32.mrf.mxu0
    %1097 = vdwg.mxu0
    %v1098 = vadd.f32 %v807, %v1020
    %v1099 = vadd.f32 %v808, %v1025
    %v1100 = vadd.f32 %v809, %v1030
    %v1101 = vadd.f32 %v810, %v1035
    %v1102 = vadd.f32 %v811, %v1040
    %v1103 = vadd.f32 %v812, %v1045
    %v1104 = vadd.f32 %v813, %v1050
    %v1105 = vadd.f32 %v814, %v1055
    %v1106 = vadd.f32 %v815, %v1060
    %v1107 = vadd.f32 %v816, %v1065
    %v1108 = vadd.f32 %v817, %v1070
    %v1109 = vadd.f32 %v818, %v1075
    %v1110 = vadd.f32 %v819, %v1080
    %v1111 = vadd.f32 %v820, %v1085
    %v1112 = vadd.f32 %v821, %v1090
    %v1113 = vadd.f32 %v822, %v1095
    %1114 = vset.pattern.permute.xlu0 3
    %1115 = vperm.xlu0 %1114, %v147
    %v1116 = vpop.permute.xlu0 %1115
    %1118 = vset.pattern.permute.xlu0 3
    %1119 = vperm.xlu0 %1118, %v148
    %v1120 = vpop.permute.xlu0 %1119
    %1122 = vset.pattern.permute.xlu0 3
    %1123 = vperm.xlu0 %1122, %v149
    %v1124 = vpop.permute.xlu0 %1123
    %1126 = vset.pattern.permute.xlu0 3
    %1127 = vperm.xlu0 %1126, %v150
    %v1128 = vpop.permute.xlu0 %1127
    %1130 = vset.pattern.permute.xlu0 3
    %1131 = vperm.xlu0 %1130, %v151
    %v1132 = vpop.permute.xlu0 %1131
    %1134 = vset.pattern.permute.xlu0 3
    %1135 = vperm.xlu0 %1134, %v152
    %v1136 = vpop.permute.xlu0 %1135
    %1138 = vset.pattern.permute.xlu0 3
    %1139 = vperm.xlu0 %1138, %v153
    %v1140 = vpop.permute.xlu0 %1139
    %1142 = vset.pattern.permute.xlu0 3
    %1143 = vperm.xlu0 %1142, %v154
    %v1144 = vpop.permute.xlu0 %1143
    %1146 = vset.pattern.permute.xlu0 3
    %1147 = vperm.xlu0 %1146, %v155
    %v1148 = vpop.permute.xlu0 %1147
    %1150 = vset.pattern.permute.xlu0 3
    %1151 = vperm.xlu0 %1150, %v156
    %v1152 = vpop.permute.xlu0 %1151
    %1154 = vset.pattern.permute.xlu0 3
    %1155 = vperm.xlu0 %1154, %v157
    %v1156 = vpop.permute.xlu0 %1155
    %1158 = vset.pattern.permute.xlu0 3
    %1159 = vperm.xlu0 %1158, %v158
    %v1160 = vpop.permute.xlu0 %1159
    %1162 = vset.pattern.permute.xlu0 3
    %1163 = vperm.xlu0 %1162, %v159
    %v1164 = vpop.permute.xlu0 %1163
    %1166 = vset.pattern.permute.xlu0 3
    %1167 = vperm.xlu0 %1166, %v160
    %v1168 = vpop.permute.xlu0 %1167
    %1170 = vset.pattern.permute.xlu0 3
    %1171 = vperm.xlu0 %1170, %v161
    %v1172 = vpop.permute.xlu0 %1171
    %1174 = vset.pattern.permute.xlu0 3
    %1175 = vperm.xlu0 %1174, %v162
    %v1176 = vpop.permute.xlu0 %1175
    %v1178 = vmul.f32 %v146, %v1116
    %v1179 = vmul.f32 %v145, %v1120
    %v1180 = vmul.f32 %v144, %v1124
    %v1181 = vmul.f32 %v143, %v1128
    %v1182 = vmul.f32 %v142, %v1132
    %v1183 = vmul.f32 %v141, %v1136
    %v1184 = vmul.f32 %v140, %v1140
    %v1185 = vmul.f32 %v139, %v1144
    %v1186 = vmul.f32 %v138, %v1148
    %v1187 = vmul.f32 %v137, %v1152
    %v1188 = vmul.f32 %v136, %v1156
    %v1189 = vmul.f32 %v135, %v1160
    %v1190 = vmul.f32 %v134, %v1164
    %v1191 = vmul.f32 %v133, %v1168
    %v1192 = vmul.f32 %v132, %v1172
    %v1193 = vmul.f32 %v131, %v1176
    %s1194 = scalar_lea.vmem [#allocation4], 384
    %v1195 = vld [vmem:[%s1194] sm:$0xff]
    %v1196 = vld [vmem:[%s1194 + $0x8] sm:$0xff]
    %v1197 = vld [vmem:[%s1194 + $0x10] sm:$0xff]
    %v1198 = vld [vmem:[%s1194 + $0x18] sm:$0xff]
    %v1199 = vld [vmem:[%s1194 + $0x20] sm:$0xff]
    %v1200 = vld [vmem:[%s1194 + $0x28] sm:$0xff]
    %v1201 = vld [vmem:[%s1194 + $0x30] sm:$0xff]
    %v1202 = vld [vmem:[%s1194 + $0x38] sm:$0xff]
    %v1203 = vld [vmem:[%s1194 + $0x40] sm:$0xff]
    %v1204 = vld [vmem:[%s1194 + $0x48] sm:$0xff]
    %v1205 = vld [vmem:[%s1194 + $0x50] sm:$0xff]
    %v1206 = vld [vmem:[%s1194 + $0x58] sm:$0xff]
    %v1207 = vld [vmem:[%s1194 + $0x60] sm:$0xff]
    %v1208 = vld [vmem:[%s1194 + $0x68] sm:$0xff]
    %v1209 = vld [vmem:[%s1194 + $0x70] sm:$0xff]
    %v1210 = vld [vmem:[%s1194 + $0x78] sm:$0xff]
    %1211 = vmatprep.subr.mxu0 0.0
    %1212 = vmatpush1.msra.mxu0 %v1210
    %1213 = vmatprep.subr.mxu0 0.0
    %1214 = vmatpush1.msra.mxu0 %v1209
    %1215 = vmatprep.subr.mxu0 0.0
    %1216 = vmatpush1.msra.mxu0 %v1208
    %1217 = vmatprep.subr.mxu0 0.0
    %1218 = vmatpush1.msra.mxu0 %v1207
    %1219 = vmatprep.subr.mxu0 0.0
    %1220 = vmatpush1.msra.mxu0 %v1206
    %1221 = vmatprep.subr.mxu0 0.0
    %1222 = vmatpush1.msra.mxu0 %v1205
    %1223 = vmatprep.subr.mxu0 0.0
    %1224 = vmatpush1.msra.mxu0 %v1204
    %1225 = vmatprep.subr.mxu0 0.0
    %1226 = vmatpush1.msra.mxu0 %v1203
    %1227 = vmatprep.subr.mxu0 0.0
    %1228 = vmatpush1.msra.mxu0 %v1202
    %1229 = vmatprep.subr.mxu0 0.0
    %1230 = vmatpush1.msra.mxu0 %v1201
    %1231 = vmatprep.subr.mxu0 0.0
    %1232 = vmatpush1.msra.mxu0 %v1200
    %1233 = vmatprep.subr.mxu0 0.0
    %1234 = vmatpush1.msra.mxu0 %v1199
    %1235 = vmatprep.subr.mxu0 0.0
    %1236 = vmatpush1.msra.mxu0 %v1198
    %1237 = vmatprep.subr.mxu0 0.0
    %1238 = vmatpush1.msra.mxu0 %v1197
    %1239 = vmatprep.subr.mxu0 0.0
    %1240 = vmatpush1.msra.mxu0 %v1196
    %1241 = vmatprep.subr.mxu0 0.0
    %1242 = vmatpush1.msra.mxu0 %v1195
    %1243 = vmatprep.subr.mxu0 0.0
    %1244 = vmatpush2.msra.mxu0 0.0
    %1245 = vmatprep.subr.mxu0 0.0
    %1246 = vmatpush2.msra.mxu0 0.0
    %1247 = vmatprep.subr.mxu0 0.0
    %1248 = vmatpush2.msra.mxu0 0.0
    %1249 = vmatprep.subr.mxu0 0.0
    %1250 = vmatpush2.msra.mxu0 0.0
    %1251 = vmatprep.subr.mxu0 0.0
    %1252 = vmatpush2.msra.mxu0 0.0
    %1253 = vmatprep.subr.mxu0 0.0
    %1254 = vmatpush2.msra.mxu0 0.0
    %1255 = vmatprep.subr.mxu0 0.0
    %1256 = vmatpush2.msra.mxu0 0.0
    %1257 = vmatprep.subr.mxu0 0.0
    %1258 = vmatpush2.msra.mxu0 0.0
    %1259 = vmatprep.subr.mxu0 0.0
    %1260 = vmatpush2.msra.mxu0 0.0
    %1261 = vmatprep.subr.mxu0 0.0
    %1262 = vmatpush2.msra.mxu0 0.0
    %1263 = vmatprep.subr.mxu0 0.0
    %1264 = vmatpush2.msra.mxu0 0.0
    %1265 = vmatprep.subr.mxu0 0.0
    %1266 = vmatpush2.msra.mxu0 0.0
    %1267 = vmatprep.subr.mxu0 0.0
    %1268 = vmatpush2.msra.mxu0 0.0
    %1269 = vmatprep.subr.mxu0 0.0
    %1270 = vmatpush2.msra.mxu0 0.0
    %1271 = vmatprep.subr.mxu0 0.0
    %1272 = vmatpush2.msra.mxu0 0.0
    %1273 = vmatprep.subr.mxu0 0.0
    %1274 = vmatpush2.msra.mxu0 0.0
    %1275 = vmatprep.mubr.f32.mxu0 0.0
    %1276 = vmatmul.mubr.f32.gmra.mxu0 %v1178
    %v1277 = vpop.f32.mrf.mxu0
    %v1278 = vadd.f32 0.0, %v1277
    %v1279 = vpop.f32.mrf.mxu0
    %1280 = vmatprep.mubr.f32.mxu0 0.0
    %1281 = vmatmul.mubr.f32.gmra.mxu0 %v1179
    %v1282 = vpop.f32.mrf.mxu0
    %v1283 = vadd.f32 0.0, %v1282
    %v1284 = vpop.f32.mrf.mxu0
    %1285 = vmatprep.mubr.f32.mxu0 0.0
    %1286 = vmatmul.mubr.f32.gmra.mxu0 %v1180
    %v1287 = vpop.f32.mrf.mxu0
    %v1288 = vadd.f32 0.0, %v1287
    %v1289 = vpop.f32.mrf.mxu0
    %1290 = vmatprep.mubr.f32.mxu0 0.0
    %1291 = vmatmul.mubr.f32.gmra.mxu0 %v1181
    %v1292 = vpop.f32.mrf.mxu0
    %v1293 = vadd.f32 0.0, %v1292
    %v1294 = vpop.f32.mrf.mxu0
    %1295 = vmatprep.mubr.f32.mxu0 0.0
    %1296 = vmatmul.mubr.f32.gmra.mxu0 %v1182
    %v1297 = vpop.f32.mrf.mxu0
    %v1298 = vadd.f32 0.0, %v1297
    %v1299 = vpop.f32.mrf.mxu0
    %1300 = vmatprep.mubr.f32.mxu0 0.0
    %1301 = vmatmul.mubr.f32.gmra.mxu0 %v1183
    %v1302 = vpop.f32.mrf.mxu0
    %v1303 = vadd.f32 0.0, %v1302
    %v1304 = vpop.f32.mrf.mxu0
    %1305 = vmatprep.mubr.f32.mxu0 0.0
    %1306 = vmatmul.mubr.f32.gmra.mxu0 %v1184
    %v1307 = vpop.f32.mrf.mxu0
    %v1308 = vadd.f32 0.0, %v1307
    %v1309 = vpop.f32.mrf.mxu0
    %1310 = vmatprep.mubr.f32.mxu0 0.0
    %1311 = vmatmul.mubr.f32.gmra.mxu0 %v1185
    %v1312 = vpop.f32.mrf.mxu0
    %v1313 = vadd.f32 0.0, %v1312
    %v1314 = vpop.f32.mrf.mxu0
    %1315 = vmatprep.mubr.f32.mxu0 0.0
    %1316 = vmatmul.mubr.f32.gmra.mxu0 %v1186
    %v1317 = vpop.f32.mrf.mxu0
    %v1318 = vadd.f32 0.0, %v1317
    %v1319 = vpop.f32.mrf.mxu0
    %1320 = vmatprep.mubr.f32.mxu0 0.0
    %1321 = vmatmul.mubr.f32.gmra.mxu0 %v1187
    %v1322 = vpop.f32.mrf.mxu0
    %v1323 = vadd.f32 0.0, %v1322
    %v1324 = vpop.f32.mrf.mxu0
    %1325 = vmatprep.mubr.f32.mxu0 0.0
    %1326 = vmatmul.mubr.f32.gmra.mxu0 %v1188
    %v1327 = vpop.f32.mrf.mxu0
    %v1328 = vadd.f32 0.0, %v1327
    %v1329 = vpop.f32.mrf.mxu0
    %1330 = vmatprep.mubr.f32.mxu0 0.0
    %1331 = vmatmul.mubr.f32.gmra.mxu0 %v1189
    %v1332 = vpop.f32.mrf.mxu0
    %v1333 = vadd.f32 0.0, %v1332
    %v1334 = vpop.f32.mrf.mxu0
    %1335 = vmatprep.mubr.f32.mxu0 0.0
    %1336 = vmatmul.mubr.f32.gmra.mxu0 %v1190
    %v1337 = vpop.f32.mrf.mxu0
    %v1338 = vadd.f32 0.0, %v1337
    %v1339 = vpop.f32.mrf.mxu0
    %1340 = vmatprep.mubr.f32.mxu0 0.0
    %1341 = vmatmul.mubr.f32.gmra.mxu0 %v1191
    %v1342 = vpop.f32.mrf.mxu0
    %v1343 = vadd.f32 0.0, %v1342
    %v1344 = vpop.f32.mrf.mxu0
    %1345 = vmatprep.mubr.f32.mxu0 0.0
    %1346 = vmatmul.mubr.f32.gmra.mxu0 %v1192
    %v1347 = vpop.f32.mrf.mxu0
    %v1348 = vadd.f32 0.0, %v1347
    %v1349 = vpop.f32.mrf.mxu0
    %1350 = vmatprep.mubr.f32.mxu0 0.0
    %1351 = vmatmul.mubr.f32.gmra.mxu0 %v1193
    %v1352 = vpop.f32.mrf.mxu0
    %v1353 = vadd.f32 0.0, %v1352
    %v1354 = vpop.f32.mrf.mxu0
    %1355 = vdwg.mxu0
    %v1356 = vadd.f32 %v1098, %v1278
    %v1357 = vadd.f32 %v1099, %v1283
    %v1358 = vadd.f32 %v1100, %v1288
    %v1359 = vadd.f32 %v1101, %v1293
    %v1360 = vadd.f32 %v1102, %v1298
    %v1361 = vadd.f32 %v1103, %v1303
    %v1362 = vadd.f32 %v1104, %v1308
    %v1363 = vadd.f32 %v1105, %v1313
    %v1364 = vadd.f32 %v1106, %v1318
    %v1365 = vadd.f32 %v1107, %v1323
    %v1366 = vadd.f32 %v1108, %v1328
    %v1367 = vadd.f32 %v1109, %v1333
    %v1368 = vadd.f32 %v1110, %v1338
    %v1369 = vadd.f32 %v1111, %v1343
    %v1370 = vadd.f32 %v1112, %v1348
    %v1371 = vadd.f32 %v1113, %v1353
    %1372 = vset.pattern.permute.xlu0 4
    %1373 = vperm.xlu0 %1372, %v147
    %v1374 = vpop.permute.xlu0 %1373
    %1376 = vset.pattern.permute.xlu0 4
    %1377 = vperm.xlu0 %1376, %v148
    %v1378 = vpop.permute.xlu0 %1377
    %1380 = vset.pattern.permute.xlu0 4
    %1381 = vperm.xlu0 %1380, %v149
    %v1382 = vpop.permute.xlu0 %1381
    %1384 = vset.pattern.permute.xlu0 4
    %1385 = vperm.xlu0 %1384, %v150
    %v1386 = vpop.permute.xlu0 %1385
    %1388 = vset.pattern.permute.xlu0 4
    %1389 = vperm.xlu0 %1388, %v151
    %v1390 = vpop.permute.xlu0 %1389
    %1392 = vset.pattern.permute.xlu0 4
    %1393 = vperm.xlu0 %1392, %v152
    %v1394 = vpop.permute.xlu0 %1393
    %1396 = vset.pattern.permute.xlu0 4
    %1397 = vperm.xlu0 %1396, %v153
    %v1398 = vpop.permute.xlu0 %1397
    %1400 = vset.pattern.permute.xlu0 4
    %1401 = vperm.xlu0 %1400, %v154
    %v1402 = vpop.permute.xlu0 %1401
    %1404 = vset.pattern.permute.xlu0 4
    %1405 = vperm.xlu0 %1404, %v155
    %v1406 = vpop.permute.xlu0 %1405
    %1408 = vset.pattern.permute.xlu0 4
    %1409 = vperm.xlu0 %1408, %v156
    %v1410 = vpop.permute.xlu0 %1409
    %1412 = vset.pattern.permute.xlu0 4
    %1413 = vperm.xlu0 %1412, %v157
    %v1414 = vpop.permute.xlu0 %1413
    %1416 = vset.pattern.permute.xlu0 4
    %1417 = vperm.xlu0 %1416, %v158
    %v1418 = vpop.permute.xlu0 %1417
    %1420 = vset.pattern.permute.xlu0 4
    %1421 = vperm.xlu0 %1420, %v159
    %v1422 = vpop.permute.xlu0 %1421
    %1424 = vset.pattern.permute.xlu0 4
    %1425 = vperm.xlu0 %1424, %v160
    %v1426 = vpop.permute.xlu0 %1425
    %1428 = vset.pattern.permute.xlu0 4
    %1429 = vperm.xlu0 %1428, %v161
    %v1430 = vpop.permute.xlu0 %1429
    %1432 = vset.pattern.permute.xlu0 4
    %1433 = vperm.xlu0 %1432, %v162
    %v1434 = vpop.permute.xlu0 %1433
    %v1436 = vmul.f32 %v854, %v1374
    %v1437 = vmul.f32 %v853, %v1378
    %v1438 = vmul.f32 %v852, %v1382
    %v1439 = vmul.f32 %v851, %v1386
    %v1440 = vmul.f32 %v850, %v1390
    %v1441 = vmul.f32 %v849, %v1394
    %v1442 = vmul.f32 %v848, %v1398
    %v1443 = vmul.f32 %v847, %v1402
    %v1444 = vmul.f32 %v846, %v1406
    %v1445 = vmul.f32 %v845, %v1410
    %v1446 = vmul.f32 %v844, %v1414
    %v1447 = vmul.f32 %v843, %v1418
    %v1448 = vmul.f32 %v842, %v1422
    %v1449 = vmul.f32 %v841, %v1426
    %v1450 = vmul.f32 %v840, %v1430
    %v1451 = vmul.f32 %v855, %v1434
    %s1452 = scalar_lea.vmem [#allocation4], 640
    %v1453 = vld [vmem:[%s1452] sm:$0xff]
    %v1454 = vld [vmem:[%s1452 + $0x8] sm:$0xff]
    %v1455 = vld [vmem:[%s1452 + $0x10] sm:$0xff]
    %v1456 = vld [vmem:[%s1452 + $0x18] sm:$0xff]
    %v1457 = vld [vmem:[%s1452 + $0x20] sm:$0xff]
    %v1458 = vld [vmem:[%s1452 + $0x28] sm:$0xff]
    %v1459 = vld [vmem:[%s1452 + $0x30] sm:$0xff]
    %v1460 = vld [vmem:[%s1452 + $0x38] sm:$0xff]
    %v1461 = vld [vmem:[%s1452 + $0x40] sm:$0xff]
    %v1462 = vld [vmem:[%s1452 + $0x48] sm:$0xff]
    %v1463 = vld [vmem:[%s1452 + $0x50] sm:$0xff]
    %v1464 = vld [vmem:[%s1452 + $0x58] sm:$0xff]
    %v1465 = vld [vmem:[%s1452 + $0x60] sm:$0xff]
    %v1466 = vld [vmem:[%s1452 + $0x68] sm:$0xff]
    %v1467 = vld [vmem:[%s1452 + $0x70] sm:$0xff]
    %v1468 = vld [vmem:[%s1452 + $0x78] sm:$0xff]
    %1469 = vmatprep.subr.mxu0 0.0
    %1470 = vmatpush1.msra.mxu0 %v1468
    %1471 = vmatprep.subr.mxu0 0.0
    %1472 = vmatpush1.msra.mxu0 %v1467
    %1473 = vmatprep.subr.mxu0 0.0
    %1474 = vmatpush1.msra.mxu0 %v1466
    %1475 = vmatprep.subr.mxu0 0.0
    %1476 = vmatpush1.msra.mxu0 %v1465
    %1477 = vmatprep.subr.mxu0 0.0
    %1478 = vmatpush1.msra.mxu0 %v1464
    %1479 = vmatprep.subr.mxu0 0.0
    %1480 = vmatpush1.msra.mxu0 %v1463
    %1481 = vmatprep.subr.mxu0 0.0
    %1482 = vmatpush1.msra.mxu0 %v1462
    %1483 = vmatprep.subr.mxu0 0.0
    %1484 = vmatpush1.msra.mxu0 %v1461
    %1485 = vmatprep.subr.mxu0 0.0
    %1486 = vmatpush1.msra.mxu0 %v1460
    %1487 = vmatprep.subr.mxu0 0.0
    %1488 = vmatpush1.msra.mxu0 %v1459
    %1489 = vmatprep.subr.mxu0 0.0
    %1490 = vmatpush1.msra.mxu0 %v1458
    %1491 = vmatprep.subr.mxu0 0.0
    %1492 = vmatpush1.msra.mxu0 %v1457
    %1493 = vmatprep.subr.mxu0 0.0
    %1494 = vmatpush1.msra.mxu0 %v1456
    %1495 = vmatprep.subr.mxu0 0.0
    %1496 = vmatpush1.msra.mxu0 %v1455
    %1497 = vmatprep.subr.mxu0 0.0
    %1498 = vmatpush1.msra.mxu0 %v1454
    %1499 = vmatprep.subr.mxu0 0.0
    %1500 = vmatpush1.msra.mxu0 %v1453
    %1501 = vmatprep.subr.mxu0 0.0
    %1502 = vmatpush2.msra.mxu0 0.0
    %1503 = vmatprep.subr.mxu0 0.0
    %1504 = vmatpush2.msra.mxu0 0.0
    %1505 = vmatprep.subr.mxu0 0.0
    %1506 = vmatpush2.msra.mxu0 0.0
    %1507 = vmatprep.subr.mxu0 0.0
    %1508 = vmatpush2.msra.mxu0 0.0
    %1509 = vmatprep.subr.mxu0 0.0
    %1510 = vmatpush2.msra.mxu0 0.0
    %1511 = vmatprep.subr.mxu0 0.0
    %1512 = vmatpush2.msra.mxu0 0.0
    %1513 = vmatprep.subr.mxu0 0.0
    %1514 = vmatpush2.msra.mxu0 0.0
    %1515 = vmatprep.subr.mxu0 0.0
    %1516 = vmatpush2.msra.mxu0 0.0
    %1517 = vmatprep.subr.mxu0 0.0
    %1518 = vmatpush2.msra.mxu0 0.0
    %1519 = vmatprep.subr.mxu0 0.0
    %1520 = vmatpush2.msra.mxu0 0.0
    %1521 = vmatprep.subr.mxu0 0.0
    %1522 = vmatpush2.msra.mxu0 0.0
    %1523 = vmatprep.subr.mxu0 0.0
    %1524 = vmatpush2.msra.mxu0 0.0
    %1525 = vmatprep.subr.mxu0 0.0
    %1526 = vmatpush2.msra.mxu0 0.0
    %1527 = vmatprep.subr.mxu0 0.0
    %1528 = vmatpush2.msra.mxu0 0.0
    %1529 = vmatprep.subr.mxu0 0.0
    %1530 = vmatpush2.msra.mxu0 0.0
    %1531 = vmatprep.subr.mxu0 0.0
    %1532 = vmatpush2.msra.mxu0 0.0
    %1533 = vmatprep.mubr.f32.mxu0 0.0
    %1534 = vmatmul.mubr.f32.gmra.mxu0 %v1436
    %v1535 = vpop.f32.mrf.mxu0
    %v1536 = vadd.f32 0.0, %v1535
    %v1537 = vpop.f32.mrf.mxu0
    %1538 = vmatprep.mubr.f32.mxu0 0.0
    %1539 = vmatmul.mubr.f32.gmra.mxu0 %v1437
    %v1540 = vpop.f32.mrf.mxu0
    %v1541 = vadd.f32 0.0, %v1540
    %v1542 = vpop.f32.mrf.mxu0
    %1543 = vmatprep.mubr.f32.mxu0 0.0
    %1544 = vmatmul.mubr.f32.gmra.mxu0 %v1438
    %v1545 = vpop.f32.mrf.mxu0
    %v1546 = vadd.f32 0.0, %v1545
    %v1547 = vpop.f32.mrf.mxu0
    %1548 = vmatprep.mubr.f32.mxu0 0.0
    %1549 = vmatmul.mubr.f32.gmra.mxu0 %v1439
    %v1550 = vpop.f32.mrf.mxu0
    %v1551 = vadd.f32 0.0, %v1550
    %v1552 = vpop.f32.mrf.mxu0
    %1553 = vmatprep.mubr.f32.mxu0 0.0
    %1554 = vmatmul.mubr.f32.gmra.mxu0 %v1440
    %v1555 = vpop.f32.mrf.mxu0
    %v1556 = vadd.f32 0.0, %v1555
    %v1557 = vpop.f32.mrf.mxu0
    %1558 = vmatprep.mubr.f32.mxu0 0.0
    %1559 = vmatmul.mubr.f32.gmra.mxu0 %v1441
    %v1560 = vpop.f32.mrf.mxu0
    %v1561 = vadd.f32 0.0, %v1560
    %v1562 = vpop.f32.mrf.mxu0
    %1563 = vmatprep.mubr.f32.mxu0 0.0
    %1564 = vmatmul.mubr.f32.gmra.mxu0 %v1442
    %v1565 = vpop.f32.mrf.mxu0
    %v1566 = vadd.f32 0.0, %v1565
    %v1567 = vpop.f32.mrf.mxu0
    %1568 = vmatprep.mubr.f32.mxu0 0.0
    %1569 = vmatmul.mubr.f32.gmra.mxu0 %v1443
    %v1570 = vpop.f32.mrf.mxu0
    %v1571 = vadd.f32 0.0, %v1570
    %v1572 = vpop.f32.mrf.mxu0
    %1573 = vmatprep.mubr.f32.mxu0 0.0
    %1574 = vmatmul.mubr.f32.gmra.mxu0 %v1444
    %v1575 = vpop.f32.mrf.mxu0
    %v1576 = vadd.f32 0.0, %v1575
    %v1577 = vpop.f32.mrf.mxu0
    %1578 = vmatprep.mubr.f32.mxu0 0.0
    %1579 = vmatmul.mubr.f32.gmra.mxu0 %v1445
    %v1580 = vpop.f32.mrf.mxu0
    %v1581 = vadd.f32 0.0, %v1580
    %v1582 = vpop.f32.mrf.mxu0
    %1583 = vmatprep.mubr.f32.mxu0 0.0
    %1584 = vmatmul.mubr.f32.gmra.mxu0 %v1446
    %v1585 = vpop.f32.mrf.mxu0
    %v1586 = vadd.f32 0.0, %v1585
    %v1587 = vpop.f32.mrf.mxu0
    %1588 = vmatprep.mubr.f32.mxu0 0.0
    %1589 = vmatmul.mubr.f32.gmra.mxu0 %v1447
    %v1590 = vpop.f32.mrf.mxu0
    %v1591 = vadd.f32 0.0, %v1590
    %v1592 = vpop.f32.mrf.mxu0
    %1593 = vmatprep.mubr.f32.mxu0 0.0
    %1594 = vmatmul.mubr.f32.gmra.mxu0 %v1448
    %v1595 = vpop.f32.mrf.mxu0
    %v1596 = vadd.f32 0.0, %v1595
    %v1597 = vpop.f32.mrf.mxu0
    %1598 = vmatprep.mubr.f32.mxu0 0.0
    %1599 = vmatmul.mubr.f32.gmra.mxu0 %v1449
    %v1600 = vpop.f32.mrf.mxu0
    %v1601 = vadd.f32 0.0, %v1600
    %v1602 = vpop.f32.mrf.mxu0
    %1603 = vmatprep.mubr.f32.mxu0 0.0
    %1604 = vmatmul.mubr.f32.gmra.mxu0 %v1450
    %v1605 = vpop.f32.mrf.mxu0
    %v1606 = vadd.f32 0.0, %v1605
    %v1607 = vpop.f32.mrf.mxu0
    %1608 = vmatprep.mubr.f32.mxu0 0.0
    %1609 = vmatmul.mubr.f32.gmra.mxu0 %v1451
    %v1610 = vpop.f32.mrf.mxu0
    %v1611 = vadd.f32 0.0, %v1610
    %v1612 = vpop.f32.mrf.mxu0
    %1613 = vdwg.mxu0
    %v1614 = vadd.f32 %v1356, %v1536
    %v1615 = vadd.f32 %v1357, %v1541
    %v1616 = vadd.f32 %v1358, %v1546
    %v1617 = vadd.f32 %v1359, %v1551
    %v1618 = vadd.f32 %v1360, %v1556
    %v1619 = vadd.f32 %v1361, %v1561
    %v1620 = vadd.f32 %v1362, %v1566
    %v1621 = vadd.f32 %v1363, %v1571
    %v1622 = vadd.f32 %v1364, %v1576
    %v1623 = vadd.f32 %v1365, %v1581
    %v1624 = vadd.f32 %v1366, %v1586
    %v1625 = vadd.f32 %v1367, %v1591
    %v1626 = vadd.f32 %v1368, %v1596
    %v1627 = vadd.f32 %v1369, %v1601
    %v1628 = vadd.f32 %v1370, %v1606
    %v1629 = vadd.f32 %v1371, %v1611
    %1630 = vset.pattern.permute.xlu0 5
    %1631 = vperm.xlu0 %1630, %v147
    %v1632 = vpop.permute.xlu0 %1631
    %1634 = vset.pattern.permute.xlu0 5
    %1635 = vperm.xlu0 %1634, %v148
    %v1636 = vpop.permute.xlu0 %1635
    %1638 = vset.pattern.permute.xlu0 5
    %1639 = vperm.xlu0 %1638, %v149
    %v1640 = vpop.permute.xlu0 %1639
    %1642 = vset.pattern.permute.xlu0 5
    %1643 = vperm.xlu0 %1642, %v150
    %v1644 = vpop.permute.xlu0 %1643
    %1646 = vset.pattern.permute.xlu0 5
    %1647 = vperm.xlu0 %1646, %v151
    %v1648 = vpop.permute.xlu0 %1647
    %1650 = vset.pattern.permute.xlu0 5
    %1651 = vperm.xlu0 %1650, %v152
    %v1652 = vpop.permute.xlu0 %1651
    %1654 = vset.pattern.permute.xlu0 5
    %1655 = vperm.xlu0 %1654, %v153
    %v1656 = vpop.permute.xlu0 %1655
    %1658 = vset.pattern.permute.xlu0 5
    %1659 = vperm.xlu0 %1658, %v154
    %v1660 = vpop.permute.xlu0 %1659
    %1662 = vset.pattern.permute.xlu0 5
    %1663 = vperm.xlu0 %1662, %v155
    %v1664 = vpop.permute.xlu0 %1663
    %1666 = vset.pattern.permute.xlu0 5
    %1667 = vperm.xlu0 %1666, %v156
    %v1668 = vpop.permute.xlu0 %1667
    %1670 = vset.pattern.permute.xlu0 5
    %1671 = vperm.xlu0 %1670, %v157
    %v1672 = vpop.permute.xlu0 %1671
    %1674 = vset.pattern.permute.xlu0 5
    %1675 = vperm.xlu0 %1674, %v158
    %v1676 = vpop.permute.xlu0 %1675
    %1678 = vset.pattern.permute.xlu0 5
    %1679 = vperm.xlu0 %1678, %v159
    %v1680 = vpop.permute.xlu0 %1679
    %1682 = vset.pattern.permute.xlu0 5
    %1683 = vperm.xlu0 %1682, %v160
    %v1684 = vpop.permute.xlu0 %1683
    %1686 = vset.pattern.permute.xlu0 5
    %1687 = vperm.xlu0 %1686, %v161
    %v1688 = vpop.permute.xlu0 %1687
    %1690 = vset.pattern.permute.xlu0 5
    %1691 = vperm.xlu0 %1690, %v162
    %v1692 = vpop.permute.xlu0 %1691
    %v1694 = vmul.f32 %v145, %v1632
    %v1695 = vmul.f32 %v144, %v1636
    %v1696 = vmul.f32 %v143, %v1640
    %v1697 = vmul.f32 %v142, %v1644
    %v1698 = vmul.f32 %v141, %v1648
    %v1699 = vmul.f32 %v140, %v1652
    %v1700 = vmul.f32 %v139, %v1656
    %v1701 = vmul.f32 %v138, %v1660
    %v1702 = vmul.f32 %v137, %v1664
    %v1703 = vmul.f32 %v136, %v1668
    %v1704 = vmul.f32 %v135, %v1672
    %v1705 = vmul.f32 %v134, %v1676
    %v1706 = vmul.f32 %v133, %v1680
    %v1707 = vmul.f32 %v132, %v1684
    %v1708 = vmul.f32 %v131, %v1688
    %v1709 = vmul.f32 %v146, %v1692
    %s1710 = scalar_lea.vmem [#allocation4], 768
    %v1711 = vld [vmem:[%s1710] sm:$0xff]
    %v1712 = vld [vmem:[%s1710 + $0x8] sm:$0xff]
    %v1713 = vld [vmem:[%s1710 + $0x10] sm:$0xff]
    %v1714 = vld [vmem:[%s1710 + $0x18] sm:$0xff]
    %v1715 = vld [vmem:[%s1710 + $0x20] sm:$0xff]
    %v1716 = vld [vmem:[%s1710 + $0x28] sm:$0xff]
    %v1717 = vld [vmem:[%s1710 + $0x30] sm:$0xff]
    %v1718 = vld [vmem:[%s1710 + $0x38] sm:$0xff]
    %v1719 = vld [vmem:[%s1710 + $0x40] sm:$0xff]
    %v1720 = vld [vmem:[%s1710 + $0x48] sm:$0xff]
    %v1721 = vld [vmem:[%s1710 + $0x50] sm:$0xff]
    %v1722 = vld [vmem:[%s1710 + $0x58] sm:$0xff]
    %v1723 = vld [vmem:[%s1710 + $0x60] sm:$0xff]
    %v1724 = vld [vmem:[%s1710 + $0x68] sm:$0xff]
    %v1725 = vld [vmem:[%s1710 + $0x70] sm:$0xff]
    %v1726 = vld [vmem:[%s1710 + $0x78] sm:$0xff]
    %1727 = vmatprep.subr.mxu0 0.0
    %1728 = vmatpush1.msra.mxu0 %v1726
    %1729 = vmatprep.subr.mxu0 0.0
    %1730 = vmatpush1.msra.mxu0 %v1725
    %1731 = vmatprep.subr.mxu0 0.0
    %1732 = vmatpush1.msra.mxu0 %v1724
    %1733 = vmatprep.subr.mxu0 0.0
    %1734 = vmatpush1.msra.mxu0 %v1723
    %1735 = vmatprep.subr.mxu0 0.0
    %1736 = vmatpush1.msra.mxu0 %v1722
    %1737 = vmatprep.subr.mxu0 0.0
    %1738 = vmatpush1.msra.mxu0 %v1721
    %1739 = vmatprep.subr.mxu0 0.0
    %1740 = vmatpush1.msra.mxu0 %v1720
    %1741 = vmatprep.subr.mxu0 0.0
    %1742 = vmatpush1.msra.mxu0 %v1719
    %1743 = vmatprep.subr.mxu0 0.0
    %1744 = vmatpush1.msra.mxu0 %v1718
    %1745 = vmatprep.subr.mxu0 0.0
    %1746 = vmatpush1.msra.mxu0 %v1717
    %1747 = vmatprep.subr.mxu0 0.0
    %1748 = vmatpush1.msra.mxu0 %v1716
    %1749 = vmatprep.subr.mxu0 0.0
    %1750 = vmatpush1.msra.mxu0 %v1715
    %1751 = vmatprep.subr.mxu0 0.0
    %1752 = vmatpush1.msra.mxu0 %v1714
    %1753 = vmatprep.subr.mxu0 0.0
    %1754 = vmatpush1.msra.mxu0 %v1713
    %1755 = vmatprep.subr.mxu0 0.0
    %1756 = vmatpush1.msra.mxu0 %v1712
    %1757 = vmatprep.subr.mxu0 0.0
    %1758 = vmatpush1.msra.mxu0 %v1711
    %1759 = vmatprep.subr.mxu0 0.0
    %1760 = vmatpush2.msra.mxu0 0.0
    %1761 = vmatprep.subr.mxu0 0.0
    %1762 = vmatpush2.msra.mxu0 0.0
    %1763 = vmatprep.subr.mxu0 0.0
    %1764 = vmatpush2.msra.mxu0 0.0
    %1765 = vmatprep.subr.mxu0 0.0
    %1766 = vmatpush2.msra.mxu0 0.0
    %1767 = vmatprep.subr.mxu0 0.0
    %1768 = vmatpush2.msra.mxu0 0.0
    %1769 = vmatprep.subr.mxu0 0.0
    %1770 = vmatpush2.msra.mxu0 0.0
    %1771 = vmatprep.subr.mxu0 0.0
    %1772 = vmatpush2.msra.mxu0 0.0
    %1773 = vmatprep.subr.mxu0 0.0
    %1774 = vmatpush2.msra.mxu0 0.0
    %1775 = vmatprep.subr.mxu0 0.0
    %1776 = vmatpush2.msra.mxu0 0.0
    %1777 = vmatprep.subr.mxu0 0.0
    %1778 = vmatpush2.msra.mxu0 0.0
    %1779 = vmatprep.subr.mxu0 0.0
    %1780 = vmatpush2.msra.mxu0 0.0
    %1781 = vmatprep.subr.mxu0 0.0
    %1782 = vmatpush2.msra.mxu0 0.0
    %1783 = vmatprep.subr.mxu0 0.0
    %1784 = vmatpush2.msra.mxu0 0.0
    %1785 = vmatprep.subr.mxu0 0.0
    %1786 = vmatpush2.msra.mxu0 0.0
    %1787 = vmatprep.subr.mxu0 0.0
    %1788 = vmatpush2.msra.mxu0 0.0
    %1789 = vmatprep.subr.mxu0 0.0
    %1790 = vmatpush2.msra.mxu0 0.0
    %1791 = vmatprep.mubr.f32.mxu0 0.0
    %1792 = vmatmul.mubr.f32.gmra.mxu0 %v1694
    %v1793 = vpop.f32.mrf.mxu0
    %v1794 = vadd.f32 0.0, %v1793
    %v1795 = vpop.f32.mrf.mxu0
    %1796 = vmatprep.mubr.f32.mxu0 0.0
    %1797 = vmatmul.mubr.f32.gmra.mxu0 %v1695
    %v1798 = vpop.f32.mrf.mxu0
    %v1799 = vadd.f32 0.0, %v1798
    %v1800 = vpop.f32.mrf.mxu0
    %1801 = vmatprep.mubr.f32.mxu0 0.0
    %1802 = vmatmul.mubr.f32.gmra.mxu0 %v1696
    %v1803 = vpop.f32.mrf.mxu0
    %v1804 = vadd.f32 0.0, %v1803
    %v1805 = vpop.f32.mrf.mxu0
    %1806 = vmatprep.mubr.f32.mxu0 0.0
    %1807 = vmatmul.mubr.f32.gmra.mxu0 %v1697
    %v1808 = vpop.f32.mrf.mxu0
    %v1809 = vadd.f32 0.0, %v1808
    %v1810 = vpop.f32.mrf.mxu0
    %1811 = vmatprep.mubr.f32.mxu0 0.0
    %1812 = vmatmul.mubr.f32.gmra.mxu0 %v1698
    %v1813 = vpop.f32.mrf.mxu0
    %v1814 = vadd.f32 0.0, %v1813
    %v1815 = vpop.f32.mrf.mxu0
    %1816 = vmatprep.mubr.f32.mxu0 0.0
    %1817 = vmatmul.mubr.f32.gmra.mxu0 %v1699
    %v1818 = vpop.f32.mrf.mxu0
    %v1819 = vadd.f32 0.0, %v1818
    %v1820 = vpop.f32.mrf.mxu0
    %1821 = vmatprep.mubr.f32.mxu0 0.0
    %1822 = vmatmul.mubr.f32.gmra.mxu0 %v1700
    %v1823 = vpop.f32.mrf.mxu0
    %v1824 = vadd.f32 0.0, %v1823
    %v1825 = vpop.f32.mrf.mxu0
    %1826 = vmatprep.mubr.f32.mxu0 0.0
    %1827 = vmatmul.mubr.f32.gmra.mxu0 %v1701
    %v1828 = vpop.f32.mrf.mxu0
    %v1829 = vadd.f32 0.0, %v1828
    %v1830 = vpop.f32.mrf.mxu0
    %1831 = vmatprep.mubr.f32.mxu0 0.0
    %1832 = vmatmul.mubr.f32.gmra.mxu0 %v1702
    %v1833 = vpop.f32.mrf.mxu0
    %v1834 = vadd.f32 0.0, %v1833
    %v1835 = vpop.f32.mrf.mxu0
    %1836 = vmatprep.mubr.f32.mxu0 0.0
    %1837 = vmatmul.mubr.f32.gmra.mxu0 %v1703
    %v1838 = vpop.f32.mrf.mxu0
    %v1839 = vadd.f32 0.0, %v1838
    %v1840 = vpop.f32.mrf.mxu0
    %1841 = vmatprep.mubr.f32.mxu0 0.0
    %1842 = vmatmul.mubr.f32.gmra.mxu0 %v1704
    %v1843 = vpop.f32.mrf.mxu0
    %v1844 = vadd.f32 0.0, %v1843
    %v1845 = vpop.f32.mrf.mxu0
    %1846 = vmatprep.mubr.f32.mxu0 0.0
    %1847 = vmatmul.mubr.f32.gmra.mxu0 %v1705
    %v1848 = vpop.f32.mrf.mxu0
    %v1849 = vadd.f32 0.0, %v1848
    %v1850 = vpop.f32.mrf.mxu0
    %1851 = vmatprep.mubr.f32.mxu0 0.0
    %1852 = vmatmul.mubr.f32.gmra.mxu0 %v1706
    %v1853 = vpop.f32.mrf.mxu0
    %v1854 = vadd.f32 0.0, %v1853
    %v1855 = vpop.f32.mrf.mxu0
    %1856 = vmatprep.mubr.f32.mxu0 0.0
    %1857 = vmatmul.mubr.f32.gmra.mxu0 %v1707
    %v1858 = vpop.f32.mrf.mxu0
    %v1859 = vadd.f32 0.0, %v1858
    %v1860 = vpop.f32.mrf.mxu0
    %1861 = vmatprep.mubr.f32.mxu0 0.0
    %1862 = vmatmul.mubr.f32.gmra.mxu0 %v1708
    %v1863 = vpop.f32.mrf.mxu0
    %v1864 = vadd.f32 0.0, %v1863
    %v1865 = vpop.f32.mrf.mxu0
    %1866 = vmatprep.mubr.f32.mxu0 0.0
    %1867 = vmatmul.mubr.f32.gmra.mxu0 %v1709
    %v1868 = vpop.f32.mrf.mxu0
    %v1869 = vadd.f32 0.0, %v1868
    %v1870 = vpop.f32.mrf.mxu0
    %1871 = vdwg.mxu0
    %v1872 = vadd.f32 %v1614, %v1794
    %v1873 = vadd.f32 %v1615, %v1799
    %v1874 = vadd.f32 %v1616, %v1804
    %v1875 = vadd.f32 %v1617, %v1809
    %v1876 = vadd.f32 %v1618, %v1814
    %v1877 = vadd.f32 %v1619, %v1819
    %v1878 = vadd.f32 %v1620, %v1824
    %v1879 = vadd.f32 %v1621, %v1829
    %v1880 = vadd.f32 %v1622, %v1834
    %v1881 = vadd.f32 %v1623, %v1839
    %v1882 = vadd.f32 %v1624, %v1844
    %v1883 = vadd.f32 %v1625, %v1849
    %v1884 = vadd.f32 %v1626, %v1854
    %v1885 = vadd.f32 %v1627, %v1859
    %v1886 = vadd.f32 %v1628, %v1864
    %v1887 = vadd.f32 %v1629, %v1869
    %1888 = vset.pattern.permute.xlu0 6
    %1889 = vperm.xlu0 %1888, %v147
    %v1890 = vpop.permute.xlu0 %1889
    %1892 = vset.pattern.permute.xlu0 6
    %1893 = vperm.xlu0 %1892, %v148
    %v1894 = vpop.permute.xlu0 %1893
    %1896 = vset.pattern.permute.xlu0 6
    %1897 = vperm.xlu0 %1896, %v149
    %v1898 = vpop.permute.xlu0 %1897
    %1900 = vset.pattern.permute.xlu0 6
    %1901 = vperm.xlu0 %1900, %v150
    %v1902 = vpop.permute.xlu0 %1901
    %1904 = vset.pattern.permute.xlu0 6
    %1905 = vperm.xlu0 %1904, %v151
    %v1906 = vpop.permute.xlu0 %1905
    %1908 = vset.pattern.permute.xlu0 6
    %1909 = vperm.xlu0 %1908, %v152
    %v1910 = vpop.permute.xlu0 %1909
    %1912 = vset.pattern.permute.xlu0 6
    %1913 = vperm.xlu0 %1912, %v153
    %v1914 = vpop.permute.xlu0 %1913
    %1916 = vset.pattern.permute.xlu0 6
    %1917 = vperm.xlu0 %1916, %v154
    %v1918 = vpop.permute.xlu0 %1917
    %1920 = vset.pattern.permute.xlu0 6
    %1921 = vperm.xlu0 %1920, %v155
    %v1922 = vpop.permute.xlu0 %1921
    %1924 = vset.pattern.permute.xlu0 6
    %1925 = vperm.xlu0 %1924, %v156
    %v1926 = vpop.permute.xlu0 %1925
    %1928 = vset.pattern.permute.xlu0 6
    %1929 = vperm.xlu0 %1928, %v157
    %v1930 = vpop.permute.xlu0 %1929
    %1932 = vset.pattern.permute.xlu0 6
    %1933 = vperm.xlu0 %1932, %v158
    %v1934 = vpop.permute.xlu0 %1933
    %1936 = vset.pattern.permute.xlu0 6
    %1937 = vperm.xlu0 %1936, %v159
    %v1938 = vpop.permute.xlu0 %1937
    %1940 = vset.pattern.permute.xlu0 6
    %1941 = vperm.xlu0 %1940, %v160
    %v1942 = vpop.permute.xlu0 %1941
    %1944 = vset.pattern.permute.xlu0 6
    %1945 = vperm.xlu0 %1944, %v161
    %v1946 = vpop.permute.xlu0 %1945
    %1948 = vset.pattern.permute.xlu0 6
    %1949 = vperm.xlu0 %1948, %v162
    %v1950 = vpop.permute.xlu0 %1949
    %v1952 = vmul.f32 %v79, %v1890
    %v1953 = vmul.f32 %v80, %v1894
    %v1954 = vmul.f32 %v81, %v1898
    %v1955 = vmul.f32 %v82, %v1902
    %v1956 = vmul.f32 %v83, %v1906
    %v1957 = vmul.f32 %v84, %v1910
    %v1958 = vmul.f32 %v85, %v1914
    %v1959 = vmul.f32 %v86, %v1918
    %v1960 = vmul.f32 %v87, %v1922
    %v1961 = vmul.f32 %v88, %v1926
    %v1962 = vmul.f32 %v89, %v1930
    %v1963 = vmul.f32 %v90, %v1934
    %v1964 = vmul.f32 %v91, %v1938
    %v1965 = vmul.f32 %v92, %v1942
    %v1966 = vmul.f32 %v93, %v1946
    %v1967 = vmul.f32 %v78, %v1950
    %s1968 = scalar_lea.vmem [#allocation4], 896
    %v1969 = vld [vmem:[%s1968] sm:$0xff]
    %v1970 = vld [vmem:[%s1968 + $0x8] sm:$0xff]
    %v1971 = vld [vmem:[%s1968 + $0x10] sm:$0xff]
    %v1972 = vld [vmem:[%s1968 + $0x18] sm:$0xff]
    %v1973 = vld [vmem:[%s1968 + $0x20] sm:$0xff]
    %v1974 = vld [vmem:[%s1968 + $0x28] sm:$0xff]
    %v1975 = vld [vmem:[%s1968 + $0x30] sm:$0xff]
    %v1976 = vld [vmem:[%s1968 + $0x38] sm:$0xff]
    %v1977 = vld [vmem:[%s1968 + $0x40] sm:$0xff]
    %v1978 = vld [vmem:[%s1968 + $0x48] sm:$0xff]
    %v1979 = vld [vmem:[%s1968 + $0x50] sm:$0xff]
    %v1980 = vld [vmem:[%s1968 + $0x58] sm:$0xff]
    %v1981 = vld [vmem:[%s1968 + $0x60] sm:$0xff]
    %v1982 = vld [vmem:[%s1968 + $0x68] sm:$0xff]
    %v1983 = vld [vmem:[%s1968 + $0x70] sm:$0xff]
    %v1984 = vld [vmem:[%s1968 + $0x78] sm:$0xff]
    %1985 = vmatprep.subr.mxu0 0.0
    %1986 = vmatpush1.msra.mxu0 %v1984
    %1987 = vmatprep.subr.mxu0 0.0
    %1988 = vmatpush1.msra.mxu0 %v1983
    %1989 = vmatprep.subr.mxu0 0.0
    %1990 = vmatpush1.msra.mxu0 %v1982
    %1991 = vmatprep.subr.mxu0 0.0
    %1992 = vmatpush1.msra.mxu0 %v1981
    %1993 = vmatprep.subr.mxu0 0.0
    %1994 = vmatpush1.msra.mxu0 %v1980
    %1995 = vmatprep.subr.mxu0 0.0
    %1996 = vmatpush1.msra.mxu0 %v1979
    %1997 = vmatprep.subr.mxu0 0.0
    %1998 = vmatpush1.msra.mxu0 %v1978
    %1999 = vmatprep.subr.mxu0 0.0
    %2000 = vmatpush1.msra.mxu0 %v1977
    %2001 = vmatprep.subr.mxu0 0.0
    %2002 = vmatpush1.msra.mxu0 %v1976
    %2003 = vmatprep.subr.mxu0 0.0
    %2004 = vmatpush1.msra.mxu0 %v1975
    %2005 = vmatprep.subr.mxu0 0.0
    %2006 = vmatpush1.msra.mxu0 %v1974
    %2007 = vmatprep.subr.mxu0 0.0
    %2008 = vmatpush1.msra.mxu0 %v1973
    %2009 = vmatprep.subr.mxu0 0.0
    %2010 = vmatpush1.msra.mxu0 %v1972
    %2011 = vmatprep.subr.mxu0 0.0
    %2012 = vmatpush1.msra.mxu0 %v1971
    %2013 = vmatprep.subr.mxu0 0.0
    %2014 = vmatpush1.msra.mxu0 %v1970
    %2015 = vmatprep.subr.mxu0 0.0
    %2016 = vmatpush1.msra.mxu0 %v1969
    %2017 = vmatprep.subr.mxu0 0.0
    %2018 = vmatpush2.msra.mxu0 0.0
    %2019 = vmatprep.subr.mxu0 0.0
    %2020 = vmatpush2.msra.mxu0 0.0
    %2021 = vmatprep.subr.mxu0 0.0
    %2022 = vmatpush2.msra.mxu0 0.0
    %2023 = vmatprep.subr.mxu0 0.0
    %2024 = vmatpush2.msra.mxu0 0.0
    %2025 = vmatprep.subr.mxu0 0.0
    %2026 = vmatpush2.msra.mxu0 0.0
    %2027 = vmatprep.subr.mxu0 0.0
    %2028 = vmatpush2.msra.mxu0 0.0
    %2029 = vmatprep.subr.mxu0 0.0
    %2030 = vmatpush2.msra.mxu0 0.0
    %2031 = vmatprep.subr.mxu0 0.0
    %2032 = vmatpush2.msra.mxu0 0.0
    %2033 = vmatprep.subr.mxu0 0.0
    %2034 = vmatpush2.msra.mxu0 0.0
    %2035 = vmatprep.subr.mxu0 0.0
    %2036 = vmatpush2.msra.mxu0 0.0
    %2037 = vmatprep.subr.mxu0 0.0
    %2038 = vmatpush2.msra.mxu0 0.0
    %2039 = vmatprep.subr.mxu0 0.0
    %2040 = vmatpush2.msra.mxu0 0.0
    %2041 = vmatprep.subr.mxu0 0.0
    %2042 = vmatpush2.msra.mxu0 0.0
    %2043 = vmatprep.subr.mxu0 0.0
    %2044 = vmatpush2.msra.mxu0 0.0
    %2045 = vmatprep.subr.mxu0 0.0
    %2046 = vmatpush2.msra.mxu0 0.0
    %2047 = vmatprep.subr.mxu0 0.0
    %2048 = vmatpush2.msra.mxu0 0.0
    %2049 = vmatprep.mubr.f32.mxu0 0.0
    %2050 = vmatmul.mubr.f32.gmra.mxu0 %v1952
    %v2051 = vpop.f32.mrf.mxu0
    %v2052 = vadd.f32 0.0, %v2051
    %v2053 = vpop.f32.mrf.mxu0
    %2054 = vmatprep.mubr.f32.mxu0 0.0
    %2055 = vmatmul.mubr.f32.gmra.mxu0 %v1953
    %v2056 = vpop.f32.mrf.mxu0
    %v2057 = vadd.f32 0.0, %v2056
    %v2058 = vpop.f32.mrf.mxu0
    %2059 = vmatprep.mubr.f32.mxu0 0.0
    %2060 = vmatmul.mubr.f32.gmra.mxu0 %v1954
    %v2061 = vpop.f32.mrf.mxu0
    %v2062 = vadd.f32 0.0, %v2061
    %v2063 = vpop.f32.mrf.mxu0
    %2064 = vmatprep.mubr.f32.mxu0 0.0
    %2065 = vmatmul.mubr.f32.gmra.mxu0 %v1955
    %v2066 = vpop.f32.mrf.mxu0
    %v2067 = vadd.f32 0.0, %v2066
    %v2068 = vpop.f32.mrf.mxu0
    %2069 = vmatprep.mubr.f32.mxu0 0.0
    %2070 = vmatmul.mubr.f32.gmra.mxu0 %v1956
    %v2071 = vpop.f32.mrf.mxu0
    %v2072 = vadd.f32 0.0, %v2071
    %v2073 = vpop.f32.mrf.mxu0
    %2074 = vmatprep.mubr.f32.mxu0 0.0
    %2075 = vmatmul.mubr.f32.gmra.mxu0 %v1957
    %v2076 = vpop.f32.mrf.mxu0
    %v2077 = vadd.f32 0.0, %v2076
    %v2078 = vpop.f32.mrf.mxu0
    %2079 = vmatprep.mubr.f32.mxu0 0.0
    %2080 = vmatmul.mubr.f32.gmra.mxu0 %v1958
    %v2081 = vpop.f32.mrf.mxu0
    %v2082 = vadd.f32 0.0, %v2081
    %v2083 = vpop.f32.mrf.mxu0
    %2084 = vmatprep.mubr.f32.mxu0 0.0
    %2085 = vmatmul.mubr.f32.gmra.mxu0 %v1959
    %v2086 = vpop.f32.mrf.mxu0
    %v2087 = vadd.f32 0.0, %v2086
    %v2088 = vpop.f32.mrf.mxu0
    %2089 = vmatprep.mubr.f32.mxu0 0.0
    %2090 = vmatmul.mubr.f32.gmra.mxu0 %v1960
    %v2091 = vpop.f32.mrf.mxu0
    %v2092 = vadd.f32 0.0, %v2091
    %v2093 = vpop.f32.mrf.mxu0
    %2094 = vmatprep.mubr.f32.mxu0 0.0
    %2095 = vmatmul.mubr.f32.gmra.mxu0 %v1961
    %v2096 = vpop.f32.mrf.mxu0
    %v2097 = vadd.f32 0.0, %v2096
    %v2098 = vpop.f32.mrf.mxu0
    %2099 = vmatprep.mubr.f32.mxu0 0.0
    %2100 = vmatmul.mubr.f32.gmra.mxu0 %v1962
    %v2101 = vpop.f32.mrf.mxu0
    %v2102 = vadd.f32 0.0, %v2101
    %v2103 = vpop.f32.mrf.mxu0
    %2104 = vmatprep.mubr.f32.mxu0 0.0
    %2105 = vmatmul.mubr.f32.gmra.mxu0 %v1963
    %v2106 = vpop.f32.mrf.mxu0
    %v2107 = vadd.f32 0.0, %v2106
    %v2108 = vpop.f32.mrf.mxu0
    %2109 = vmatprep.mubr.f32.mxu0 0.0
    %2110 = vmatmul.mubr.f32.gmra.mxu0 %v1964
    %v2111 = vpop.f32.mrf.mxu0
    %v2112 = vadd.f32 0.0, %v2111
    %v2113 = vpop.f32.mrf.mxu0
    %2114 = vmatprep.mubr.f32.mxu0 0.0
    %2115 = vmatmul.mubr.f32.gmra.mxu0 %v1965
    %v2116 = vpop.f32.mrf.mxu0
    %v2117 = vadd.f32 0.0, %v2116
    %v2118 = vpop.f32.mrf.mxu0
    %2119 = vmatprep.mubr.f32.mxu0 0.0
    %2120 = vmatmul.mubr.f32.gmra.mxu0 %v1966
    %v2121 = vpop.f32.mrf.mxu0
    %v2122 = vadd.f32 0.0, %v2121
    %v2123 = vpop.f32.mrf.mxu0
    %2124 = vmatprep.mubr.f32.mxu0 0.0
    %2125 = vmatmul.mubr.f32.gmra.mxu0 %v1967
    %v2126 = vpop.f32.mrf.mxu0
    %v2127 = vadd.f32 0.0, %v2126
    %v2128 = vpop.f32.mrf.mxu0
    %2129 = vdwg.mxu0
    %v2130 = vadd.f32 %v1872, %v2052
    %v2131 = vadd.f32 %v1873, %v2057
    %v2132 = vadd.f32 %v1874, %v2062
    %v2133 = vadd.f32 %v1875, %v2067
    %v2134 = vadd.f32 %v1876, %v2072
    %v2135 = vadd.f32 %v1877, %v2077
    %v2136 = vadd.f32 %v1878, %v2082
    %v2137 = vadd.f32 %v1879, %v2087
    %v2138 = vadd.f32 %v1880, %v2092
    %v2139 = vadd.f32 %v1881, %v2097
    %v2140 = vadd.f32 %v1882, %v2102
    %v2141 = vadd.f32 %v1883, %v2107
    %v2142 = vadd.f32 %v1884, %v2112
    %v2143 = vadd.f32 %v1885, %v2117
    %v2144 = vadd.f32 %v1886, %v2122
    %v2145 = vadd.f32 %v1887, %v2127
    %2146 = vset.pattern.permute.xlu0 7
    %2147 = vperm.xlu0 %2146, %v147
    %v2148 = vpop.permute.xlu0 %2147
    %2150 = vset.pattern.permute.xlu0 7
    %2151 = vperm.xlu0 %2150, %v148
    %v2152 = vpop.permute.xlu0 %2151
    %2154 = vset.pattern.permute.xlu0 7
    %2155 = vperm.xlu0 %2154, %v149
    %v2156 = vpop.permute.xlu0 %2155
    %2158 = vset.pattern.permute.xlu0 7
    %2159 = vperm.xlu0 %2158, %v150
    %v2160 = vpop.permute.xlu0 %2159
    %2162 = vset.pattern.permute.xlu0 7
    %2163 = vperm.xlu0 %2162, %v151
    %v2164 = vpop.permute.xlu0 %2163
    %2166 = vset.pattern.permute.xlu0 7
    %2167 = vperm.xlu0 %2166, %v152
    %v2168 = vpop.permute.xlu0 %2167
    %2170 = vset.pattern.permute.xlu0 7
    %2171 = vperm.xlu0 %2170, %v153
    %v2172 = vpop.permute.xlu0 %2171
    %2174 = vset.pattern.permute.xlu0 7
    %2175 = vperm.xlu0 %2174, %v154
    %v2176 = vpop.permute.xlu0 %2175
    %2178 = vset.pattern.permute.xlu0 7
    %2179 = vperm.xlu0 %2178, %v155
    %v2180 = vpop.permute.xlu0 %2179
    %2182 = vset.pattern.permute.xlu0 7
    %2183 = vperm.xlu0 %2182, %v156
    %v2184 = vpop.permute.xlu0 %2183
    %2186 = vset.pattern.permute.xlu0 7
    %2187 = vperm.xlu0 %2186, %v157
    %v2188 = vpop.permute.xlu0 %2187
    %2190 = vset.pattern.permute.xlu0 7
    %2191 = vperm.xlu0 %2190, %v158
    %v2192 = vpop.permute.xlu0 %2191
    %2194 = vset.pattern.permute.xlu0 7
    %2195 = vperm.xlu0 %2194, %v159
    %v2196 = vpop.permute.xlu0 %2195
    %2198 = vset.pattern.permute.xlu0 7
    %2199 = vperm.xlu0 %2198, %v160
    %v2200 = vpop.permute.xlu0 %2199
    %2202 = vset.pattern.permute.xlu0 7
    %2203 = vperm.xlu0 %2202, %v161
    %v2204 = vpop.permute.xlu0 %2203
    %2206 = vset.pattern.permute.xlu0 7
    %2207 = vperm.xlu0 %2206, %v162
    %v2208 = vpop.permute.xlu0 %2207
    %v2210 = vmul.f32 %v853, %v2148
    %v2211 = vmul.f32 %v852, %v2152
    %v2212 = vmul.f32 %v851, %v2156
    %v2213 = vmul.f32 %v850, %v2160
    %v2214 = vmul.f32 %v849, %v2164
    %v2215 = vmul.f32 %v848, %v2168
    %v2216 = vmul.f32 %v847, %v2172
    %v2217 = vmul.f32 %v846, %v2176
    %v2218 = vmul.f32 %v845, %v2180
    %v2219 = vmul.f32 %v844, %v2184
    %v2220 = vmul.f32 %v843, %v2188
    %v2221 = vmul.f32 %v842, %v2192
    %v2222 = vmul.f32 %v841, %v2196
    %v2223 = vmul.f32 %v840, %v2200
    %v2224 = vmul.f32 %v855, %v2204
    %v2225 = vmul.f32 %v854, %v2208
    %s2226 = scalar_lea.vmem [#allocation4], 1024
    %v2227 = vld [vmem:[%s2226] sm:$0xff]
    %v2228 = vld [vmem:[%s2226 + $0x8] sm:$0xff]
    %v2229 = vld [vmem:[%s2226 + $0x10] sm:$0xff]
    %v2230 = vld [vmem:[%s2226 + $0x18] sm:$0xff]
    %v2231 = vld [vmem:[%s2226 + $0x20] sm:$0xff]
    %v2232 = vld [vmem:[%s2226 + $0x28] sm:$0xff]
    %v2233 = vld [vmem:[%s2226 + $0x30] sm:$0xff]
    %v2234 = vld [vmem:[%s2226 + $0x38] sm:$0xff]
    %v2235 = vld [vmem:[%s2226 + $0x40] sm:$0xff]
    %v2236 = vld [vmem:[%s2226 + $0x48] sm:$0xff]
    %v2237 = vld [vmem:[%s2226 + $0x50] sm:$0xff]
    %v2238 = vld [vmem:[%s2226 + $0x58] sm:$0xff]
    %v2239 = vld [vmem:[%s2226 + $0x60] sm:$0xff]
    %v2240 = vld [vmem:[%s2226 + $0x68] sm:$0xff]
    %v2241 = vld [vmem:[%s2226 + $0x70] sm:$0xff]
    %v2242 = vld [vmem:[%s2226 + $0x78] sm:$0xff]
    %2243 = vmatprep.subr.mxu0 0.0
    %2244 = vmatpush1.msra.mxu0 %v2242
    %2245 = vmatprep.subr.mxu0 0.0
    %2246 = vmatpush1.msra.mxu0 %v2241
    %2247 = vmatprep.subr.mxu0 0.0
    %2248 = vmatpush1.msra.mxu0 %v2240
    %2249 = vmatprep.subr.mxu0 0.0
    %2250 = vmatpush1.msra.mxu0 %v2239
    %2251 = vmatprep.subr.mxu0 0.0
    %2252 = vmatpush1.msra.mxu0 %v2238
    %2253 = vmatprep.subr.mxu0 0.0
    %2254 = vmatpush1.msra.mxu0 %v2237
    %2255 = vmatprep.subr.mxu0 0.0
    %2256 = vmatpush1.msra.mxu0 %v2236
    %2257 = vmatprep.subr.mxu0 0.0
    %2258 = vmatpush1.msra.mxu0 %v2235
    %2259 = vmatprep.subr.mxu0 0.0
    %2260 = vmatpush1.msra.mxu0 %v2234
    %2261 = vmatprep.subr.mxu0 0.0
    %2262 = vmatpush1.msra.mxu0 %v2233
    %2263 = vmatprep.subr.mxu0 0.0
    %2264 = vmatpush1.msra.mxu0 %v2232
    %2265 = vmatprep.subr.mxu0 0.0
    %2266 = vmatpush1.msra.mxu0 %v2231
    %2267 = vmatprep.subr.mxu0 0.0
    %2268 = vmatpush1.msra.mxu0 %v2230
    %2269 = vmatprep.subr.mxu0 0.0
    %2270 = vmatpush1.msra.mxu0 %v2229
    %2271 = vmatprep.subr.mxu0 0.0
    %2272 = vmatpush1.msra.mxu0 %v2228
    %2273 = vmatprep.subr.mxu0 0.0
    %2274 = vmatpush1.msra.mxu0 %v2227
    %2275 = vmatprep.subr.mxu0 0.0
    %2276 = vmatpush2.msra.mxu0 0.0
    %2277 = vmatprep.subr.mxu0 0.0
    %2278 = vmatpush2.msra.mxu0 0.0
    %2279 = vmatprep.subr.mxu0 0.0
    %2280 = vmatpush2.msra.mxu0 0.0
    %2281 = vmatprep.subr.mxu0 0.0
    %2282 = vmatpush2.msra.mxu0 0.0
    %2283 = vmatprep.subr.mxu0 0.0
    %2284 = vmatpush2.msra.mxu0 0.0
    %2285 = vmatprep.subr.mxu0 0.0
    %2286 = vmatpush2.msra.mxu0 0.0
    %2287 = vmatprep.subr.mxu0 0.0
    %2288 = vmatpush2.msra.mxu0 0.0
    %2289 = vmatprep.subr.mxu0 0.0
    %2290 = vmatpush2.msra.mxu0 0.0
    %2291 = vmatprep.subr.mxu0 0.0
    %2292 = vmatpush2.msra.mxu0 0.0
    %2293 = vmatprep.subr.mxu0 0.0
    %2294 = vmatpush2.msra.mxu0 0.0
    %2295 = vmatprep.subr.mxu0 0.0
    %2296 = vmatpush2.msra.mxu0 0.0
    %2297 = vmatprep.subr.mxu0 0.0
    %2298 = vmatpush2.msra.mxu0 0.0
    %2299 = vmatprep.subr.mxu0 0.0
    %2300 = vmatpush2.msra.mxu0 0.0
    %2301 = vmatprep.subr.mxu0 0.0
    %2302 = vmatpush2.msra.mxu0 0.0
    %2303 = vmatprep.subr.mxu0 0.0
    %2304 = vmatpush2.msra.mxu0 0.0
    %2305 = vmatprep.subr.mxu0 0.0
    %2306 = vmatpush2.msra.mxu0 0.0
    %2307 = vmatprep.mubr.f32.mxu0 0.0
    %2308 = vmatmul.mubr.f32.gmra.mxu0 %v2210
    %v2309 = vpop.f32.mrf.mxu0
    %v2310 = vadd.f32 0.0, %v2309
    %v2311 = vpop.f32.mrf.mxu0
    %2312 = vmatprep.mubr.f32.mxu0 0.0
    %2313 = vmatmul.mubr.f32.gmra.mxu0 %v2211
    %v2314 = vpop.f32.mrf.mxu0
    %v2315 = vadd.f32 0.0, %v2314
    %v2316 = vpop.f32.mrf.mxu0
    %2317 = vmatprep.mubr.f32.mxu0 0.0
    %2318 = vmatmul.mubr.f32.gmra.mxu0 %v2212
    %v2319 = vpop.f32.mrf.mxu0
    %v2320 = vadd.f32 0.0, %v2319
    %v2321 = vpop.f32.mrf.mxu0
    %2322 = vmatprep.mubr.f32.mxu0 0.0
    %2323 = vmatmul.mubr.f32.gmra.mxu0 %v2213
    %v2324 = vpop.f32.mrf.mxu0
    %v2325 = vadd.f32 0.0, %v2324
    %v2326 = vpop.f32.mrf.mxu0
    %2327 = vmatprep.mubr.f32.mxu0 0.0
    %2328 = vmatmul.mubr.f32.gmra.mxu0 %v2214
    %v2329 = vpop.f32.mrf.mxu0
    %v2330 = vadd.f32 0.0, %v2329
    %v2331 = vpop.f32.mrf.mxu0
    %2332 = vmatprep.mubr.f32.mxu0 0.0
    %2333 = vmatmul.mubr.f32.gmra.mxu0 %v2215
    %v2334 = vpop.f32.mrf.mxu0
    %v2335 = vadd.f32 0.0, %v2334
    %v2336 = vpop.f32.mrf.mxu0
    %2337 = vmatprep.mubr.f32.mxu0 0.0
    %2338 = vmatmul.mubr.f32.gmra.mxu0 %v2216
    %v2339 = vpop.f32.mrf.mxu0
    %v2340 = vadd.f32 0.0, %v2339
    %v2341 = vpop.f32.mrf.mxu0
    %2342 = vmatprep.mubr.f32.mxu0 0.0
    %2343 = vmatmul.mubr.f32.gmra.mxu0 %v2217
    %v2344 = vpop.f32.mrf.mxu0
    %v2345 = vadd.f32 0.0, %v2344
    %v2346 = vpop.f32.mrf.mxu0
    %2347 = vmatprep.mubr.f32.mxu0 0.0
    %2348 = vmatmul.mubr.f32.gmra.mxu0 %v2218
    %v2349 = vpop.f32.mrf.mxu0
    %v2350 = vadd.f32 0.0, %v2349
    %v2351 = vpop.f32.mrf.mxu0
    %2352 = vmatprep.mubr.f32.mxu0 0.0
    %2353 = vmatmul.mubr.f32.gmra.mxu0 %v2219
    %v2354 = vpop.f32.mrf.mxu0
    %v2355 = vadd.f32 0.0, %v2354
    %v2356 = vpop.f32.mrf.mxu0
    %2357 = vmatprep.mubr.f32.mxu0 0.0
    %2358 = vmatmul.mubr.f32.gmra.mxu0 %v2220
    %v2359 = vpop.f32.mrf.mxu0
    %v2360 = vadd.f32 0.0, %v2359
    %v2361 = vpop.f32.mrf.mxu0
    %2362 = vmatprep.mubr.f32.mxu0 0.0
    %2363 = vmatmul.mubr.f32.gmra.mxu0 %v2221
    %v2364 = vpop.f32.mrf.mxu0
    %v2365 = vadd.f32 0.0, %v2364
    %v2366 = vpop.f32.mrf.mxu0
    %2367 = vmatprep.mubr.f32.mxu0 0.0
    %2368 = vmatmul.mubr.f32.gmra.mxu0 %v2222
    %v2369 = vpop.f32.mrf.mxu0
    %v2370 = vadd.f32 0.0, %v2369
    %v2371 = vpop.f32.mrf.mxu0
    %2372 = vmatprep.mubr.f32.mxu0 0.0
    %2373 = vmatmul.mubr.f32.gmra.mxu0 %v2223
    %v2374 = vpop.f32.mrf.mxu0
    %v2375 = vadd.f32 0.0, %v2374
    %v2376 = vpop.f32.mrf.mxu0
    %2377 = vmatprep.mubr.f32.mxu0 0.0
    %2378 = vmatmul.mubr.f32.gmra.mxu0 %v2224
    %v2379 = vpop.f32.mrf.mxu0
    %v2380 = vadd.f32 0.0, %v2379
    %v2381 = vpop.f32.mrf.mxu0
    %2382 = vmatprep.mubr.f32.mxu0 0.0
    %2383 = vmatmul.mubr.f32.gmra.mxu0 %v2225
    %v2384 = vpop.f32.mrf.mxu0
    %v2385 = vadd.f32 0.0, %v2384
    %v2386 = vpop.f32.mrf.mxu0
    %2387 = vdwg.mxu0
    %v2388 = vadd.f32 %v2130, %v2310
    %v2389 = vadd.f32 %v2131, %v2315
    %v2390 = vadd.f32 %v2132, %v2320
    %v2391 = vadd.f32 %v2133, %v2325
    %v2392 = vadd.f32 %v2134, %v2330
    %v2393 = vadd.f32 %v2135, %v2335
    %v2394 = vadd.f32 %v2136, %v2340
    %v2395 = vadd.f32 %v2137, %v2345
    %v2396 = vadd.f32 %v2138, %v2350
    %v2397 = vadd.f32 %v2139, %v2355
    %v2398 = vadd.f32 %v2140, %v2360
    %v2399 = vadd.f32 %v2141, %v2365
    %v2400 = vadd.f32 %v2142, %v2370
    %v2401 = vadd.f32 %v2143, %v2375
    %v2402 = vadd.f32 %v2144, %v2380
    %v2403 = vadd.f32 %v2145, %v2385
    %v2404 = vlaneseq
    %v2405 = vshrl.u32 %v2404, 7
    %v2406 = vsub.s32 0, %v2405
    %v2407 = vrot.slane %v94, %v2406
    %v2408 = vadd.f32 %v2388, %v2407
    %v2409 = vadd.f32 %v2389, %v2407
    %v2410 = vadd.f32 %v2390, %v2407
    %v2411 = vadd.f32 %v2391, %v2407
    %v2412 = vadd.f32 %v2392, %v2407
    %v2413 = vadd.f32 %v2393, %v2407
    %v2414 = vadd.f32 %v2394, %v2407
    %v2415 = vadd.f32 %v2395, %v2407
    %v2416 = vadd.f32 %v2396, %v2407
    %v2417 = vadd.f32 %v2397, %v2407
    %v2418 = vadd.f32 %v2398, %v2407
    %v2419 = vadd.f32 %v2399, %v2407
    %v2420 = vadd.f32 %v2400, %v2407
    %v2421 = vadd.f32 %v2401, %v2407
    %v2422 = vadd.f32 %v2402, %v2407
    %v2423 = vadd.f32 %v2403, %v2407
    %v2424 = vld [vmem:[%s3 + $0x1] sm:$0x1]
    %v2425 = vld [vmem:[%s3 + $0x2] sm:$0x1]
    %2426 = vmatprep.subr.mxu0 0.0
    %2427 = vmatpush1.msra.mxu0 %v2423
    %2428 = vmatprep.subr.mxu0 0.0
    %2429 = vmatpush1.msra.mxu0 %v2422
    %2430 = vmatprep.subr.mxu0 0.0
    %2431 = vmatpush1.msra.mxu0 %v2421
    %2432 = vmatprep.subr.mxu0 0.0
    %2433 = vmatpush1.msra.mxu0 %v2420
    %2434 = vmatprep.subr.mxu0 0.0
    %2435 = vmatpush1.msra.mxu0 %v2419
    %2436 = vmatprep.subr.mxu0 0.0
    %2437 = vmatpush1.msra.mxu0 %v2418
    %2438 = vmatprep.subr.mxu0 0.0
    %2439 = vmatpush1.msra.mxu0 %v2417
    %2440 = vmatprep.subr.mxu0 0.0
    %2441 = vmatpush1.msra.mxu0 %v2416
    %2442 = vmatprep.subr.mxu0 0.0
    %2443 = vmatpush1.msra.mxu0 %v2415
    %2444 = vmatprep.subr.mxu0 0.0
    %2445 = vmatpush1.msra.mxu0 %v2414
    %2446 = vmatprep.subr.mxu0 0.0
    %2447 = vmatpush1.msra.mxu0 %v2413
    %2448 = vmatprep.subr.mxu0 0.0
    %2449 = vmatpush1.msra.mxu0 %v2412
    %2450 = vmatprep.subr.mxu0 0.0
    %2451 = vmatpush1.msra.mxu0 %v2411
    %2452 = vmatprep.subr.mxu0 0.0
    %2453 = vmatpush1.msra.mxu0 %v2410
    %2454 = vmatprep.subr.mxu0 0.0
    %2455 = vmatpush1.msra.mxu0 %v2409
    %2456 = vmatprep.subr.mxu0 0.0
    %2457 = vmatpush1.msra.mxu0 %v2408
    %2458 = vmatprep.subr.mxu0 0.0
    %2459 = vmatpush2.msra.mxu0 0.0
    %2460 = vmatprep.subr.mxu0 0.0
    %2461 = vmatpush2.msra.mxu0 0.0
    %2462 = vmatprep.subr.mxu0 0.0
    %2463 = vmatpush2.msra.mxu0 0.0
    %2464 = vmatprep.subr.mxu0 0.0
    %2465 = vmatpush2.msra.mxu0 0.0
    %2466 = vmatprep.subr.mxu0 0.0
    %2467 = vmatpush2.msra.mxu0 0.0
    %2468 = vmatprep.subr.mxu0 0.0
    %2469 = vmatpush2.msra.mxu0 0.0
    %2470 = vmatprep.subr.mxu0 0.0
    %2471 = vmatpush2.msra.mxu0 0.0
    %2472 = vmatprep.subr.mxu0 0.0
    %2473 = vmatpush2.msra.mxu0 0.0
    %2474 = vmatprep.subr.mxu0 0.0
    %2475 = vmatpush2.msra.mxu0 0.0
    %2476 = vmatprep.subr.mxu0 0.0
    %2477 = vmatpush2.msra.mxu0 0.0
    %2478 = vmatprep.subr.mxu0 0.0
    %2479 = vmatpush2.msra.mxu0 0.0
    %2480 = vmatprep.subr.mxu0 0.0
    %2481 = vmatpush2.msra.mxu0 0.0
    %2482 = vmatprep.subr.mxu0 0.0
    %2483 = vmatpush2.msra.mxu0 0.0
    %2484 = vmatprep.subr.mxu0 0.0
    %2485 = vmatpush2.msra.mxu0 0.0
    %2486 = vmatprep.subr.mxu0 0.0
    %2487 = vmatpush2.msra.mxu0 0.0
    %2488 = vmatprep.subr.mxu0 0.0
    %2489 = vmatpush2.msra.mxu0 0.0
    %2490 = vmatprep.mubr.f32.mxu0 0.0
    %2491 = vmatmul.mubr.f32.gmra.mxu0 %v61
    %v2492 = vpop.f32.mrf.mxu0
    %v2493 = vadd.f32 0.0, %v2492
    %v2494 = vpop.f32.mrf.mxu0
    %2495 = vdwg.mxu0
    %v2496 = vmul.f32 %v2408, %v2408
    %v2497 = vmul.f32 %v2409, %v2409
    %v2498 = vmul.f32 %v2410, %v2410
    %v2499 = vmul.f32 %v2411, %v2411
    %v2500 = vmul.f32 %v2412, %v2412
    %v2501 = vmul.f32 %v2413, %v2413
    %v2502 = vmul.f32 %v2414, %v2414
    %v2503 = vmul.f32 %v2415, %v2415
    %v2504 = vmul.f32 %v2416, %v2416
    %v2505 = vmul.f32 %v2417, %v2417
    %v2506 = vmul.f32 %v2418, %v2418
    %v2507 = vmul.f32 %v2419, %v2419
    %v2508 = vmul.f32 %v2420, %v2420
    %v2509 = vmul.f32 %v2421, %v2421
    %v2510 = vmul.f32 %v2422, %v2422
    %v2511 = vmul.f32 %v2423, %v2423
    %2512 = vmatprep.subr.mxu0 0.0
    %2513 = vmatpush1.msra.mxu0 %v2511
    %2514 = vmatprep.subr.mxu0 0.0
    %2515 = vmatpush1.msra.mxu0 %v2510
    %2516 = vmatprep.subr.mxu0 0.0
    %2517 = vmatpush1.msra.mxu0 %v2509
    %2518 = vmatprep.subr.mxu0 0.0
    %2519 = vmatpush1.msra.mxu0 %v2508
    %2520 = vmatprep.subr.mxu0 0.0
    %2521 = vmatpush1.msra.mxu0 %v2507
    %2522 = vmatprep.subr.mxu0 0.0
    %2523 = vmatpush1.msra.mxu0 %v2506
    %2524 = vmatprep.subr.mxu0 0.0
    %2525 = vmatpush1.msra.mxu0 %v2505
    %2526 = vmatprep.subr.mxu0 0.0
    %2527 = vmatpush1.msra.mxu0 %v2504
    %2528 = vmatprep.subr.mxu0 0.0
    %2529 = vmatpush1.msra.mxu0 %v2503
    %2530 = vmatprep.subr.mxu0 0.0
    %2531 = vmatpush1.msra.mxu0 %v2502
    %2532 = vmatprep.subr.mxu0 0.0
    %2533 = vmatpush1.msra.mxu0 %v2501
    %2534 = vmatprep.subr.mxu0 0.0
    %2535 = vmatpush1.msra.mxu0 %v2500
    %2536 = vmatprep.subr.mxu0 0.0
    %2537 = vmatpush1.msra.mxu0 %v2499
    %2538 = vmatprep.subr.mxu0 0.0
    %2539 = vmatpush1.msra.mxu0 %v2498
    %2540 = vmatprep.subr.mxu0 0.0
    %2541 = vmatpush1.msra.mxu0 %v2497
    %2542 = vmatprep.subr.mxu0 0.0
    %2543 = vmatpush1.msra.mxu0 %v2496
    %2544 = vmatprep.subr.mxu0 0.0
    %2545 = vmatpush2.msra.mxu0 0.0
    %2546 = vmatprep.subr.mxu0 0.0
    %2547 = vmatpush2.msra.mxu0 0.0
    %2548 = vmatprep.subr.mxu0 0.0
    %2549 = vmatpush2.msra.mxu0 0.0
    %2550 = vmatprep.subr.mxu0 0.0
    %2551 = vmatpush2.msra.mxu0 0.0
    %2552 = vmatprep.subr.mxu0 0.0
    %2553 = vmatpush2.msra.mxu0 0.0
    %2554 = vmatprep.subr.mxu0 0.0
    %2555 = vmatpush2.msra.mxu0 0.0
    %2556 = vmatprep.subr.mxu0 0.0
    %2557 = vmatpush2.msra.mxu0 0.0
    %2558 = vmatprep.subr.mxu0 0.0
    %2559 = vmatpush2.msra.mxu0 0.0
    %2560 = vmatprep.subr.mxu0 0.0
    %2561 = vmatpush2.msra.mxu0 0.0
    %2562 = vmatprep.subr.mxu0 0.0
    %2563 = vmatpush2.msra.mxu0 0.0
    %2564 = vmatprep.subr.mxu0 0.0
    %2565 = vmatpush2.msra.mxu0 0.0
    %2566 = vmatprep.subr.mxu0 0.0
    %2567 = vmatpush2.msra.mxu0 0.0
    %2568 = vmatprep.subr.mxu0 0.0
    %2569 = vmatpush2.msra.mxu0 0.0
    %2570 = vmatprep.subr.mxu0 0.0
    %2571 = vmatpush2.msra.mxu0 0.0
    %2572 = vmatprep.subr.mxu0 0.0
    %2573 = vmatpush2.msra.mxu0 0.0
    %2574 = vmatprep.subr.mxu0 0.0
    %2575 = vmatpush2.msra.mxu0 0.0
    %2576 = vmatprep.mubr.f32.mxu0 0.0
    %2577 = vmatmul.mubr.f32.gmra.mxu0 %v61
    %v2578 = vpop.f32.mrf.mxu0
    %v2579 = vadd.f32 0.0, %v2578
    %v2580 = vpop.f32.mrf.mxu0
    %2581 = vdwg.mxu0
    %v2583 = vrot.slane %v2579, 6
    %vm2585 = vcmask 1041408
    %v2586 = vsel %vm2585, %v2493, %v2583
    %2587 = vmatprep.subr.mxu0 0.0
    %2588 = vmatpush1.msra.mxu0 %v77
    %2589 = vmatprep.subr.mxu0 0.0
    %2590 = vmatpush1.msra.mxu0 %v76
    %2591 = vmatprep.subr.mxu0 0.0
    %2592 = vmatpush1.msra.mxu0 %v75
    %2593 = vmatprep.subr.mxu0 0.0
    %2594 = vmatpush1.msra.mxu0 %v74
    %2595 = vmatprep.subr.mxu0 0.0
    %2596 = vmatpush1.msra.mxu0 %v73
    %2597 = vmatprep.subr.mxu0 0.0
    %2598 = vmatpush1.msra.mxu0 %v72
    %2599 = vmatprep.subr.mxu0 0.0
    %2600 = vmatpush1.msra.mxu0 %v71
    %2601 = vmatprep.subr.mxu0 0.0
    %2602 = vmatpush1.msra.mxu0 %v70
    %2603 = vmatprep.subr.mxu0 0.0
    %2604 = vmatpush1.msra.mxu0 %v69
    %2605 = vmatprep.subr.mxu0 0.0
    %2606 = vmatpush1.msra.mxu0 %v68
    %2607 = vmatprep.subr.mxu0 0.0
    %2608 = vmatpush1.msra.mxu0 %v67
    %2609 = vmatprep.subr.mxu0 0.0
    %2610 = vmatpush1.msra.mxu0 %v66
    %2611 = vmatprep.subr.mxu0 0.0
    %2612 = vmatpush1.msra.mxu0 %v65
    %2613 = vmatprep.subr.mxu0 0.0
    %2614 = vmatpush1.msra.mxu0 %v64
    %2615 = vmatprep.subr.mxu0 0.0
    %2616 = vmatpush1.msra.mxu0 %v63
    %2617 = vmatprep.subr.mxu0 0.0
    %2618 = vmatpush1.msra.mxu0 %v62
    %2619 = vmatprep.subr.mxu0 0.0
    %2620 = vmatpush2.msra.mxu0 0.0
    %2621 = vmatprep.subr.mxu0 0.0
    %2622 = vmatpush2.msra.mxu0 0.0
    %2623 = vmatprep.subr.mxu0 0.0
    %2624 = vmatpush2.msra.mxu0 0.0
    %2625 = vmatprep.subr.mxu0 0.0
    %2626 = vmatpush2.msra.mxu0 0.0
    %2627 = vmatprep.subr.mxu0 0.0
    %2628 = vmatpush2.msra.mxu0 0.0
    %2629 = vmatprep.subr.mxu0 0.0
    %2630 = vmatpush2.msra.mxu0 0.0
    %2631 = vmatprep.subr.mxu0 0.0
    %2632 = vmatpush2.msra.mxu0 0.0
    %2633 = vmatprep.subr.mxu0 0.0
    %2634 = vmatpush2.msra.mxu0 0.0
    %2635 = vmatprep.subr.mxu0 0.0
    %2636 = vmatpush2.msra.mxu0 0.0
    %2637 = vmatprep.subr.mxu0 0.0
    %2638 = vmatpush2.msra.mxu0 0.0
    %2639 = vmatprep.subr.mxu0 0.0
    %2640 = vmatpush2.msra.mxu0 0.0
    %2641 = vmatprep.subr.mxu0 0.0
    %2642 = vmatpush2.msra.mxu0 0.0
    %2643 = vmatprep.subr.mxu0 0.0
    %2644 = vmatpush2.msra.mxu0 0.0
    %2645 = vmatprep.subr.mxu0 0.0
    %2646 = vmatpush2.msra.mxu0 0.0
    %2647 = vmatprep.subr.mxu0 0.0
    %2648 = vmatpush2.msra.mxu0 0.0
    %2649 = vmatprep.subr.mxu0 0.0
    %2650 = vmatpush2.msra.mxu0 0.0
    %2651 = vmatprep.mubr.f32.mxu0 0.0
    %2652 = vmatmul.mubr.f32.gmra.mxu0 %v2586
    %v2653 = vpop.f32.mrf.mxu0
    %v2654 = vadd.f32 0.0, %v2653
    %v2655 = vpop.f32.mrf.mxu0
    %2656 = vdwg.mxu0
    %v2657 = vmul.f32 %v2654, %v2654
    %v2659 = vrot.slane %v2657, 6
    %v2661 = vsub.f32 %v2654, %v2659
    %v2662 = vadd.f32 %v2661, 1e-05
    %v2663 = vrsqrt.pop %v2662
    %v2664 = vlaneseq
    %v2665 = vshrl.u32 %v2664, 7
    %v2666 = vsub.s32 0, %v2665
    %v2667 = vrot.slane %v2424, %v2666
    %v2668 = vmul.f32 %v2663, %v2667
    %v2670 = vrot.slane %v2668, 2
    %v2672 = vmul.f32 %v2654, %v2670
    %v2673 = vlaneseq
    %v2674 = vshrl.u32 %v2673, 7
    %v2675 = vsub.s32 0, %v2674
    %v2676 = vrot.slane %v2425, %v2675
    %v2677 = vsub.f32 %v2676, %v2672
    %v2679 = vunpack.c.l.s4 1966171168
    %v2680 = vunpack.c.0.s8 %v2679
    %v2681 = vlaneseq
    %v2682 = vshrl.u32 %v2681, 7
    %v2683 = vsub.s32 %v2680, %v2682
    %v2684 = vrot.slane %v2668, %v2683
    %v2685 = vcombine.high %v2684, %v2684
    %v2687 = vunpack.c.l.s4 1966171168
    %v2688 = vunpack.c.0.s8 %v2687
    %v2689 = vlaneseq
    %v2690 = vshrl.u32 %v2689, 7
    %v2691 = vsub.s32 %v2688, %v2690
    %v2692 = vrot.slane %v2684, %v2691
    %v2694 = vunpack.c.l.s4 1966171168
    %v2695 = vunpack.c.0.s8 %v2694
    %v2696 = vlaneseq
    %v2697 = vshrl.u32 %v2696, 7
    %v2698 = vsub.s32 %v2695, %v2697
    %v2699 = vrot.slane %v2685, %v2698
    %v2700 = vcombine.high %v2692, %v2692
    %v2701 = vcombine.high %v2699, %v2699
    %v2702 = vlaneseq
    %v2703 = vshrl.u32 %v2702, 7
    %v2704 = vsub.s32 0, %v2703
    %v2705 = vrot.slane %v2700, %v2704
    %v2706 = vlaneseq
    %v2707 = vshrl.u32 %v2706, 7
    %v2708 = vsub.s32 0, %v2707
    %v2709 = vrot.slane %v2701, %v2708
    %v2712 = vmul.f32 %v2408, %v2705
    %v2713 = vmul.f32 %v2409, %v2705
    %v2714 = vmul.f32 %v2410, %v2705
    %v2715 = vmul.f32 %v2411, %v2705
    %v2716 = vmul.f32 %v2412, %v2705
    %v2717 = vmul.f32 %v2413, %v2705
    %v2718 = vmul.f32 %v2414, %v2705
    %v2719 = vmul.f32 %v2415, %v2705
    %v2720 = vmul.f32 %v2416, %v2709
    %v2721 = vmul.f32 %v2417, %v2709
    %v2722 = vmul.f32 %v2418, %v2709
    %v2723 = vmul.f32 %v2419, %v2709
    %v2724 = vmul.f32 %v2420, %v2709
    %v2725 = vmul.f32 %v2421, %v2709
    %v2726 = vmul.f32 %v2422, %v2709
    %v2727 = vmul.f32 %v2423, %v2709
    %v2730 = vunpack.c.l.s4 1966171168
    %v2731 = vunpack.c.0.s8 %v2730
    %v2732 = vlaneseq
    %v2733 = vshrl.u32 %v2732, 7
    %v2734 = vsub.s32 %v2731, %v2733
    %v2735 = vrot.slane %v2677, %v2734
    %v2736 = vcombine.high %v2735, %v2735
    %v2738 = vunpack.c.l.s4 1966171168
    %v2739 = vunpack.c.0.s8 %v2738
    %v2740 = vlaneseq
    %v2741 = vshrl.u32 %v2740, 7
    %v2742 = vsub.s32 %v2739, %v2741
    %v2743 = vrot.slane %v2735, %v2742
    %v2745 = vunpack.c.l.s4 1966171168
    %v2746 = vunpack.c.0.s8 %v2745
    %v2747 = vlaneseq
    %v2748 = vshrl.u32 %v2747, 7
    %v2749 = vsub.s32 %v2746, %v2748
    %v2750 = vrot.slane %v2736, %v2749
    %v2751 = vlaneseq
    %v2752 = vshrl.u32 %v2751, 7
    %v2753 = vsub.s32 0, %v2752
    %v2754 = vrot.slane %v2743, %v2753
    %v2755 = vlaneseq
    %v2756 = vshrl.u32 %v2755, 7
    %v2757 = vsub.s32 0, %v2756
    %v2758 = vrot.slane %v2750, %v2757
    %v2761 = vadd.f32 %v2712, %v2754
    %v2762 = vadd.f32 %v2713, %v2754
    %v2763 = vadd.f32 %v2714, %v2754
    %v2764 = vadd.f32 %v2715, %v2754
    %v2765 = vadd.f32 %v2716, %v2754
    %v2766 = vadd.f32 %v2717, %v2754
    %v2767 = vadd.f32 %v2718, %v2754
    %v2768 = vadd.f32 %v2719, %v2754
    %v2769 = vadd.f32 %v2720, %v2758
    %v2770 = vadd.f32 %v2721, %v2758
    %v2771 = vadd.f32 %v2722, %v2758
    %v2772 = vadd.f32 %v2723, %v2758
    %v2773 = vadd.f32 %v2724, %v2758
    %v2774 = vadd.f32 %v2725, %v2758
    %v2775 = vadd.f32 %v2726, %v2758
    %v2776 = vadd.f32 %v2727, %v2758
    %v2777 = vmax.f32 %v2761, 0.0
    %v2778 = vmax.f32 %v2762, 0.0
    %v2779 = vmax.f32 %v2763, 0.0
    %v2780 = vmax.f32 %v2764, 0.0
    %v2781 = vmax.f32 %v2765, 0.0
    %v2782 = vmax.f32 %v2766, 0.0
    %v2783 = vmax.f32 %v2767, 0.0
    %v2784 = vmax.f32 %v2768, 0.0
    %v2785 = vmax.f32 %v2769, 0.0
    %v2786 = vmax.f32 %v2770, 0.0
    %v2787 = vmax.f32 %v2771, 0.0
    %v2788 = vmax.f32 %v2772, 0.0
    %v2789 = vmax.f32 %v2773, 0.0
    %v2790 = vmax.f32 %v2774, 0.0
    %v2791 = vmax.f32 %v2775, 0.0
    %v2792 = vmax.f32 %v2776, 0.0
    %s2793 = smul.u32 9, 128
    %s2794 = smul.u32 %s2793, 1
    %s2795 = sshll.u32 %s2794, 4
    %2796 = dma.done [#allocation3], %s2795
    %v2797 = vld [vmem:[%s3 + $0x3] sm:$0x1]
    %s2798 = scalar_lea.vmem [#allocation2], 512
    %v2799 = vld [vmem:[%s2798] sm:$0xff]
    %v2800 = vld [vmem:[%s2798 + $0x8] sm:$0xff]
    %v2801 = vld [vmem:[%s2798 + $0x10] sm:$0xff]
    %v2802 = vld [vmem:[%s2798 + $0x18] sm:$0xff]
    %v2803 = vld [vmem:[%s2798 + $0x20] sm:$0xff]
    %v2804 = vld [vmem:[%s2798 + $0x28] sm:$0xff]
    %v2805 = vld [vmem:[%s2798 + $0x30] sm:$0xff]
    %v2806 = vld [vmem:[%s2798 + $0x38] sm:$0xff]
    %v2807 = vld [vmem:[%s2798 + $0x40] sm:$0xff]
    %v2808 = vld [vmem:[%s2798 + $0x48] sm:$0xff]
    %v2809 = vld [vmem:[%s2798 + $0x50] sm:$0xff]
    %v2810 = vld [vmem:[%s2798 + $0x58] sm:$0xff]
    %v2811 = vld [vmem:[%s2798 + $0x60] sm:$0xff]
    %v2812 = vld [vmem:[%s2798 + $0x68] sm:$0xff]
    %v2813 = vld [vmem:[%s2798 + $0x70] sm:$0xff]
    %v2814 = vld [vmem:[%s2798 + $0x78] sm:$0xff]
    %v2815 = vrot.slane %v2777, 7
    %v2816 = vrot.slane %v2778, 7
    %v2817 = vrot.slane %v2779, 7
    %v2818 = vrot.slane %v2780, 7
    %v2819 = vrot.slane %v2781, 7
    %v2820 = vrot.slane %v2782, 7
    %v2821 = vrot.slane %v2783, 7
    %v2822 = vrot.slane %v2784, 7
    %v2823 = vrot.slane %v2785, 7
    %v2824 = vrot.slane %v2786, 7
    %v2825 = vrot.slane %v2787, 7
    %v2826 = vrot.slane %v2788, 7
    %v2827 = vrot.slane %v2789, 7
    %v2828 = vrot.slane %v2790, 7
    %v2829 = vrot.slane %v2791, 7
    %v2830 = vrot.slane %v2792, 7
    %v2831 = vsel %vm130, %v2829, %v2830
    %v2832 = vsel %vm130, %v2828, %v2829
    %v2833 = vsel %vm130, %v2827, %v2828
    %v2834 = vsel %vm130, %v2826, %v2827
    %v2835 = vsel %vm130, %v2825, %v2826
    %v2836 = vsel %vm130, %v2824, %v2825
    %v2837 = vsel %vm130, %v2823, %v2824
    %v2838 = vsel %vm130, %v2822, %v2823
    %v2839 = vsel %vm130, %v2821, %v2822
    %v2840 = vsel %vm130, %v2820, %v2821
    %v2841 = vsel %vm130, %v2819, %v2820
    %v2842 = vsel %vm130, %v2818, %v2819
    %v2843 = vsel %vm130, %v2817, %v2818
    %v2844 = vsel %vm130, %v2816, %v2817
    %v2845 = vsel %vm130, %v2815, %v2816
    %v2846 = vsel %vm130, %v2830, %v2815
    %v2847 = vld [vmem:[%s4] sm:$0xff]
    %v2848 = vld [vmem:[%s4 + $0x8] sm:$0xff]
    %v2849 = vld [vmem:[%s4 + $0x10] sm:$0xff]
    %v2850 = vld [vmem:[%s4 + $0x18] sm:$0xff]
    %v2851 = vld [vmem:[%s4 + $0x20] sm:$0xff]
    %v2852 = vld [vmem:[%s4 + $0x28] sm:$0xff]
    %v2853 = vld [vmem:[%s4 + $0x30] sm:$0xff]
    %v2854 = vld [vmem:[%s4 + $0x38] sm:$0xff]
    %v2855 = vld [vmem:[%s4 + $0x40] sm:$0xff]
    %v2856 = vld [vmem:[%s4 + $0x48] sm:$0xff]
    %v2857 = vld [vmem:[%s4 + $0x50] sm:$0xff]
    %v2858 = vld [vmem:[%s4 + $0x58] sm:$0xff]
    %v2859 = vld [vmem:[%s4 + $0x60] sm:$0xff]
    %v2860 = vld [vmem:[%s4 + $0x68] sm:$0xff]
    %v2861 = vld [vmem:[%s4 + $0x70] sm:$0xff]
    %v2862 = vld [vmem:[%s4 + $0x78] sm:$0xff]
    %2864 = vset.pattern.permute.xlu0 0
    %2865 = vperm.xlu0 %2864, %v2847
    %v2866 = vpop.permute.xlu0 %2865
    %2869 = vset.pattern.permute.xlu0 0
    %2870 = vperm.xlu0 %2869, %v2848
    %v2871 = vpop.permute.xlu0 %2870
    %2874 = vset.pattern.permute.xlu0 0
    %2875 = vperm.xlu0 %2874, %v2849
    %v2876 = vpop.permute.xlu0 %2875
    %2879 = vset.pattern.permute.xlu0 0
    %2880 = vperm.xlu0 %2879, %v2850
    %v2881 = vpop.permute.xlu0 %2880
    %2884 = vset.pattern.permute.xlu0 0
    %2885 = vperm.xlu0 %2884, %v2851
    %v2886 = vpop.permute.xlu0 %2885
    %2889 = vset.pattern.permute.xlu0 0
    %2890 = vperm.xlu0 %2889, %v2852
    %v2891 = vpop.permute.xlu0 %2890
    %2894 = vset.pattern.permute.xlu0 0
    %2895 = vperm.xlu0 %2894, %v2853
    %v2896 = vpop.permute.xlu0 %2895
    %2899 = vset.pattern.permute.xlu0 0
    %2900 = vperm.xlu0 %2899, %v2854
    %v2901 = vpop.permute.xlu0 %2900
    %2904 = vset.pattern.permute.xlu0 0
    %2905 = vperm.xlu0 %2904, %v2855
    %v2906 = vpop.permute.xlu0 %2905
    %2909 = vset.pattern.permute.xlu0 0
    %2910 = vperm.xlu0 %2909, %v2856
    %v2911 = vpop.permute.xlu0 %2910
    %2914 = vset.pattern.permute.xlu0 0
    %2915 = vperm.xlu0 %2914, %v2857
    %v2916 = vpop.permute.xlu0 %2915
    %2919 = vset.pattern.permute.xlu0 0
    %2920 = vperm.xlu0 %2919, %v2858
    %v2921 = vpop.permute.xlu0 %2920
    %2924 = vset.pattern.permute.xlu0 0
    %2925 = vperm.xlu0 %2924, %v2859
    %v2926 = vpop.permute.xlu0 %2925
    %2929 = vset.pattern.permute.xlu0 0
    %2930 = vperm.xlu0 %2929, %v2860
    %v2931 = vpop.permute.xlu0 %2930
    %2934 = vset.pattern.permute.xlu0 0
    %2935 = vperm.xlu0 %2934, %v2861
    %v2936 = vpop.permute.xlu0 %2935
    %2939 = vset.pattern.permute.xlu0 0
    %2940 = vperm.xlu0 %2939, %v2862
    %v2941 = vpop.permute.xlu0 %2940
    %v2943 = vmul.f32 %v2831, %v2866
    %v2944 = vmul.f32 %v2846, %v2871
    %v2945 = vmul.f32 %v2845, %v2876
    %v2946 = vmul.f32 %v2844, %v2881
    %v2947 = vmul.f32 %v2843, %v2886
    %v2948 = vmul.f32 %v2842, %v2891
    %v2949 = vmul.f32 %v2841, %v2896
    %v2950 = vmul.f32 %v2840, %v2901
    %v2951 = vmul.f32 %v2839, %v2906
    %v2952 = vmul.f32 %v2838, %v2911
    %v2953 = vmul.f32 %v2837, %v2916
    %v2954 = vmul.f32 %v2836, %v2921
    %v2955 = vmul.f32 %v2835, %v2926
    %v2956 = vmul.f32 %v2834, %v2931
    %v2957 = vmul.f32 %v2833, %v2936
    %v2958 = vmul.f32 %v2832, %v2941
    %v2959 = vld [vmem:[#allocation2] sm:$0xff]
    %v2960 = vld [vmem:[#allocation2 + $0x8] sm:$0xff]
    %v2961 = vld [vmem:[#allocation2 + $0x10] sm:$0xff]
    %v2962 = vld [vmem:[#allocation2 + $0x18] sm:$0xff]
    %v2963 = vld [vmem:[#allocation2 + $0x20] sm:$0xff]
    %v2964 = vld [vmem:[#allocation2 + $0x28] sm:$0xff]
    %v2965 = vld [vmem:[#allocation2 + $0x30] sm:$0xff]
    %v2966 = vld [vmem:[#allocation2 + $0x38] sm:$0xff]
    %v2967 = vld [vmem:[#allocation2 + $0x40] sm:$0xff]
    %v2968 = vld [vmem:[#allocation2 + $0x48] sm:$0xff]
    %v2969 = vld [vmem:[#allocation2 + $0x50] sm:$0xff]
    %v2970 = vld [vmem:[#allocation2 + $0x58] sm:$0xff]
    %v2971 = vld [vmem:[#allocation2 + $0x60] sm:$0xff]
    %v2972 = vld [vmem:[#allocation2 + $0x68] sm:$0xff]
    %v2973 = vld [vmem:[#allocation2 + $0x70] sm:$0xff]
    %v2974 = vld [vmem:[#allocation2 + $0x78] sm:$0xff]
    %2975 = vmatprep.subr.mxu0 0.0
    %2976 = vmatpush1.msra.mxu0 %v2974
    %2977 = vmatprep.subr.mxu0 0.0
    %2978 = vmatpush1.msra.mxu0 %v2973
    %2979 = vmatprep.subr.mxu0 0.0
    %2980 = vmatpush1.msra.mxu0 %v2972
    %2981 = vmatprep.subr.mxu0 0.0
    %2982 = vmatpush1.msra.mxu0 %v2971
    %2983 = vmatprep.subr.mxu0 0.0
    %2984 = vmatpush1.msra.mxu0 %v2970
    %2985 = vmatprep.subr.mxu0 0.0
    %2986 = vmatpush1.msra.mxu0 %v2969
    %2987 = vmatprep.subr.mxu0 0.0
    %2988 = vmatpush1.msra.mxu0 %v2968
    %2989 = vmatprep.subr.mxu0 0.0
    %2990 = vmatpush1.msra.mxu0 %v2967
    %2991 = vmatprep.subr.mxu0 0.0
    %2992 = vmatpush1.msra.mxu0 %v2966
    %2993 = vmatprep.subr.mxu0 0.0
    %2994 = vmatpush1.msra.mxu0 %v2965
    %2995 = vmatprep.subr.mxu0 0.0
    %2996 = vmatpush1.msra.mxu0 %v2964
    %2997 = vmatprep.subr.mxu0 0.0
    %2998 = vmatpush1.msra.mxu0 %v2963
    %2999 = vmatprep.subr.mxu0 0.0
    %3000 = vmatpush1.msra.mxu0 %v2962
    %3001 = vmatprep.subr.mxu0 0.0
    %3002 = vmatpush1.msra.mxu0 %v2961
    %3003 = vmatprep.subr.mxu0 0.0
    %3004 = vmatpush1.msra.mxu0 %v2960
    %3005 = vmatprep.subr.mxu0 0.0
    %3006 = vmatpush1.msra.mxu0 %v2959
    %3007 = vmatprep.subr.mxu0 0.0
    %3008 = vmatpush2.msra.mxu0 0.0
    %3009 = vmatprep.subr.mxu0 0.0
    %3010 = vmatpush2.msra.mxu0 0.0
    %3011 = vmatprep.subr.mxu0 0.0
    %3012 = vmatpush2.msra.mxu0 0.0
    %3013 = vmatprep.subr.mxu0 0.0
    %3014 = vmatpush2.msra.mxu0 0.0
    %3015 = vmatprep.subr.mxu0 0.0
    %3016 = vmatpush2.msra.mxu0 0.0
    %3017 = vmatprep.subr.mxu0 0.0
    %3018 = vmatpush2.msra.mxu0 0.0
    %3019 = vmatprep.subr.mxu0 0.0
    %3020 = vmatpush2.msra.mxu0 0.0
    %3021 = vmatprep.subr.mxu0 0.0
    %3022 = vmatpush2.msra.mxu0 0.0
    %3023 = vmatprep.subr.mxu0 0.0
    %3024 = vmatpush2.msra.mxu0 0.0
    %3025 = vmatprep.subr.mxu0 0.0
    %3026 = vmatpush2.msra.mxu0 0.0
    %3027 = vmatprep.subr.mxu0 0.0
    %3028 = vmatpush2.msra.mxu0 0.0
    %3029 = vmatprep.subr.mxu0 0.0
    %3030 = vmatpush2.msra.mxu0 0.0
    %3031 = vmatprep.subr.mxu0 0.0
    %3032 = vmatpush2.msra.mxu0 0.0
    %3033 = vmatprep.subr.mxu0 0.0
    %3034 = vmatpush2.msra.mxu0 0.0
    %3035 = vmatprep.subr.mxu0 0.0
    %3036 = vmatpush2.msra.mxu0 0.0
    %3037 = vmatprep.subr.mxu0 0.0
    %3038 = vmatpush2.msra.mxu0 0.0
    %3039 = vmatprep.mubr.f32.mxu0 0.0
    %3040 = vmatmul.mubr.f32.gmra.mxu0 %v2943
    %v3041 = vpop.f32.mrf.mxu0
    %v3042 = vadd.f32 0.0, %v3041
    %v3043 = vpop.f32.mrf.mxu0
    %3044 = vmatprep.mubr.f32.mxu0 0.0
    %3045 = vmatmul.mubr.f32.gmra.mxu0 %v2944
    %v3046 = vpop.f32.mrf.mxu0
    %v3047 = vadd.f32 0.0, %v3046
    %v3048 = vpop.f32.mrf.mxu0
    %3049 = vmatprep.mubr.f32.mxu0 0.0
    %3050 = vmatmul.mubr.f32.gmra.mxu0 %v2945
    %v3051 = vpop.f32.mrf.mxu0
    %v3052 = vadd.f32 0.0, %v3051
    %v3053 = vpop.f32.mrf.mxu0
    %3054 = vmatprep.mubr.f32.mxu0 0.0
    %3055 = vmatmul.mubr.f32.gmra.mxu0 %v2946
    %v3056 = vpop.f32.mrf.mxu0
    %v3057 = vadd.f32 0.0, %v3056
    %v3058 = vpop.f32.mrf.mxu0
    %3059 = vmatprep.mubr.f32.mxu0 0.0
    %3060 = vmatmul.mubr.f32.gmra.mxu0 %v2947
    %v3061 = vpop.f32.mrf.mxu0
    %v3062 = vadd.f32 0.0, %v3061
    %v3063 = vpop.f32.mrf.mxu0
    %3064 = vmatprep.mubr.f32.mxu0 0.0
    %3065 = vmatmul.mubr.f32.gmra.mxu0 %v2948
    %v3066 = vpop.f32.mrf.mxu0
    %v3067 = vadd.f32 0.0, %v3066
    %v3068 = vpop.f32.mrf.mxu0
    %3069 = vmatprep.mubr.f32.mxu0 0.0
    %3070 = vmatmul.mubr.f32.gmra.mxu0 %v2949
    %v3071 = vpop.f32.mrf.mxu0
    %v3072 = vadd.f32 0.0, %v3071
    %v3073 = vpop.f32.mrf.mxu0
    %3074 = vmatprep.mubr.f32.mxu0 0.0
    %3075 = vmatmul.mubr.f32.gmra.mxu0 %v2950
    %v3076 = vpop.f32.mrf.mxu0
    %v3077 = vadd.f32 0.0, %v3076
    %v3078 = vpop.f32.mrf.mxu0
    %3079 = vmatprep.mubr.f32.mxu0 0.0
    %3080 = vmatmul.mubr.f32.gmra.mxu0 %v2951
    %v3081 = vpop.f32.mrf.mxu0
    %v3082 = vadd.f32 0.0, %v3081
    %v3083 = vpop.f32.mrf.mxu0
    %3084 = vmatprep.mubr.f32.mxu0 0.0
    %3085 = vmatmul.mubr.f32.gmra.mxu0 %v2952
    %v3086 = vpop.f32.mrf.mxu0
    %v3087 = vadd.f32 0.0, %v3086
    %v3088 = vpop.f32.mrf.mxu0
    %3089 = vmatprep.mubr.f32.mxu0 0.0
    %3090 = vmatmul.mubr.f32.gmra.mxu0 %v2953
    %v3091 = vpop.f32.mrf.mxu0
    %v3092 = vadd.f32 0.0, %v3091
    %v3093 = vpop.f32.mrf.mxu0
    %3094 = vmatprep.mubr.f32.mxu0 0.0
    %3095 = vmatmul.mubr.f32.gmra.mxu0 %v2954
    %v3096 = vpop.f32.mrf.mxu0
    %v3097 = vadd.f32 0.0, %v3096
    %v3098 = vpop.f32.mrf.mxu0
    %3099 = vmatprep.mubr.f32.mxu0 0.0
    %3100 = vmatmul.mubr.f32.gmra.mxu0 %v2955
    %v3101 = vpop.f32.mrf.mxu0
    %v3102 = vadd.f32 0.0, %v3101
    %v3103 = vpop.f32.mrf.mxu0
    %3104 = vmatprep.mubr.f32.mxu0 0.0
    %3105 = vmatmul.mubr.f32.gmra.mxu0 %v2956
    %v3106 = vpop.f32.mrf.mxu0
    %v3107 = vadd.f32 0.0, %v3106
    %v3108 = vpop.f32.mrf.mxu0
    %3109 = vmatprep.mubr.f32.mxu0 0.0
    %3110 = vmatmul.mubr.f32.gmra.mxu0 %v2957
    %v3111 = vpop.f32.mrf.mxu0
    %v3112 = vadd.f32 0.0, %v3111
    %v3113 = vpop.f32.mrf.mxu0
    %3114 = vmatprep.mubr.f32.mxu0 0.0
    %3115 = vmatmul.mubr.f32.gmra.mxu0 %v2958
    %v3116 = vpop.f32.mrf.mxu0
    %v3117 = vadd.f32 0.0, %v3116
    %v3118 = vpop.f32.mrf.mxu0
    %3119 = vdwg.mxu0
    %3120 = vmatprep.subr.mxu0 0.0
    %3121 = vmatpush1.msra.mxu0 %v2814
    %3122 = vmatprep.subr.mxu0 0.0
    %3123 = vmatpush1.msra.mxu0 %v2813
    %3124 = vmatprep.subr.mxu0 0.0
    %3125 = vmatpush1.msra.mxu0 %v2812
    %3126 = vmatprep.subr.mxu0 0.0
    %3127 = vmatpush1.msra.mxu0 %v2811
    %3128 = vmatprep.subr.mxu0 0.0
    %3129 = vmatpush1.msra.mxu0 %v2810
    %3130 = vmatprep.subr.mxu0 0.0
    %3131 = vmatpush1.msra.mxu0 %v2809
    %3132 = vmatprep.subr.mxu0 0.0
    %3133 = vmatpush1.msra.mxu0 %v2808
    %3134 = vmatprep.subr.mxu0 0.0
    %3135 = vmatpush1.msra.mxu0 %v2807
    %3136 = vmatprep.subr.mxu0 0.0
    %3137 = vmatpush1.msra.mxu0 %v2806
    %3138 = vmatprep.subr.mxu0 0.0
    %3139 = vmatpush1.msra.mxu0 %v2805
    %3140 = vmatprep.subr.mxu0 0.0
    %3141 = vmatpush1.msra.mxu0 %v2804
    %3142 = vmatprep.subr.mxu0 0.0
    %3143 = vmatpush1.msra.mxu0 %v2803
    %3144 = vmatprep.subr.mxu0 0.0
    %3145 = vmatpush1.msra.mxu0 %v2802
    %3146 = vmatprep.subr.mxu0 0.0
    %3147 = vmatpush1.msra.mxu0 %v2801
    %3148 = vmatprep.subr.mxu0 0.0
    %3149 = vmatpush1.msra.mxu0 %v2800
    %3150 = vmatprep.subr.mxu0 0.0
    %3151 = vmatpush1.msra.mxu0 %v2799
    %3152 = vmatprep.subr.mxu0 0.0
    %3153 = vmatpush2.msra.mxu0 0.0
    %3154 = vmatprep.subr.mxu0 0.0
    %3155 = vmatpush2.msra.mxu0 0.0
    %3156 = vmatprep.subr.mxu0 0.0
    %3157 = vmatpush2.msra.mxu0 0.0
    %3158 = vmatprep.subr.mxu0 0.0
    %3159 = vmatpush2.msra.mxu0 0.0
    %3160 = vmatprep.subr.mxu0 0.0
    %3161 = vmatpush2.msra.mxu0 0.0
    %3162 = vmatprep.subr.mxu0 0.0
    %3163 = vmatpush2.msra.mxu0 0.0
    %3164 = vmatprep.subr.mxu0 0.0
    %3165 = vmatpush2.msra.mxu0 0.0
    %3166 = vmatprep.subr.mxu0 0.0
    %3167 = vmatpush2.msra.mxu0 0.0
    %3168 = vmatprep.subr.mxu0 0.0
    %3169 = vmatpush2.msra.mxu0 0.0
    %3170 = vmatprep.subr.mxu0 0.0
    %3171 = vmatpush2.msra.mxu0 0.0
    %3172 = vmatprep.subr.mxu0 0.0
    %3173 = vmatpush2.msra.mxu0 0.0
    %3174 = vmatprep.subr.mxu0 0.0
    %3175 = vmatpush2.msra.mxu0 0.0
    %3176 = vmatprep.subr.mxu0 0.0
    %3177 = vmatpush2.msra.mxu0 0.0
    %3178 = vmatprep.subr.mxu0 0.0
    %3179 = vmatpush2.msra.mxu0 0.0
    %3180 = vmatprep.subr.mxu0 0.0
    %3181 = vmatpush2.msra.mxu0 0.0
    %3182 = vmatprep.subr.mxu0 0.0
    %3183 = vmatpush2.msra.mxu0 0.0
    %3184 = vmatprep.mubr.f32.mxu0 0.0
    %3185 = vmatmul.mubr.f32.gmra.mxu0 %v2777
    %v3186 = vpop.f32.mrf.mxu0
    %v3187 = vadd.f32 %v3042, %v3186
    %v3188 = vpop.f32.mrf.mxu0
    %3189 = vmatprep.mubr.f32.mxu0 0.0
    %3190 = vmatmul.mubr.f32.gmra.mxu0 %v2778
    %v3191 = vpop.f32.mrf.mxu0
    %v3192 = vadd.f32 %v3047, %v3191
    %v3193 = vpop.f32.mrf.mxu0
    %3194 = vmatprep.mubr.f32.mxu0 0.0
    %3195 = vmatmul.mubr.f32.gmra.mxu0 %v2779
    %v3196 = vpop.f32.mrf.mxu0
    %v3197 = vadd.f32 %v3052, %v3196
    %v3198 = vpop.f32.mrf.mxu0
    %3199 = vmatprep.mubr.f32.mxu0 0.0
    %3200 = vmatmul.mubr.f32.gmra.mxu0 %v2780
    %v3201 = vpop.f32.mrf.mxu0
    %v3202 = vadd.f32 %v3057, %v3201
    %v3203 = vpop.f32.mrf.mxu0
    %3204 = vmatprep.mubr.f32.mxu0 0.0
    %3205 = vmatmul.mubr.f32.gmra.mxu0 %v2781
    %v3206 = vpop.f32.mrf.mxu0
    %v3207 = vadd.f32 %v3062, %v3206
    %v3208 = vpop.f32.mrf.mxu0
    %3209 = vmatprep.mubr.f32.mxu0 0.0
    %3210 = vmatmul.mubr.f32.gmra.mxu0 %v2782
    %v3211 = vpop.f32.mrf.mxu0
    %v3212 = vadd.f32 %v3067, %v3211
    %v3213 = vpop.f32.mrf.mxu0
    %3214 = vmatprep.mubr.f32.mxu0 0.0
    %3215 = vmatmul.mubr.f32.gmra.mxu0 %v2783
    %v3216 = vpop.f32.mrf.mxu0
    %v3217 = vadd.f32 %v3072, %v3216
    %v3218 = vpop.f32.mrf.mxu0
    %3219 = vmatprep.mubr.f32.mxu0 0.0
    %3220 = vmatmul.mubr.f32.gmra.mxu0 %v2784
    %v3221 = vpop.f32.mrf.mxu0
    %v3222 = vadd.f32 %v3077, %v3221
    %v3223 = vpop.f32.mrf.mxu0
    %3224 = vmatprep.mubr.f32.mxu0 0.0
    %3225 = vmatmul.mubr.f32.gmra.mxu0 %v2785
    %v3226 = vpop.f32.mrf.mxu0
    %v3227 = vadd.f32 %v3082, %v3226
    %v3228 = vpop.f32.mrf.mxu0
    %3229 = vmatprep.mubr.f32.mxu0 0.0
    %3230 = vmatmul.mubr.f32.gmra.mxu0 %v2786
    %v3231 = vpop.f32.mrf.mxu0
    %v3232 = vadd.f32 %v3087, %v3231
    %v3233 = vpop.f32.mrf.mxu0
    %3234 = vmatprep.mubr.f32.mxu0 0.0
    %3235 = vmatmul.mubr.f32.gmra.mxu0 %v2787
    %v3236 = vpop.f32.mrf.mxu0
    %v3237 = vadd.f32 %v3092, %v3236
    %v3238 = vpop.f32.mrf.mxu0
    %3239 = vmatprep.mubr.f32.mxu0 0.0
    %3240 = vmatmul.mubr.f32.gmra.mxu0 %v2788
    %v3241 = vpop.f32.mrf.mxu0
    %v3242 = vadd.f32 %v3097, %v3241
    %v3243 = vpop.f32.mrf.mxu0
    %3244 = vmatprep.mubr.f32.mxu0 0.0
    %3245 = vmatmul.mubr.f32.gmra.mxu0 %v2789
    %v3246 = vpop.f32.mrf.mxu0
    %v3247 = vadd.f32 %v3102, %v3246
    %v3248 = vpop.f32.mrf.mxu0
    %3249 = vmatprep.mubr.f32.mxu0 0.0
    %3250 = vmatmul.mubr.f32.gmra.mxu0 %v2790
    %v3251 = vpop.f32.mrf.mxu0
    %v3252 = vadd.f32 %v3107, %v3251
    %v3253 = vpop.f32.mrf.mxu0
    %3254 = vmatprep.mubr.f32.mxu0 0.0
    %3255 = vmatmul.mubr.f32.gmra.mxu0 %v2791
    %v3256 = vpop.f32.mrf.mxu0
    %v3257 = vadd.f32 %v3112, %v3256
    %v3258 = vpop.f32.mrf.mxu0
    %3259 = vmatprep.mubr.f32.mxu0 0.0
    %3260 = vmatmul.mubr.f32.gmra.mxu0 %v2792
    %v3261 = vpop.f32.mrf.mxu0
    %v3262 = vadd.f32 %v3117, %v3261
    %v3263 = vpop.f32.mrf.mxu0
    %3264 = vdwg.mxu0
    %3265 = vset.pattern.permute.xlu0 1
    %3266 = vperm.xlu0 %3265, %v2847
    %v3267 = vpop.permute.xlu0 %3266
    %3269 = vset.pattern.permute.xlu0 1
    %3270 = vperm.xlu0 %3269, %v2848
    %v3271 = vpop.permute.xlu0 %3270
    %3273 = vset.pattern.permute.xlu0 1
    %3274 = vperm.xlu0 %3273, %v2849
    %v3275 = vpop.permute.xlu0 %3274
    %3277 = vset.pattern.permute.xlu0 1
    %3278 = vperm.xlu0 %3277, %v2850
    %v3279 = vpop.permute.xlu0 %3278
    %3281 = vset.pattern.permute.xlu0 1
    %3282 = vperm.xlu0 %3281, %v2851
    %v3283 = vpop.permute.xlu0 %3282
    %3285 = vset.pattern.permute.xlu0 1
    %3286 = vperm.xlu0 %3285, %v2852
    %v3287 = vpop.permute.xlu0 %3286
    %3289 = vset.pattern.permute.xlu0 1
    %3290 = vperm.xlu0 %3289, %v2853
    %v3291 = vpop.permute.xlu0 %3290
    %3293 = vset.pattern.permute.xlu0 1
    %3294 = vperm.xlu0 %3293, %v2854
    %v3295 = vpop.permute.xlu0 %3294
    %3297 = vset.pattern.permute.xlu0 1
    %3298 = vperm.xlu0 %3297, %v2855
    %v3299 = vpop.permute.xlu0 %3298
    %3301 = vset.pattern.permute.xlu0 1
    %3302 = vperm.xlu0 %3301, %v2856
    %v3303 = vpop.permute.xlu0 %3302
    %3305 = vset.pattern.permute.xlu0 1
    %3306 = vperm.xlu0 %3305, %v2857
    %v3307 = vpop.permute.xlu0 %3306
    %3309 = vset.pattern.permute.xlu0 1
    %3310 = vperm.xlu0 %3309, %v2858
    %v3311 = vpop.permute.xlu0 %3310
    %3313 = vset.pattern.permute.xlu0 1
    %3314 = vperm.xlu0 %3313, %v2859
    %v3315 = vpop.permute.xlu0 %3314
    %3317 = vset.pattern.permute.xlu0 1
    %3318 = vperm.xlu0 %3317, %v2860
    %v3319 = vpop.permute.xlu0 %3318
    %3321 = vset.pattern.permute.xlu0 1
    %3322 = vperm.xlu0 %3321, %v2861
    %v3323 = vpop.permute.xlu0 %3322
    %3325 = vset.pattern.permute.xlu0 1
    %3326 = vperm.xlu0 %3325, %v2862
    %v3327 = vpop.permute.xlu0 %3326
    %v3329 = vmul.f32 %v2792, %v3267
    %v3330 = vmul.f32 %v2777, %v3271
    %v3331 = vmul.f32 %v2778, %v3275
    %v3332 = vmul.f32 %v2779, %v3279
    %v3333 = vmul.f32 %v2780, %v3283
    %v3334 = vmul.f32 %v2781, %v3287
    %v3335 = vmul.f32 %v2782, %v3291
    %v3336 = vmul.f32 %v2783, %v3295
    %v3337 = vmul.f32 %v2784, %v3299
    %v3338 = vmul.f32 %v2785, %v3303
    %v3339 = vmul.f32 %v2786, %v3307
    %v3340 = vmul.f32 %v2787, %v3311
    %v3341 = vmul.f32 %v2788, %v3315
    %v3342 = vmul.f32 %v2789, %v3319
    %v3343 = vmul.f32 %v2790, %v3323
    %v3344 = vmul.f32 %v2791, %v3327
    %s3345 = scalar_lea.vmem [#allocation2], 128
    %v3346 = vld [vmem:[%s3345] sm:$0xff]
    %v3347 = vld [vmem:[%s3345 + $0x8] sm:$0xff]
    %v3348 = vld [vmem:[%s3345 + $0x10] sm:$0xff]
    %v3349 = vld [vmem:[%s3345 + $0x18] sm:$0xff]
    %v3350 = vld [vmem:[%s3345 + $0x20] sm:$0xff]
    %v3351 = vld [vmem:[%s3345 + $0x28] sm:$0xff]
    %v3352 = vld [vmem:[%s3345 + $0x30] sm:$0xff]
    %v3353 = vld [vmem:[%s3345 + $0x38] sm:$0xff]
    %v3354 = vld [vmem:[%s3345 + $0x40] sm:$0xff]
    %v3355 = vld [vmem:[%s3345 + $0x48] sm:$0xff]
    %v3356 = vld [vmem:[%s3345 + $0x50] sm:$0xff]
    %v3357 = vld [vmem:[%s3345 + $0x58] sm:$0xff]
    %v3358 = vld [vmem:[%s3345 + $0x60] sm:$0xff]
    %v3359 = vld [vmem:[%s3345 + $0x68] sm:$0xff]
    %v3360 = vld [vmem:[%s3345 + $0x70] sm:$0xff]
    %v3361 = vld [vmem:[%s3345 + $0x78] sm:$0xff]
    %3362 = vmatprep.subr.mxu0 0.0
    %3363 = vmatpush1.msra.mxu0 %v3361
    %3364 = vmatprep.subr.mxu0 0.0
    %3365 = vmatpush1.msra.mxu0 %v3360
    %3366 = vmatprep.subr.mxu0 0.0
    %3367 = vmatpush1.msra.mxu0 %v3359
    %3368 = vmatprep.subr.mxu0 0.0
    %3369 = vmatpush1.msra.mxu0 %v3358
    %3370 = vmatprep.subr.mxu0 0.0
    %3371 = vmatpush1.msra.mxu0 %v3357
    %3372 = vmatprep.subr.mxu0 0.0
    %3373 = vmatpush1.msra.mxu0 %v3356
    %3374 = vmatprep.subr.mxu0 0.0
    %3375 = vmatpush1.msra.mxu0 %v3355
    %3376 = vmatprep.subr.mxu0 0.0
    %3377 = vmatpush1.msra.mxu0 %v3354
    %3378 = vmatprep.subr.mxu0 0.0
    %3379 = vmatpush1.msra.mxu0 %v3353
    %3380 = vmatprep.subr.mxu0 0.0
    %3381 = vmatpush1.msra.mxu0 %v3352
    %3382 = vmatprep.subr.mxu0 0.0
    %3383 = vmatpush1.msra.mxu0 %v3351
    %3384 = vmatprep.subr.mxu0 0.0
    %3385 = vmatpush1.msra.mxu0 %v3350
    %3386 = vmatprep.subr.mxu0 0.0
    %3387 = vmatpush1.msra.mxu0 %v3349
    %3388 = vmatprep.subr.mxu0 0.0
    %3389 = vmatpush1.msra.mxu0 %v3348
    %3390 = vmatprep.subr.mxu0 0.0
    %3391 = vmatpush1.msra.mxu0 %v3347
    %3392 = vmatprep.subr.mxu0 0.0
    %3393 = vmatpush1.msra.mxu0 %v3346
    %3394 = vmatprep.subr.mxu0 0.0
    %3395 = vmatpush2.msra.mxu0 0.0
    %3396 = vmatprep.subr.mxu0 0.0
    %3397 = vmatpush2.msra.mxu0 0.0
    %3398 = vmatprep.subr.mxu0 0.0
    %3399 = vmatpush2.msra.mxu0 0.0
    %3400 = vmatprep.subr.mxu0 0.0
    %3401 = vmatpush2.msra.mxu0 0.0
    %3402 = vmatprep.subr.mxu0 0.0
    %3403 = vmatpush2.msra.mxu0 0.0
    %3404 = vmatprep.subr.mxu0 0.0
    %3405 = vmatpush2.msra.mxu0 0.0
    %3406 = vmatprep.subr.mxu0 0.0
    %3407 = vmatpush2.msra.mxu0 0.0
    %3408 = vmatprep.subr.mxu0 0.0
    %3409 = vmatpush2.msra.mxu0 0.0
    %3410 = vmatprep.subr.mxu0 0.0
    %3411 = vmatpush2.msra.mxu0 0.0
    %3412 = vmatprep.subr.mxu0 0.0
    %3413 = vmatpush2.msra.mxu0 0.0
    %3414 = vmatprep.subr.mxu0 0.0
    %3415 = vmatpush2.msra.mxu0 0.0
    %3416 = vmatprep.subr.mxu0 0.0
    %3417 = vmatpush2.msra.mxu0 0.0
    %3418 = vmatprep.subr.mxu0 0.0
    %3419 = vmatpush2.msra.mxu0 0.0
    %3420 = vmatprep.subr.mxu0 0.0
    %3421 = vmatpush2.msra.mxu0 0.0
    %3422 = vmatprep.subr.mxu0 0.0
    %3423 = vmatpush2.msra.mxu0 0.0
    %3424 = vmatprep.subr.mxu0 0.0
    %3425 = vmatpush2.msra.mxu0 0.0
    %3426 = vmatprep.mubr.f32.mxu0 0.0
    %3427 = vmatmul.mubr.f32.gmra.mxu0 %v3329
    %v3428 = vpop.f32.mrf.mxu0
    %v3429 = vadd.f32 0.0, %v3428
    %v3430 = vpop.f32.mrf.mxu0
    %3431 = vmatprep.mubr.f32.mxu0 0.0
    %3432 = vmatmul.mubr.f32.gmra.mxu0 %v3330
    %v3433 = vpop.f32.mrf.mxu0
    %v3434 = vadd.f32 0.0, %v3433
    %v3435 = vpop.f32.mrf.mxu0
    %3436 = vmatprep.mubr.f32.mxu0 0.0
    %3437 = vmatmul.mubr.f32.gmra.mxu0 %v3331
    %v3438 = vpop.f32.mrf.mxu0
    %v3439 = vadd.f32 0.0, %v3438
    %v3440 = vpop.f32.mrf.mxu0
    %3441 = vmatprep.mubr.f32.mxu0 0.0
    %3442 = vmatmul.mubr.f32.gmra.mxu0 %v3332
    %v3443 = vpop.f32.mrf.mxu0
    %v3444 = vadd.f32 0.0, %v3443
    %v3445 = vpop.f32.mrf.mxu0
    %3446 = vmatprep.mubr.f32.mxu0 0.0
    %3447 = vmatmul.mubr.f32.gmra.mxu0 %v3333
    %v3448 = vpop.f32.mrf.mxu0
    %v3449 = vadd.f32 0.0, %v3448
    %v3450 = vpop.f32.mrf.mxu0
    %3451 = vmatprep.mubr.f32.mxu0 0.0
    %3452 = vmatmul.mubr.f32.gmra.mxu0 %v3334
    %v3453 = vpop.f32.mrf.mxu0
    %v3454 = vadd.f32 0.0, %v3453
    %v3455 = vpop.f32.mrf.mxu0
    %3456 = vmatprep.mubr.f32.mxu0 0.0
    %3457 = vmatmul.mubr.f32.gmra.mxu0 %v3335
    %v3458 = vpop.f32.mrf.mxu0
    %v3459 = vadd.f32 0.0, %v3458
    %v3460 = vpop.f32.mrf.mxu0
    %3461 = vmatprep.mubr.f32.mxu0 0.0
    %3462 = vmatmul.mubr.f32.gmra.mxu0 %v3336
    %v3463 = vpop.f32.mrf.mxu0
    %v3464 = vadd.f32 0.0, %v3463
    %v3465 = vpop.f32.mrf.mxu0
    %3466 = vmatprep.mubr.f32.mxu0 0.0
    %3467 = vmatmul.mubr.f32.gmra.mxu0 %v3337
    %v3468 = vpop.f32.mrf.mxu0
    %v3469 = vadd.f32 0.0, %v3468
    %v3470 = vpop.f32.mrf.mxu0
    %3471 = vmatprep.mubr.f32.mxu0 0.0
    %3472 = vmatmul.mubr.f32.gmra.mxu0 %v3338
    %v3473 = vpop.f32.mrf.mxu0
    %v3474 = vadd.f32 0.0, %v3473
    %v3475 = vpop.f32.mrf.mxu0
    %3476 = vmatprep.mubr.f32.mxu0 0.0
    %3477 = vmatmul.mubr.f32.gmra.mxu0 %v3339
    %v3478 = vpop.f32.mrf.mxu0
    %v3479 = vadd.f32 0.0, %v3478
    %v3480 = vpop.f32.mrf.mxu0
    %3481 = vmatprep.mubr.f32.mxu0 0.0
    %3482 = vmatmul.mubr.f32.gmra.mxu0 %v3340
    %v3483 = vpop.f32.mrf.mxu0
    %v3484 = vadd.f32 0.0, %v3483
    %v3485 = vpop.f32.mrf.mxu0
    %3486 = vmatprep.mubr.f32.mxu0 0.0
    %3487 = vmatmul.mubr.f32.gmra.mxu0 %v3341
    %v3488 = vpop.f32.mrf.mxu0
    %v3489 = vadd.f32 0.0, %v3488
    %v3490 = vpop.f32.mrf.mxu0
    %3491 = vmatprep.mubr.f32.mxu0 0.0
    %3492 = vmatmul.mubr.f32.gmra.mxu0 %v3342
    %v3493 = vpop.f32.mrf.mxu0
    %v3494 = vadd.f32 0.0, %v3493
    %v3495 = vpop.f32.mrf.mxu0
    %3496 = vmatprep.mubr.f32.mxu0 0.0
    %3497 = vmatmul.mubr.f32.gmra.mxu0 %v3343
    %v3498 = vpop.f32.mrf.mxu0
    %v3499 = vadd.f32 0.0, %v3498
    %v3500 = vpop.f32.mrf.mxu0
    %3501 = vmatprep.mubr.f32.mxu0 0.0
    %3502 = vmatmul.mubr.f32.gmra.mxu0 %v3344
    %v3503 = vpop.f32.mrf.mxu0
    %v3504 = vadd.f32 0.0, %v3503
    %v3505 = vpop.f32.mrf.mxu0
    %3506 = vdwg.mxu0
    %v3507 = vadd.f32 %v3187, %v3429
    %v3508 = vadd.f32 %v3192, %v3434
    %v3509 = vadd.f32 %v3197, %v3439
    %v3510 = vadd.f32 %v3202, %v3444
    %v3511 = vadd.f32 %v3207, %v3449
    %v3512 = vadd.f32 %v3212, %v3454
    %v3513 = vadd.f32 %v3217, %v3459
    %v3514 = vadd.f32 %v3222, %v3464
    %v3515 = vadd.f32 %v3227, %v3469
    %v3516 = vadd.f32 %v3232, %v3474
    %v3517 = vadd.f32 %v3237, %v3479
    %v3518 = vadd.f32 %v3242, %v3484
    %v3519 = vadd.f32 %v3247, %v3489
    %v3520 = vadd.f32 %v3252, %v3494
    %v3521 = vadd.f32 %v3257, %v3499
    %v3522 = vadd.f32 %v3262, %v3504
    %v3523 = vrot.slane %v2777, 1
    %v3524 = vrot.slane %v2778, 1
    %v3525 = vrot.slane %v2779, 1
    %v3526 = vrot.slane %v2780, 1
    %v3527 = vrot.slane %v2781, 1
    %v3528 = vrot.slane %v2782, 1
    %v3529 = vrot.slane %v2783, 1
    %v3530 = vrot.slane %v2784, 1
    %v3531 = vrot.slane %v2785, 1
    %v3532 = vrot.slane %v2786, 1
    %v3533 = vrot.slane %v2787, 1
    %v3534 = vrot.slane %v2788, 1
    %v3535 = vrot.slane %v2789, 1
    %v3536 = vrot.slane %v2790, 1
    %v3537 = vrot.slane %v2791, 1
    %v3538 = vrot.slane %v2792, 1
    %v3539 = vsel %vm839, %v3537, %v3538
    %v3540 = vsel %vm839, %v3536, %v3537
    %v3541 = vsel %vm839, %v3535, %v3536
    %v3542 = vsel %vm839, %v3534, %v3535
    %v3543 = vsel %vm839, %v3533, %v3534
    %v3544 = vsel %vm839, %v3532, %v3533
    %v3545 = vsel %vm839, %v3531, %v3532
    %v3546 = vsel %vm839, %v3530, %v3531
    %v3547 = vsel %vm839, %v3529, %v3530
    %v3548 = vsel %vm839, %v3528, %v3529
    %v3549 = vsel %vm839, %v3527, %v3528
    %v3550 = vsel %vm839, %v3526, %v3527
    %v3551 = vsel %vm839, %v3525, %v3526
    %v3552 = vsel %vm839, %v3524, %v3525
    %v3553 = vsel %vm839, %v3523, %v3524
    %v3554 = vsel %vm839, %v3538, %v3523
    %3555 = vset.pattern.permute.xlu0 2
    %3556 = vperm.xlu0 %3555, %v2847
    %v3557 = vpop.permute.xlu0 %3556
    %3559 = vset.pattern.permute.xlu0 2
    %3560 = vperm.xlu0 %3559, %v2848
    %v3561 = vpop.permute.xlu0 %3560
    %3563 = vset.pattern.permute.xlu0 2
    %3564 = vperm.xlu0 %3563, %v2849
    %v3565 = vpop.permute.xlu0 %3564
    %3567 = vset.pattern.permute.xlu0 2
    %3568 = vperm.xlu0 %3567, %v2850
    %v3569 = vpop.permute.xlu0 %3568
    %3571 = vset.pattern.permute.xlu0 2
    %3572 = vperm.xlu0 %3571, %v2851
    %v3573 = vpop.permute.xlu0 %3572
    %3575 = vset.pattern.permute.xlu0 2
    %3576 = vperm.xlu0 %3575, %v2852
    %v3577 = vpop.permute.xlu0 %3576
    %3579 = vset.pattern.permute.xlu0 2
    %3580 = vperm.xlu0 %3579, %v2853
    %v3581 = vpop.permute.xlu0 %3580
    %3583 = vset.pattern.permute.xlu0 2
    %3584 = vperm.xlu0 %3583, %v2854
    %v3585 = vpop.permute.xlu0 %3584
    %3587 = vset.pattern.permute.xlu0 2
    %3588 = vperm.xlu0 %3587, %v2855
    %v3589 = vpop.permute.xlu0 %3588
    %3591 = vset.pattern.permute.xlu0 2
    %3592 = vperm.xlu0 %3591, %v2856
    %v3593 = vpop.permute.xlu0 %3592
    %3595 = vset.pattern.permute.xlu0 2
    %3596 = vperm.xlu0 %3595, %v2857
    %v3597 = vpop.permute.xlu0 %3596
    %3599 = vset.pattern.permute.xlu0 2
    %3600 = vperm.xlu0 %3599, %v2858
    %v3601 = vpop.permute.xlu0 %3600
    %3603 = vset.pattern.permute.xlu0 2
    %3604 = vperm.xlu0 %3603, %v2859
    %v3605 = vpop.permute.xlu0 %3604
    %3607 = vset.pattern.permute.xlu0 2
    %3608 = vperm.xlu0 %3607, %v2860
    %v3609 = vpop.permute.xlu0 %3608
    %3611 = vset.pattern.permute.xlu0 2
    %3612 = vperm.xlu0 %3611, %v2861
    %v3613 = vpop.permute.xlu0 %3612
    %3615 = vset.pattern.permute.xlu0 2
    %3616 = vperm.xlu0 %3615, %v2862
    %v3617 = vpop.permute.xlu0 %3616
    %v3619 = vmul.f32 %v3554, %v3557
    %v3620 = vmul.f32 %v3553, %v3561
    %v3621 = vmul.f32 %v3552, %v3565
    %v3622 = vmul.f32 %v3551, %v3569
    %v3623 = vmul.f32 %v3550, %v3573
    %v3624 = vmul.f32 %v3549, %v3577
    %v3625 = vmul.f32 %v3548, %v3581
    %v3626 = vmul.f32 %v3547, %v3585
    %v3627 = vmul.f32 %v3546, %v3589
    %v3628 = vmul.f32 %v3545, %v3593
    %v3629 = vmul.f32 %v3544, %v3597
    %v3630 = vmul.f32 %v3543, %v3601
    %v3631 = vmul.f32 %v3542, %v3605
    %v3632 = vmul.f32 %v3541, %v3609
    %v3633 = vmul.f32 %v3540, %v3613
    %v3634 = vmul.f32 %v3539, %v3617
    %s3635 = scalar_lea.vmem [#allocation2], 256
    %v3636 = vld [vmem:[%s3635] sm:$0xff]
    %v3637 = vld [vmem:[%s3635 + $0x8] sm:$0xff]
    %v3638 = vld [vmem:[%s3635 + $0x10] sm:$0xff]
    %v3639 = vld [vmem:[%s3635 + $0x18] sm:$0xff]
    %v3640 = vld [vmem:[%s3635 + $0x20] sm:$0xff]
    %v3641 = vld [vmem:[%s3635 + $0x28] sm:$0xff]
    %v3642 = vld [vmem:[%s3635 + $0x30] sm:$0xff]
    %v3643 = vld [vmem:[%s3635 + $0x38] sm:$0xff]
    %v3644 = vld [vmem:[%s3635 + $0x40] sm:$0xff]
    %v3645 = vld [vmem:[%s3635 + $0x48] sm:$0xff]
    %v3646 = vld [vmem:[%s3635 + $0x50] sm:$0xff]
    %v3647 = vld [vmem:[%s3635 + $0x58] sm:$0xff]
    %v3648 = vld [vmem:[%s3635 + $0x60] sm:$0xff]
    %v3649 = vld [vmem:[%s3635 + $0x68] sm:$0xff]
    %v3650 = vld [vmem:[%s3635 + $0x70] sm:$0xff]
    %v3651 = vld [vmem:[%s3635 + $0x78] sm:$0xff]
    %3652 = vmatprep.subr.mxu0 0.0
    %3653 = vmatpush1.msra.mxu0 %v3651
    %3654 = vmatprep.subr.mxu0 0.0
    %3655 = vmatpush1.msra.mxu0 %v3650
    %3656 = vmatprep.subr.mxu0 0.0
    %3657 = vmatpush1.msra.mxu0 %v3649
    %3658 = vmatprep.subr.mxu0 0.0
    %3659 = vmatpush1.msra.mxu0 %v3648
    %3660 = vmatprep.subr.mxu0 0.0
    %3661 = vmatpush1.msra.mxu0 %v3647
    %3662 = vmatprep.subr.mxu0 0.0
    %3663 = vmatpush1.msra.mxu0 %v3646
    %3664 = vmatprep.subr.mxu0 0.0
    %3665 = vmatpush1.msra.mxu0 %v3645
    %3666 = vmatprep.subr.mxu0 0.0
    %3667 = vmatpush1.msra.mxu0 %v3644
    %3668 = vmatprep.subr.mxu0 0.0
    %3669 = vmatpush1.msra.mxu0 %v3643
    %3670 = vmatprep.subr.mxu0 0.0
    %3671 = vmatpush1.msra.mxu0 %v3642
    %3672 = vmatprep.subr.mxu0 0.0
    %3673 = vmatpush1.msra.mxu0 %v3641
    %3674 = vmatprep.subr.mxu0 0.0
    %3675 = vmatpush1.msra.mxu0 %v3640
    %3676 = vmatprep.subr.mxu0 0.0
    %3677 = vmatpush1.msra.mxu0 %v3639
    %3678 = vmatprep.subr.mxu0 0.0
    %3679 = vmatpush1.msra.mxu0 %v3638
    %3680 = vmatprep.subr.mxu0 0.0
    %3681 = vmatpush1.msra.mxu0 %v3637
    %3682 = vmatprep.subr.mxu0 0.0
    %3683 = vmatpush1.msra.mxu0 %v3636
    %3684 = vmatprep.subr.mxu0 0.0
    %3685 = vmatpush2.msra.mxu0 0.0
    %3686 = vmatprep.subr.mxu0 0.0
    %3687 = vmatpush2.msra.mxu0 0.0
    %3688 = vmatprep.subr.mxu0 0.0
    %3689 = vmatpush2.msra.mxu0 0.0
    %3690 = vmatprep.subr.mxu0 0.0
    %3691 = vmatpush2.msra.mxu0 0.0
    %3692 = vmatprep.subr.mxu0 0.0
    %3693 = vmatpush2.msra.mxu0 0.0
    %3694 = vmatprep.subr.mxu0 0.0
    %3695 = vmatpush2.msra.mxu0 0.0
    %3696 = vmatprep.subr.mxu0 0.0
    %3697 = vmatpush2.msra.mxu0 0.0
    %3698 = vmatprep.subr.mxu0 0.0
    %3699 = vmatpush2.msra.mxu0 0.0
    %3700 = vmatprep.subr.mxu0 0.0
    %3701 = vmatpush2.msra.mxu0 0.0
    %3702 = vmatprep.subr.mxu0 0.0
    %3703 = vmatpush2.msra.mxu0 0.0
    %3704 = vmatprep.subr.mxu0 0.0
    %3705 = vmatpush2.msra.mxu0 0.0
    %3706 = vmatprep.subr.mxu0 0.0
    %3707 = vmatpush2.msra.mxu0 0.0
    %3708 = vmatprep.subr.mxu0 0.0
    %3709 = vmatpush2.msra.mxu0 0.0
    %3710 = vmatprep.subr.mxu0 0.0
    %3711 = vmatpush2.msra.mxu0 0.0
    %3712 = vmatprep.subr.mxu0 0.0
    %3713 = vmatpush2.msra.mxu0 0.0
    %3714 = vmatprep.subr.mxu0 0.0
    %3715 = vmatpush2.msra.mxu0 0.0
    %3716 = vmatprep.mubr.f32.mxu0 0.0
    %3717 = vmatmul.mubr.f32.gmra.mxu0 %v3619
    %v3718 = vpop.f32.mrf.mxu0
    %v3719 = vadd.f32 0.0, %v3718
    %v3720 = vpop.f32.mrf.mxu0
    %3721 = vmatprep.mubr.f32.mxu0 0.0
    %3722 = vmatmul.mubr.f32.gmra.mxu0 %v3620
    %v3723 = vpop.f32.mrf.mxu0
    %v3724 = vadd.f32 0.0, %v3723
    %v3725 = vpop.f32.mrf.mxu0
    %3726 = vmatprep.mubr.f32.mxu0 0.0
    %3727 = vmatmul.mubr.f32.gmra.mxu0 %v3621
    %v3728 = vpop.f32.mrf.mxu0
    %v3729 = vadd.f32 0.0, %v3728
    %v3730 = vpop.f32.mrf.mxu0
    %3731 = vmatprep.mubr.f32.mxu0 0.0
    %3732 = vmatmul.mubr.f32.gmra.mxu0 %v3622
    %v3733 = vpop.f32.mrf.mxu0
    %v3734 = vadd.f32 0.0, %v3733
    %v3735 = vpop.f32.mrf.mxu0
    %3736 = vmatprep.mubr.f32.mxu0 0.0
    %3737 = vmatmul.mubr.f32.gmra.mxu0 %v3623
    %v3738 = vpop.f32.mrf.mxu0
    %v3739 = vadd.f32 0.0, %v3738
    %v3740 = vpop.f32.mrf.mxu0
    %3741 = vmatprep.mubr.f32.mxu0 0.0
    %3742 = vmatmul.mubr.f32.gmra.mxu0 %v3624
    %v3743 = vpop.f32.mrf.mxu0
    %v3744 = vadd.f32 0.0, %v3743
    %v3745 = vpop.f32.mrf.mxu0
    %3746 = vmatprep.mubr.f32.mxu0 0.0
    %3747 = vmatmul.mubr.f32.gmra.mxu0 %v3625
    %v3748 = vpop.f32.mrf.mxu0
    %v3749 = vadd.f32 0.0, %v3748
    %v3750 = vpop.f32.mrf.mxu0
    %3751 = vmatprep.mubr.f32.mxu0 0.0
    %3752 = vmatmul.mubr.f32.gmra.mxu0 %v3626
    %v3753 = vpop.f32.mrf.mxu0
    %v3754 = vadd.f32 0.0, %v3753
    %v3755 = vpop.f32.mrf.mxu0
    %3756 = vmatprep.mubr.f32.mxu0 0.0
    %3757 = vmatmul.mubr.f32.gmra.mxu0 %v3627
    %v3758 = vpop.f32.mrf.mxu0
    %v3759 = vadd.f32 0.0, %v3758
    %v3760 = vpop.f32.mrf.mxu0
    %3761 = vmatprep.mubr.f32.mxu0 0.0
    %3762 = vmatmul.mubr.f32.gmra.mxu0 %v3628
    %v3763 = vpop.f32.mrf.mxu0
    %v3764 = vadd.f32 0.0, %v3763
    %v3765 = vpop.f32.mrf.mxu0
    %3766 = vmatprep.mubr.f32.mxu0 0.0
    %3767 = vmatmul.mubr.f32.gmra.mxu0 %v3629
    %v3768 = vpop.f32.mrf.mxu0
    %v3769 = vadd.f32 0.0, %v3768
    %v3770 = vpop.f32.mrf.mxu0
    %3771 = vmatprep.mubr.f32.mxu0 0.0
    %3772 = vmatmul.mubr.f32.gmra.mxu0 %v3630
    %v3773 = vpop.f32.mrf.mxu0
    %v3774 = vadd.f32 0.0, %v3773
    %v3775 = vpop.f32.mrf.mxu0
    %3776 = vmatprep.mubr.f32.mxu0 0.0
    %3777 = vmatmul.mubr.f32.gmra.mxu0 %v3631
    %v3778 = vpop.f32.mrf.mxu0
    %v3779 = vadd.f32 0.0, %v3778
    %v3780 = vpop.f32.mrf.mxu0
    %3781 = vmatprep.mubr.f32.mxu0 0.0
    %3782 = vmatmul.mubr.f32.gmra.mxu0 %v3632
    %v3783 = vpop.f32.mrf.mxu0
    %v3784 = vadd.f32 0.0, %v3783
    %v3785 = vpop.f32.mrf.mxu0
    %3786 = vmatprep.mubr.f32.mxu0 0.0
    %3787 = vmatmul.mubr.f32.gmra.mxu0 %v3633
    %v3788 = vpop.f32.mrf.mxu0
    %v3789 = vadd.f32 0.0, %v3788
    %v3790 = vpop.f32.mrf.mxu0
    %3791 = vmatprep.mubr.f32.mxu0 0.0
    %3792 = vmatmul.mubr.f32.gmra.mxu0 %v3634
    %v3793 = vpop.f32.mrf.mxu0
    %v3794 = vadd.f32 0.0, %v3793
    %v3795 = vpop.f32.mrf.mxu0
    %3796 = vdwg.mxu0
    %v3797 = vadd.f32 %v3507, %v3719
    %v3798 = vadd.f32 %v3508, %v3724
    %v3799 = vadd.f32 %v3509, %v3729
    %v3800 = vadd.f32 %v3510, %v3734
    %v3801 = vadd.f32 %v3511, %v3739
    %v3802 = vadd.f32 %v3512, %v3744
    %v3803 = vadd.f32 %v3513, %v3749
    %v3804 = vadd.f32 %v3514, %v3754
    %v3805 = vadd.f32 %v3515, %v3759
    %v3806 = vadd.f32 %v3516, %v3764
    %v3807 = vadd.f32 %v3517, %v3769
    %v3808 = vadd.f32 %v3518, %v3774
    %v3809 = vadd.f32 %v3519, %v3779
    %v3810 = vadd.f32 %v3520, %v3784
    %v3811 = vadd.f32 %v3521, %v3789
    %v3812 = vadd.f32 %v3522, %v3794
    %3813 = vset.pattern.permute.xlu0 3
    %3814 = vperm.xlu0 %3813, %v2847
    %v3815 = vpop.permute.xlu0 %3814
    %3817 = vset.pattern.permute.xlu0 3
    %3818 = vperm.xlu0 %3817, %v2848
    %v3819 = vpop.permute.xlu0 %3818
    %3821 = vset.pattern.permute.xlu0 3
    %3822 = vperm.xlu0 %3821, %v2849
    %v3823 = vpop.permute.xlu0 %3822
    %3825 = vset.pattern.permute.xlu0 3
    %3826 = vperm.xlu0 %3825, %v2850
    %v3827 = vpop.permute.xlu0 %3826
    %3829 = vset.pattern.permute.xlu0 3
    %3830 = vperm.xlu0 %3829, %v2851
    %v3831 = vpop.permute.xlu0 %3830
    %3833 = vset.pattern.permute.xlu0 3
    %3834 = vperm.xlu0 %3833, %v2852
    %v3835 = vpop.permute.xlu0 %3834
    %3837 = vset.pattern.permute.xlu0 3
    %3838 = vperm.xlu0 %3837, %v2853
    %v3839 = vpop.permute.xlu0 %3838
    %3841 = vset.pattern.permute.xlu0 3
    %3842 = vperm.xlu0 %3841, %v2854
    %v3843 = vpop.permute.xlu0 %3842
    %3845 = vset.pattern.permute.xlu0 3
    %3846 = vperm.xlu0 %3845, %v2855
    %v3847 = vpop.permute.xlu0 %3846
    %3849 = vset.pattern.permute.xlu0 3
    %3850 = vperm.xlu0 %3849, %v2856
    %v3851 = vpop.permute.xlu0 %3850
    %3853 = vset.pattern.permute.xlu0 3
    %3854 = vperm.xlu0 %3853, %v2857
    %v3855 = vpop.permute.xlu0 %3854
    %3857 = vset.pattern.permute.xlu0 3
    %3858 = vperm.xlu0 %3857, %v2858
    %v3859 = vpop.permute.xlu0 %3858
    %3861 = vset.pattern.permute.xlu0 3
    %3862 = vperm.xlu0 %3861, %v2859
    %v3863 = vpop.permute.xlu0 %3862
    %3865 = vset.pattern.permute.xlu0 3
    %3866 = vperm.xlu0 %3865, %v2860
    %v3867 = vpop.permute.xlu0 %3866
    %3869 = vset.pattern.permute.xlu0 3
    %3870 = vperm.xlu0 %3869, %v2861
    %v3871 = vpop.permute.xlu0 %3870
    %3873 = vset.pattern.permute.xlu0 3
    %3874 = vperm.xlu0 %3873, %v2862
    %v3875 = vpop.permute.xlu0 %3874
    %v3877 = vmul.f32 %v2846, %v3815
    %v3878 = vmul.f32 %v2845, %v3819
    %v3879 = vmul.f32 %v2844, %v3823
    %v3880 = vmul.f32 %v2843, %v3827
    %v3881 = vmul.f32 %v2842, %v3831
    %v3882 = vmul.f32 %v2841, %v3835
    %v3883 = vmul.f32 %v2840, %v3839
    %v3884 = vmul.f32 %v2839, %v3843
    %v3885 = vmul.f32 %v2838, %v3847
    %v3886 = vmul.f32 %v2837, %v3851
    %v3887 = vmul.f32 %v2836, %v3855
    %v3888 = vmul.f32 %v2835, %v3859
    %v3889 = vmul.f32 %v2834, %v3863
    %v3890 = vmul.f32 %v2833, %v3867
    %v3891 = vmul.f32 %v2832, %v3871
    %v3892 = vmul.f32 %v2831, %v3875
    %s3893 = scalar_lea.vmem [#allocation2], 384
    %v3894 = vld [vmem:[%s3893] sm:$0xff]
    %v3895 = vld [vmem:[%s3893 + $0x8] sm:$0xff]
    %v3896 = vld [vmem:[%s3893 + $0x10] sm:$0xff]
    %v3897 = vld [vmem:[%s3893 + $0x18] sm:$0xff]
    %v3898 = vld [vmem:[%s3893 + $0x20] sm:$0xff]
    %v3899 = vld [vmem:[%s3893 + $0x28] sm:$0xff]
    %v3900 = vld [vmem:[%s3893 + $0x30] sm:$0xff]
    %v3901 = vld [vmem:[%s3893 + $0x38] sm:$0xff]
    %v3902 = vld [vmem:[%s3893 + $0x40] sm:$0xff]
    %v3903 = vld [vmem:[%s3893 + $0x48] sm:$0xff]
    %v3904 = vld [vmem:[%s3893 + $0x50] sm:$0xff]
    %v3905 = vld [vmem:[%s3893 + $0x58] sm:$0xff]
    %v3906 = vld [vmem:[%s3893 + $0x60] sm:$0xff]
    %v3907 = vld [vmem:[%s3893 + $0x68] sm:$0xff]
    %v3908 = vld [vmem:[%s3893 + $0x70] sm:$0xff]
    %v3909 = vld [vmem:[%s3893 + $0x78] sm:$0xff]
    %3910 = vmatprep.subr.mxu0 0.0
    %3911 = vmatpush1.msra.mxu0 %v3909
    %3912 = vmatprep.subr.mxu0 0.0
    %3913 = vmatpush1.msra.mxu0 %v3908
    %3914 = vmatprep.subr.mxu0 0.0
    %3915 = vmatpush1.msra.mxu0 %v3907
    %3916 = vmatprep.subr.mxu0 0.0
    %3917 = vmatpush1.msra.mxu0 %v3906
    %3918 = vmatprep.subr.mxu0 0.0
    %3919 = vmatpush1.msra.mxu0 %v3905
    %3920 = vmatprep.subr.mxu0 0.0
    %3921 = vmatpush1.msra.mxu0 %v3904
    %3922 = vmatprep.subr.mxu0 0.0
    %3923 = vmatpush1.msra.mxu0 %v3903
    %3924 = vmatprep.subr.mxu0 0.0
    %3925 = vmatpush1.msra.mxu0 %v3902
    %3926 = vmatprep.subr.mxu0 0.0
    %3927 = vmatpush1.msra.mxu0 %v3901
    %3928 = vmatprep.subr.mxu0 0.0
    %3929 = vmatpush1.msra.mxu0 %v3900
    %3930 = vmatprep.subr.mxu0 0.0
    %3931 = vmatpush1.msra.mxu0 %v3899
    %3932 = vmatprep.subr.mxu0 0.0
    %3933 = vmatpush1.msra.mxu0 %v3898
    %3934 = vmatprep.subr.mxu0 0.0
    %3935 = vmatpush1.msra.mxu0 %v3897
    %3936 = vmatprep.subr.mxu0 0.0
    %3937 = vmatpush1.msra.mxu0 %v3896
    %3938 = vmatprep.subr.mxu0 0.0
    %3939 = vmatpush1.msra.mxu0 %v3895
    %3940 = vmatprep.subr.mxu0 0.0
    %3941 = vmatpush1.msra.mxu0 %v3894
    %3942 = vmatprep.subr.mxu0 0.0
    %3943 = vmatpush2.msra.mxu0 0.0
    %3944 = vmatprep.subr.mxu0 0.0
    %3945 = vmatpush2.msra.mxu0 0.0
    %3946 = vmatprep.subr.mxu0 0.0
    %3947 = vmatpush2.msra.mxu0 0.0
    %3948 = vmatprep.subr.mxu0 0.0
    %3949 = vmatpush2.msra.mxu0 0.0
    %3950 = vmatprep.subr.mxu0 0.0
    %3951 = vmatpush2.msra.mxu0 0.0
    %3952 = vmatprep.subr.mxu0 0.0
    %3953 = vmatpush2.msra.mxu0 0.0
    %3954 = vmatprep.subr.mxu0 0.0
    %3955 = vmatpush2.msra.mxu0 0.0
    %3956 = vmatprep.subr.mxu0 0.0
    %3957 = vmatpush2.msra.mxu0 0.0
    %3958 = vmatprep.subr.mxu0 0.0
    %3959 = vmatpush2.msra.mxu0 0.0
    %3960 = vmatprep.subr.mxu0 0.0
    %3961 = vmatpush2.msra.mxu0 0.0
    %3962 = vmatprep.subr.mxu0 0.0
    %3963 = vmatpush2.msra.mxu0 0.0
    %3964 = vmatprep.subr.mxu0 0.0
    %3965 = vmatpush2.msra.mxu0 0.0
    %3966 = vmatprep.subr.mxu0 0.0
    %3967 = vmatpush2.msra.mxu0 0.0
    %3968 = vmatprep.subr.mxu0 0.0
    %3969 = vmatpush2.msra.mxu0 0.0
    %3970 = vmatprep.subr.mxu0 0.0
    %3971 = vmatpush2.msra.mxu0 0.0
    %3972 = vmatprep.subr.mxu0 0.0
    %3973 = vmatpush2.msra.mxu0 0.0
    %3974 = vmatprep.mubr.f32.mxu0 0.0
    %3975 = vmatmul.mubr.f32.gmra.mxu0 %v3877
    %v3976 = vpop.f32.mrf.mxu0
    %v3977 = vadd.f32 0.0, %v3976
    %v3978 = vpop.f32.mrf.mxu0
    %3979 = vmatprep.mubr.f32.mxu0 0.0
    %3980 = vmatmul.mubr.f32.gmra.mxu0 %v3878
    %v3981 = vpop.f32.mrf.mxu0
    %v3982 = vadd.f32 0.0, %v3981
    %v3983 = vpop.f32.mrf.mxu0
    %3984 = vmatprep.mubr.f32.mxu0 0.0
    %3985 = vmatmul.mubr.f32.gmra.mxu0 %v3879
    %v3986 = vpop.f32.mrf.mxu0
    %v3987 = vadd.f32 0.0, %v3986
    %v3988 = vpop.f32.mrf.mxu0
    %3989 = vmatprep.mubr.f32.mxu0 0.0
    %3990 = vmatmul.mubr.f32.gmra.mxu0 %v3880
    %v3991 = vpop.f32.mrf.mxu0
    %v3992 = vadd.f32 0.0, %v3991
    %v3993 = vpop.f32.mrf.mxu0
    %3994 = vmatprep.mubr.f32.mxu0 0.0
    %3995 = vmatmul.mubr.f32.gmra.mxu0 %v3881
    %v3996 = vpop.f32.mrf.mxu0
    %v3997 = vadd.f32 0.0, %v3996
    %v3998 = vpop.f32.mrf.mxu0
    %3999 = vmatprep.mubr.f32.mxu0 0.0
    %4000 = vmatmul.mubr.f32.gmra.mxu0 %v3882
    %v4001 = vpop.f32.mrf.mxu0
    %v4002 = vadd.f32 0.0, %v4001
    %v4003 = vpop.f32.mrf.mxu0
    %4004 = vmatprep.mubr.f32.mxu0 0.0
    %4005 = vmatmul.mubr.f32.gmra.mxu0 %v3883
    %v4006 = vpop.f32.mrf.mxu0
    %v4007 = vadd.f32 0.0, %v4006
    %v4008 = vpop.f32.mrf.mxu0
    %4009 = vmatprep.mubr.f32.mxu0 0.0
    %4010 = vmatmul.mubr.f32.gmra.mxu0 %v3884
    %v4011 = vpop.f32.mrf.mxu0
    %v4012 = vadd.f32 0.0, %v4011
    %v4013 = vpop.f32.mrf.mxu0
    %4014 = vmatprep.mubr.f32.mxu0 0.0
    %4015 = vmatmul.mubr.f32.gmra.mxu0 %v3885
    %v4016 = vpop.f32.mrf.mxu0
    %v4017 = vadd.f32 0.0, %v4016
    %v4018 = vpop.f32.mrf.mxu0
    %4019 = vmatprep.mubr.f32.mxu0 0.0
    %4020 = vmatmul.mubr.f32.gmra.mxu0 %v3886
    %v4021 = vpop.f32.mrf.mxu0
    %v4022 = vadd.f32 0.0, %v4021
    %v4023 = vpop.f32.mrf.mxu0
    %4024 = vmatprep.mubr.f32.mxu0 0.0
    %4025 = vmatmul.mubr.f32.gmra.mxu0 %v3887
    %v4026 = vpop.f32.mrf.mxu0
    %v4027 = vadd.f32 0.0, %v4026
    %v4028 = vpop.f32.mrf.mxu0
    %4029 = vmatprep.mubr.f32.mxu0 0.0
    %4030 = vmatmul.mubr.f32.gmra.mxu0 %v3888
    %v4031 = vpop.f32.mrf.mxu0
    %v4032 = vadd.f32 0.0, %v4031
    %v4033 = vpop.f32.mrf.mxu0
    %4034 = vmatprep.mubr.f32.mxu0 0.0
    %4035 = vmatmul.mubr.f32.gmra.mxu0 %v3889
    %v4036 = vpop.f32.mrf.mxu0
    %v4037 = vadd.f32 0.0, %v4036
    %v4038 = vpop.f32.mrf.mxu0
    %4039 = vmatprep.mubr.f32.mxu0 0.0
    %4040 = vmatmul.mubr.f32.gmra.mxu0 %v3890
    %v4041 = vpop.f32.mrf.mxu0
    %v4042 = vadd.f32 0.0, %v4041
    %v4043 = vpop.f32.mrf.mxu0
    %4044 = vmatprep.mubr.f32.mxu0 0.0
    %4045 = vmatmul.mubr.f32.gmra.mxu0 %v3891
    %v4046 = vpop.f32.mrf.mxu0
    %v4047 = vadd.f32 0.0, %v4046
    %v4048 = vpop.f32.mrf.mxu0
    %4049 = vmatprep.mubr.f32.mxu0 0.0
    %4050 = vmatmul.mubr.f32.gmra.mxu0 %v3892
    %v4051 = vpop.f32.mrf.mxu0
    %v4052 = vadd.f32 0.0, %v4051
    %v4053 = vpop.f32.mrf.mxu0
    %4054 = vdwg.mxu0
    %v4055 = vadd.f32 %v3797, %v3977
    %v4056 = vadd.f32 %v3798, %v3982
    %v4057 = vadd.f32 %v3799, %v3987
    %v4058 = vadd.f32 %v3800, %v3992
    %v4059 = vadd.f32 %v3801, %v3997
    %v4060 = vadd.f32 %v3802, %v4002
    %v4061 = vadd.f32 %v3803, %v4007
    %v4062 = vadd.f32 %v3804, %v4012
    %v4063 = vadd.f32 %v3805, %v4017
    %v4064 = vadd.f32 %v3806, %v4022
    %v4065 = vadd.f32 %v3807, %v4027
    %v4066 = vadd.f32 %v3808, %v4032
    %v4067 = vadd.f32 %v3809, %v4037
    %v4068 = vadd.f32 %v3810, %v4042
    %v4069 = vadd.f32 %v3811, %v4047
    %v4070 = vadd.f32 %v3812, %v4052
    %4071 = vset.pattern.permute.xlu0 4
    %4072 = vperm.xlu0 %4071, %v2847
    %v4073 = vpop.permute.xlu0 %4072
    %4075 = vset.pattern.permute.xlu0 4
    %4076 = vperm.xlu0 %4075, %v2848
    %v4077 = vpop.permute.xlu0 %4076
    %4079 = vset.pattern.permute.xlu0 4
    %4080 = vperm.xlu0 %4079, %v2849
    %v4081 = vpop.permute.xlu0 %4080
    %4083 = vset.pattern.permute.xlu0 4
    %4084 = vperm.xlu0 %4083, %v2850
    %v4085 = vpop.permute.xlu0 %4084
    %4087 = vset.pattern.permute.xlu0 4
    %4088 = vperm.xlu0 %4087, %v2851
    %v4089 = vpop.permute.xlu0 %4088
    %4091 = vset.pattern.permute.xlu0 4
    %4092 = vperm.xlu0 %4091, %v2852
    %v4093 = vpop.permute.xlu0 %4092
    %4095 = vset.pattern.permute.xlu0 4
    %4096 = vperm.xlu0 %4095, %v2853
    %v4097 = vpop.permute.xlu0 %4096
    %4099 = vset.pattern.permute.xlu0 4
    %4100 = vperm.xlu0 %4099, %v2854
    %v4101 = vpop.permute.xlu0 %4100
    %4103 = vset.pattern.permute.xlu0 4
    %4104 = vperm.xlu0 %4103, %v2855
    %v4105 = vpop.permute.xlu0 %4104
    %4107 = vset.pattern.permute.xlu0 4
    %4108 = vperm.xlu0 %4107, %v2856
    %v4109 = vpop.permute.xlu0 %4108
    %4111 = vset.pattern.permute.xlu0 4
    %4112 = vperm.xlu0 %4111, %v2857
    %v4113 = vpop.permute.xlu0 %4112
    %4115 = vset.pattern.permute.xlu0 4
    %4116 = vperm.xlu0 %4115, %v2858
    %v4117 = vpop.permute.xlu0 %4116
    %4119 = vset.pattern.permute.xlu0 4
    %4120 = vperm.xlu0 %4119, %v2859
    %v4121 = vpop.permute.xlu0 %4120
    %4123 = vset.pattern.permute.xlu0 4
    %4124 = vperm.xlu0 %4123, %v2860
    %v4125 = vpop.permute.xlu0 %4124
    %4127 = vset.pattern.permute.xlu0 4
    %4128 = vperm.xlu0 %4127, %v2861
    %v4129 = vpop.permute.xlu0 %4128
    %4131 = vset.pattern.permute.xlu0 4
    %4132 = vperm.xlu0 %4131, %v2862
    %v4133 = vpop.permute.xlu0 %4132
    %v4135 = vmul.f32 %v3553, %v4073
    %v4136 = vmul.f32 %v3552, %v4077
    %v4137 = vmul.f32 %v3551, %v4081
    %v4138 = vmul.f32 %v3550, %v4085
    %v4139 = vmul.f32 %v3549, %v4089
    %v4140 = vmul.f32 %v3548, %v4093
    %v4141 = vmul.f32 %v3547, %v4097
    %v4142 = vmul.f32 %v3546, %v4101
    %v4143 = vmul.f32 %v3545, %v4105
    %v4144 = vmul.f32 %v3544, %v4109
    %v4145 = vmul.f32 %v3543, %v4113
    %v4146 = vmul.f32 %v3542, %v4117
    %v4147 = vmul.f32 %v3541, %v4121
    %v4148 = vmul.f32 %v3540, %v4125
    %v4149 = vmul.f32 %v3539, %v4129
    %v4150 = vmul.f32 %v3554, %v4133
    %s4151 = scalar_lea.vmem [#allocation2], 640
    %v4152 = vld [vmem:[%s4151] sm:$0xff]
    %v4153 = vld [vmem:[%s4151 + $0x8] sm:$0xff]
    %v4154 = vld [vmem:[%s4151 + $0x10] sm:$0xff]
    %v4155 = vld [vmem:[%s4151 + $0x18] sm:$0xff]
    %v4156 = vld [vmem:[%s4151 + $0x20] sm:$0xff]
    %v4157 = vld [vmem:[%s4151 + $0x28] sm:$0xff]
    %v4158 = vld [vmem:[%s4151 + $0x30] sm:$0xff]
    %v4159 = vld [vmem:[%s4151 + $0x38] sm:$0xff]
    %v4160 = vld [vmem:[%s4151 + $0x40] sm:$0xff]
    %v4161 = vld [vmem:[%s4151 + $0x48] sm:$0xff]
    %v4162 = vld [vmem:[%s4151 + $0x50] sm:$0xff]
    %v4163 = vld [vmem:[%s4151 + $0x58] sm:$0xff]
    %v4164 = vld [vmem:[%s4151 + $0x60] sm:$0xff]
    %v4165 = vld [vmem:[%s4151 + $0x68] sm:$0xff]
    %v4166 = vld [vmem:[%s4151 + $0x70] sm:$0xff]
    %v4167 = vld [vmem:[%s4151 + $0x78] sm:$0xff]
    %4168 = vmatprep.subr.mxu0 0.0
    %4169 = vmatpush1.msra.mxu0 %v4167
    %4170 = vmatprep.subr.mxu0 0.0
    %4171 = vmatpush1.msra.mxu0 %v4166
    %4172 = vmatprep.subr.mxu0 0.0
    %4173 = vmatpush1.msra.mxu0 %v4165
    %4174 = vmatprep.subr.mxu0 0.0
    %4175 = vmatpush1.msra.mxu0 %v4164
    %4176 = vmatprep.subr.mxu0 0.0
    %4177 = vmatpush1.msra.mxu0 %v4163
    %4178 = vmatprep.subr.mxu0 0.0
    %4179 = vmatpush1.msra.mxu0 %v4162
    %4180 = vmatprep.subr.mxu0 0.0
    %4181 = vmatpush1.msra.mxu0 %v4161
    %4182 = vmatprep.subr.mxu0 0.0
    %4183 = vmatpush1.msra.mxu0 %v4160
    %4184 = vmatprep.subr.mxu0 0.0
    %4185 = vmatpush1.msra.mxu0 %v4159
    %4186 = vmatprep.subr.mxu0 0.0
    %4187 = vmatpush1.msra.mxu0 %v4158
    %4188 = vmatprep.subr.mxu0 0.0
    %4189 = vmatpush1.msra.mxu0 %v4157
    %4190 = vmatprep.subr.mxu0 0.0
    %4191 = vmatpush1.msra.mxu0 %v4156
    %4192 = vmatprep.subr.mxu0 0.0
    %4193 = vmatpush1.msra.mxu0 %v4155
    %4194 = vmatprep.subr.mxu0 0.0
    %4195 = vmatpush1.msra.mxu0 %v4154
    %4196 = vmatprep.subr.mxu0 0.0
    %4197 = vmatpush1.msra.mxu0 %v4153
    %4198 = vmatprep.subr.mxu0 0.0
    %4199 = vmatpush1.msra.mxu0 %v4152
    %4200 = vmatprep.subr.mxu0 0.0
    %4201 = vmatpush2.msra.mxu0 0.0
    %4202 = vmatprep.subr.mxu0 0.0
    %4203 = vmatpush2.msra.mxu0 0.0
    %4204 = vmatprep.subr.mxu0 0.0
    %4205 = vmatpush2.msra.mxu0 0.0
    %4206 = vmatprep.subr.mxu0 0.0
    %4207 = vmatpush2.msra.mxu0 0.0
    %4208 = vmatprep.subr.mxu0 0.0
    %4209 = vmatpush2.msra.mxu0 0.0
    %4210 = vmatprep.subr.mxu0 0.0
    %4211 = vmatpush2.msra.mxu0 0.0
    %4212 = vmatprep.subr.mxu0 0.0
    %4213 = vmatpush2.msra.mxu0 0.0
    %4214 = vmatprep.subr.mxu0 0.0
    %4215 = vmatpush2.msra.mxu0 0.0
    %4216 = vmatprep.subr.mxu0 0.0
    %4217 = vmatpush2.msra.mxu0 0.0
    %4218 = vmatprep.subr.mxu0 0.0
    %4219 = vmatpush2.msra.mxu0 0.0
    %4220 = vmatprep.subr.mxu0 0.0
    %4221 = vmatpush2.msra.mxu0 0.0
    %4222 = vmatprep.subr.mxu0 0.0
    %4223 = vmatpush2.msra.mxu0 0.0
    %4224 = vmatprep.subr.mxu0 0.0
    %4225 = vmatpush2.msra.mxu0 0.0
    %4226 = vmatprep.subr.mxu0 0.0
    %4227 = vmatpush2.msra.mxu0 0.0
    %4228 = vmatprep.subr.mxu0 0.0
    %4229 = vmatpush2.msra.mxu0 0.0
    %4230 = vmatprep.subr.mxu0 0.0
    %4231 = vmatpush2.msra.mxu0 0.0
    %4232 = vmatprep.mubr.f32.mxu0 0.0
    %4233 = vmatmul.mubr.f32.gmra.mxu0 %v4135
    %v4234 = vpop.f32.mrf.mxu0
    %v4235 = vadd.f32 0.0, %v4234
    %v4236 = vpop.f32.mrf.mxu0
    %4237 = vmatprep.mubr.f32.mxu0 0.0
    %4238 = vmatmul.mubr.f32.gmra.mxu0 %v4136
    %v4239 = vpop.f32.mrf.mxu0
    %v4240 = vadd.f32 0.0, %v4239
    %v4241 = vpop.f32.mrf.mxu0
    %4242 = vmatprep.mubr.f32.mxu0 0.0
    %4243 = vmatmul.mubr.f32.gmra.mxu0 %v4137
    %v4244 = vpop.f32.mrf.mxu0
    %v4245 = vadd.f32 0.0, %v4244
    %v4246 = vpop.f32.mrf.mxu0
    %4247 = vmatprep.mubr.f32.mxu0 0.0
    %4248 = vmatmul.mubr.f32.gmra.mxu0 %v4138
    %v4249 = vpop.f32.mrf.mxu0
    %v4250 = vadd.f32 0.0, %v4249
    %v4251 = vpop.f32.mrf.mxu0
    %4252 = vmatprep.mubr.f32.mxu0 0.0
    %4253 = vmatmul.mubr.f32.gmra.mxu0 %v4139
    %v4254 = vpop.f32.mrf.mxu0
    %v4255 = vadd.f32 0.0, %v4254
    %v4256 = vpop.f32.mrf.mxu0
    %4257 = vmatprep.mubr.f32.mxu0 0.0
    %4258 = vmatmul.mubr.f32.gmra.mxu0 %v4140
    %v4259 = vpop.f32.mrf.mxu0
    %v4260 = vadd.f32 0.0, %v4259
    %v4261 = vpop.f32.mrf.mxu0
    %4262 = vmatprep.mubr.f32.mxu0 0.0
    %4263 = vmatmul.mubr.f32.gmra.mxu0 %v4141
    %v4264 = vpop.f32.mrf.mxu0
    %v4265 = vadd.f32 0.0, %v4264
    %v4266 = vpop.f32.mrf.mxu0
    %4267 = vmatprep.mubr.f32.mxu0 0.0
    %4268 = vmatmul.mubr.f32.gmra.mxu0 %v4142
    %v4269 = vpop.f32.mrf.mxu0
    %v4270 = vadd.f32 0.0, %v4269
    %v4271 = vpop.f32.mrf.mxu0
    %4272 = vmatprep.mubr.f32.mxu0 0.0
    %4273 = vmatmul.mubr.f32.gmra.mxu0 %v4143
    %v4274 = vpop.f32.mrf.mxu0
    %v4275 = vadd.f32 0.0, %v4274
    %v4276 = vpop.f32.mrf.mxu0
    %4277 = vmatprep.mubr.f32.mxu0 0.0
    %4278 = vmatmul.mubr.f32.gmra.mxu0 %v4144
    %v4279 = vpop.f32.mrf.mxu0
    %v4280 = vadd.f32 0.0, %v4279
    %v4281 = vpop.f32.mrf.mxu0
    %4282 = vmatprep.mubr.f32.mxu0 0.0
    %4283 = vmatmul.mubr.f32.gmra.mxu0 %v4145
    %v4284 = vpop.f32.mrf.mxu0
    %v4285 = vadd.f32 0.0, %v4284
    %v4286 = vpop.f32.mrf.mxu0
    %4287 = vmatprep.mubr.f32.mxu0 0.0
    %4288 = vmatmul.mubr.f32.gmra.mxu0 %v4146
    %v4289 = vpop.f32.mrf.mxu0
    %v4290 = vadd.f32 0.0, %v4289
    %v4291 = vpop.f32.mrf.mxu0
    %4292 = vmatprep.mubr.f32.mxu0 0.0
    %4293 = vmatmul.mubr.f32.gmra.mxu0 %v4147
    %v4294 = vpop.f32.mrf.mxu0
    %v4295 = vadd.f32 0.0, %v4294
    %v4296 = vpop.f32.mrf.mxu0
    %4297 = vmatprep.mubr.f32.mxu0 0.0
    %4298 = vmatmul.mubr.f32.gmra.mxu0 %v4148
    %v4299 = vpop.f32.mrf.mxu0
    %v4300 = vadd.f32 0.0, %v4299
    %v4301 = vpop.f32.mrf.mxu0
    %4302 = vmatprep.mubr.f32.mxu0 0.0
    %4303 = vmatmul.mubr.f32.gmra.mxu0 %v4149
    %v4304 = vpop.f32.mrf.mxu0
    %v4305 = vadd.f32 0.0, %v4304
    %v4306 = vpop.f32.mrf.mxu0
    %4307 = vmatprep.mubr.f32.mxu0 0.0
    %4308 = vmatmul.mubr.f32.gmra.mxu0 %v4150
    %v4309 = vpop.f32.mrf.mxu0
    %v4310 = vadd.f32 0.0, %v4309
    %v4311 = vpop.f32.mrf.mxu0
    %4312 = vdwg.mxu0
    %v4313 = vadd.f32 %v4055, %v4235
    %v4314 = vadd.f32 %v4056, %v4240
    %v4315 = vadd.f32 %v4057, %v4245
    %v4316 = vadd.f32 %v4058, %v4250
    %v4317 = vadd.f32 %v4059, %v4255
    %v4318 = vadd.f32 %v4060, %v4260
    %v4319 = vadd.f32 %v4061, %v4265
    %v4320 = vadd.f32 %v4062, %v4270
    %v4321 = vadd.f32 %v4063, %v4275
    %v4322 = vadd.f32 %v4064, %v4280
    %v4323 = vadd.f32 %v4065, %v4285
    %v4324 = vadd.f32 %v4066, %v4290
    %v4325 = vadd.f32 %v4067, %v4295
    %v4326 = vadd.f32 %v4068, %v4300
    %v4327 = vadd.f32 %v4069, %v4305
    %v4328 = vadd.f32 %v4070, %v4310
    %4329 = vset.pattern.permute.xlu0 5
    %4330 = vperm.xlu0 %4329, %v2847
    %v4331 = vpop.permute.xlu0 %4330
    %4333 = vset.pattern.permute.xlu0 5
    %4334 = vperm.xlu0 %4333, %v2848
    %v4335 = vpop.permute.xlu0 %4334
    %4337 = vset.pattern.permute.xlu0 5
    %4338 = vperm.xlu0 %4337, %v2849
    %v4339 = vpop.permute.xlu0 %4338
    %4341 = vset.pattern.permute.xlu0 5
    %4342 = vperm.xlu0 %4341, %v2850
    %v4343 = vpop.permute.xlu0 %4342
    %4345 = vset.pattern.permute.xlu0 5
    %4346 = vperm.xlu0 %4345, %v2851
    %v4347 = vpop.permute.xlu0 %4346
    %4349 = vset.pattern.permute.xlu0 5
    %4350 = vperm.xlu0 %4349, %v2852
    %v4351 = vpop.permute.xlu0 %4350
    %4353 = vset.pattern.permute.xlu0 5
    %4354 = vperm.xlu0 %4353, %v2853
    %v4355 = vpop.permute.xlu0 %4354
    %4357 = vset.pattern.permute.xlu0 5
    %4358 = vperm.xlu0 %4357, %v2854
    %v4359 = vpop.permute.xlu0 %4358
    %4361 = vset.pattern.permute.xlu0 5
    %4362 = vperm.xlu0 %4361, %v2855
    %v4363 = vpop.permute.xlu0 %4362
    %4365 = vset.pattern.permute.xlu0 5
    %4366 = vperm.xlu0 %4365, %v2856
    %v4367 = vpop.permute.xlu0 %4366
    %4369 = vset.pattern.permute.xlu0 5
    %4370 = vperm.xlu0 %4369, %v2857
    %v4371 = vpop.permute.xlu0 %4370
    %4373 = vset.pattern.permute.xlu0 5
    %4374 = vperm.xlu0 %4373, %v2858
    %v4375 = vpop.permute.xlu0 %4374
    %4377 = vset.pattern.permute.xlu0 5
    %4378 = vperm.xlu0 %4377, %v2859
    %v4379 = vpop.permute.xlu0 %4378
    %4381 = vset.pattern.permute.xlu0 5
    %4382 = vperm.xlu0 %4381, %v2860
    %v4383 = vpop.permute.xlu0 %4382
    %4385 = vset.pattern.permute.xlu0 5
    %4386 = vperm.xlu0 %4385, %v2861
    %v4387 = vpop.permute.xlu0 %4386
    %4389 = vset.pattern.permute.xlu0 5
    %4390 = vperm.xlu0 %4389, %v2862
    %v4391 = vpop.permute.xlu0 %4390
    %v4393 = vmul.f32 %v2845, %v4331
    %v4394 = vmul.f32 %v2844, %v4335
    %v4395 = vmul.f32 %v2843, %v4339
    %v4396 = vmul.f32 %v2842, %v4343
    %v4397 = vmul.f32 %v2841, %v4347
    %v4398 = vmul.f32 %v2840, %v4351
    %v4399 = vmul.f32 %v2839, %v4355
    %v4400 = vmul.f32 %v2838, %v4359
    %v4401 = vmul.f32 %v2837, %v4363
    %v4402 = vmul.f32 %v2836, %v4367
    %v4403 = vmul.f32 %v2835, %v4371
    %v4404 = vmul.f32 %v2834, %v4375
    %v4405 = vmul.f32 %v2833, %v4379
    %v4406 = vmul.f32 %v2832, %v4383
    %v4407 = vmul.f32 %v2831, %v4387
    %v4408 = vmul.f32 %v2846, %v4391
    %s4409 = scalar_lea.vmem [#allocation2], 768
    %v4410 = vld [vmem:[%s4409] sm:$0xff]
    %v4411 = vld [vmem:[%s4409 + $0x8] sm:$0xff]
    %v4412 = vld [vmem:[%s4409 + $0x10] sm:$0xff]
    %v4413 = vld [vmem:[%s4409 + $0x18] sm:$0xff]
    %v4414 = vld [vmem:[%s4409 + $0x20] sm:$0xff]
    %v4415 = vld [vmem:[%s4409 + $0x28] sm:$0xff]
    %v4416 = vld [vmem:[%s4409 + $0x30] sm:$0xff]
    %v4417 = vld [vmem:[%s4409 + $0x38] sm:$0xff]
    %v4418 = vld [vmem:[%s4409 + $0x40] sm:$0xff]
    %v4419 = vld [vmem:[%s4409 + $0x48] sm:$0xff]
    %v4420 = vld [vmem:[%s4409 + $0x50] sm:$0xff]
    %v4421 = vld [vmem:[%s4409 + $0x58] sm:$0xff]
    %v4422 = vld [vmem:[%s4409 + $0x60] sm:$0xff]
    %v4423 = vld [vmem:[%s4409 + $0x68] sm:$0xff]
    %v4424 = vld [vmem:[%s4409 + $0x70] sm:$0xff]
    %v4425 = vld [vmem:[%s4409 + $0x78] sm:$0xff]
    %4426 = vmatprep.subr.mxu0 0.0
    %4427 = vmatpush1.msra.mxu0 %v4425
    %4428 = vmatprep.subr.mxu0 0.0
    %4429 = vmatpush1.msra.mxu0 %v4424
    %4430 = vmatprep.subr.mxu0 0.0
    %4431 = vmatpush1.msra.mxu0 %v4423
    %4432 = vmatprep.subr.mxu0 0.0
    %4433 = vmatpush1.msra.mxu0 %v4422
    %4434 = vmatprep.subr.mxu0 0.0
    %4435 = vmatpush1.msra.mxu0 %v4421
    %4436 = vmatprep.subr.mxu0 0.0
    %4437 = vmatpush1.msra.mxu0 %v4420
    %4438 = vmatprep.subr.mxu0 0.0
    %4439 = vmatpush1.msra.mxu0 %v4419
    %4440 = vmatprep.subr.mxu0 0.0
    %4441 = vmatpush1.msra.mxu0 %v4418
    %4442 = vmatprep.subr.mxu0 0.0
    %4443 = vmatpush1.msra.mxu0 %v4417
    %4444 = vmatprep.subr.mxu0 0.0
    %4445 = vmatpush1.msra.mxu0 %v4416
    %4446 = vmatprep.subr.mxu0 0.0
    %4447 = vmatpush1.msra.mxu0 %v4415
    %4448 = vmatprep.subr.mxu0 0.0
    %4449 = vmatpush1.msra.mxu0 %v4414
    %4450 = vmatprep.subr.mxu0 0.0
    %4451 = vmatpush1.msra.mxu0 %v4413
    %4452 = vmatprep.subr.mxu0 0.0
    %4453 = vmatpush1.msra.mxu0 %v4412
    %4454 = vmatprep.subr.mxu0 0.0
    %4455 = vmatpush1.msra.mxu0 %v4411
    %4456 = vmatprep.subr.mxu0 0.0
    %4457 = vmatpush1.msra.mxu0 %v4410
    %4458 = vmatprep.subr.mxu0 0.0
    %4459 = vmatpush2.msra.mxu0 0.0
    %4460 = vmatprep.subr.mxu0 0.0
    %4461 = vmatpush2.msra.mxu0 0.0
    %4462 = vmatprep.subr.mxu0 0.0
    %4463 = vmatpush2.msra.mxu0 0.0
    %4464 = vmatprep.subr.mxu0 0.0
    %4465 = vmatpush2.msra.mxu0 0.0
    %4466 = vmatprep.subr.mxu0 0.0
    %4467 = vmatpush2.msra.mxu0 0.0
    %4468 = vmatprep.subr.mxu0 0.0
    %4469 = vmatpush2.msra.mxu0 0.0
    %4470 = vmatprep.subr.mxu0 0.0
    %4471 = vmatpush2.msra.mxu0 0.0
    %4472 = vmatprep.subr.mxu0 0.0
    %4473 = vmatpush2.msra.mxu0 0.0
    %4474 = vmatprep.subr.mxu0 0.0
    %4475 = vmatpush2.msra.mxu0 0.0
    %4476 = vmatprep.subr.mxu0 0.0
    %4477 = vmatpush2.msra.mxu0 0.0
    %4478 = vmatprep.subr.mxu0 0.0
    %4479 = vmatpush2.msra.mxu0 0.0
    %4480 = vmatprep.subr.mxu0 0.0
    %4481 = vmatpush2.msra.mxu0 0.0
    %4482 = vmatprep.subr.mxu0 0.0
    %4483 = vmatpush2.msra.mxu0 0.0
    %4484 = vmatprep.subr.mxu0 0.0
    %4485 = vmatpush2.msra.mxu0 0.0
    %4486 = vmatprep.subr.mxu0 0.0
    %4487 = vmatpush2.msra.mxu0 0.0
    %4488 = vmatprep.subr.mxu0 0.0
    %4489 = vmatpush2.msra.mxu0 0.0
    %4490 = vmatprep.mubr.f32.mxu0 0.0
    %4491 = vmatmul.mubr.f32.gmra.mxu0 %v4393
    %v4492 = vpop.f32.mrf.mxu0
    %v4493 = vadd.f32 0.0, %v4492
    %v4494 = vpop.f32.mrf.mxu0
    %4495 = vmatprep.mubr.f32.mxu0 0.0
    %4496 = vmatmul.mubr.f32.gmra.mxu0 %v4394
    %v4497 = vpop.f32.mrf.mxu0
    %v4498 = vadd.f32 0.0, %v4497
    %v4499 = vpop.f32.mrf.mxu0
    %4500 = vmatprep.mubr.f32.mxu0 0.0
    %4501 = vmatmul.mubr.f32.gmra.mxu0 %v4395
    %v4502 = vpop.f32.mrf.mxu0
    %v4503 = vadd.f32 0.0, %v4502
    %v4504 = vpop.f32.mrf.mxu0
    %4505 = vmatprep.mubr.f32.mxu0 0.0
    %4506 = vmatmul.mubr.f32.gmra.mxu0 %v4396
    %v4507 = vpop.f32.mrf.mxu0
    %v4508 = vadd.f32 0.0, %v4507
    %v4509 = vpop.f32.mrf.mxu0
    %4510 = vmatprep.mubr.f32.mxu0 0.0
    %4511 = vmatmul.mubr.f32.gmra.mxu0 %v4397
    %v4512 = vpop.f32.mrf.mxu0
    %v4513 = vadd.f32 0.0, %v4512
    %v4514 = vpop.f32.mrf.mxu0
    %4515 = vmatprep.mubr.f32.mxu0 0.0
    %4516 = vmatmul.mubr.f32.gmra.mxu0 %v4398
    %v4517 = vpop.f32.mrf.mxu0
    %v4518 = vadd.f32 0.0, %v4517
    %v4519 = vpop.f32.mrf.mxu0
    %4520 = vmatprep.mubr.f32.mxu0 0.0
    %4521 = vmatmul.mubr.f32.gmra.mxu0 %v4399
    %v4522 = vpop.f32.mrf.mxu0
    %v4523 = vadd.f32 0.0, %v4522
    %v4524 = vpop.f32.mrf.mxu0
    %4525 = vmatprep.mubr.f32.mxu0 0.0
    %4526 = vmatmul.mubr.f32.gmra.mxu0 %v4400
    %v4527 = vpop.f32.mrf.mxu0
    %v4528 = vadd.f32 0.0, %v4527
    %v4529 = vpop.f32.mrf.mxu0
    %4530 = vmatprep.mubr.f32.mxu0 0.0
    %4531 = vmatmul.mubr.f32.gmra.mxu0 %v4401
    %v4532 = vpop.f32.mrf.mxu0
    %v4533 = vadd.f32 0.0, %v4532
    %v4534 = vpop.f32.mrf.mxu0
    %4535 = vmatprep.mubr.f32.mxu0 0.0
    %4536 = vmatmul.mubr.f32.gmra.mxu0 %v4402
    %v4537 = vpop.f32.mrf.mxu0
    %v4538 = vadd.f32 0.0, %v4537
    %v4539 = vpop.f32.mrf.mxu0
    %4540 = vmatprep.mubr.f32.mxu0 0.0
    %4541 = vmatmul.mubr.f32.gmra.mxu0 %v4403
    %v4542 = vpop.f32.mrf.mxu0
    %v4543 = vadd.f32 0.0, %v4542
    %v4544 = vpop.f32.mrf.mxu0
    %4545 = vmatprep.mubr.f32.mxu0 0.0
    %4546 = vmatmul.mubr.f32.gmra.mxu0 %v4404
    %v4547 = vpop.f32.mrf.mxu0
    %v4548 = vadd.f32 0.0, %v4547
    %v4549 = vpop.f32.mrf.mxu0
    %4550 = vmatprep.mubr.f32.mxu0 0.0
    %4551 = vmatmul.mubr.f32.gmra.mxu0 %v4405
    %v4552 = vpop.f32.mrf.mxu0
    %v4553 = vadd.f32 0.0, %v4552
    %v4554 = vpop.f32.mrf.mxu0
    %4555 = vmatprep.mubr.f32.mxu0 0.0
    %4556 = vmatmul.mubr.f32.gmra.mxu0 %v4406
    %v4557 = vpop.f32.mrf.mxu0
    %v4558 = vadd.f32 0.0, %v4557
    %v4559 = vpop.f32.mrf.mxu0
    %4560 = vmatprep.mubr.f32.mxu0 0.0
    %4561 = vmatmul.mubr.f32.gmra.mxu0 %v4407
    %v4562 = vpop.f32.mrf.mxu0
    %v4563 = vadd.f32 0.0, %v4562
    %v4564 = vpop.f32.mrf.mxu0
    %4565 = vmatprep.mubr.f32.mxu0 0.0
    %4566 = vmatmul.mubr.f32.gmra.mxu0 %v4408
    %v4567 = vpop.f32.mrf.mxu0
    %v4568 = vadd.f32 0.0, %v4567
    %v4569 = vpop.f32.mrf.mxu0
    %4570 = vdwg.mxu0
    %v4571 = vadd.f32 %v4313, %v4493
    %v4572 = vadd.f32 %v4314, %v4498
    %v4573 = vadd.f32 %v4315, %v4503
    %v4574 = vadd.f32 %v4316, %v4508
    %v4575 = vadd.f32 %v4317, %v4513
    %v4576 = vadd.f32 %v4318, %v4518
    %v4577 = vadd.f32 %v4319, %v4523
    %v4578 = vadd.f32 %v4320, %v4528
    %v4579 = vadd.f32 %v4321, %v4533
    %v4580 = vadd.f32 %v4322, %v4538
    %v4581 = vadd.f32 %v4323, %v4543
    %v4582 = vadd.f32 %v4324, %v4548
    %v4583 = vadd.f32 %v4325, %v4553
    %v4584 = vadd.f32 %v4326, %v4558
    %v4585 = vadd.f32 %v4327, %v4563
    %v4586 = vadd.f32 %v4328, %v4568
    %4587 = vset.pattern.permute.xlu0 6
    %4588 = vperm.xlu0 %4587, %v2847
    %v4589 = vpop.permute.xlu0 %4588
    %4591 = vset.pattern.permute.xlu0 6
    %4592 = vperm.xlu0 %4591, %v2848
    %v4593 = vpop.permute.xlu0 %4592
    %4595 = vset.pattern.permute.xlu0 6
    %4596 = vperm.xlu0 %4595, %v2849
    %v4597 = vpop.permute.xlu0 %4596
    %4599 = vset.pattern.permute.xlu0 6
    %4600 = vperm.xlu0 %4599, %v2850
    %v4601 = vpop.permute.xlu0 %4600
    %4603 = vset.pattern.permute.xlu0 6
    %4604 = vperm.xlu0 %4603, %v2851
    %v4605 = vpop.permute.xlu0 %4604
    %4607 = vset.pattern.permute.xlu0 6
    %4608 = vperm.xlu0 %4607, %v2852
    %v4609 = vpop.permute.xlu0 %4608
    %4611 = vset.pattern.permute.xlu0 6
    %4612 = vperm.xlu0 %4611, %v2853
    %v4613 = vpop.permute.xlu0 %4612
    %4615 = vset.pattern.permute.xlu0 6
    %4616 = vperm.xlu0 %4615, %v2854
    %v4617 = vpop.permute.xlu0 %4616
    %4619 = vset.pattern.permute.xlu0 6
    %4620 = vperm.xlu0 %4619, %v2855
    %v4621 = vpop.permute.xlu0 %4620
    %4623 = vset.pattern.permute.xlu0 6
    %4624 = vperm.xlu0 %4623, %v2856
    %v4625 = vpop.permute.xlu0 %4624
    %4627 = vset.pattern.permute.xlu0 6
    %4628 = vperm.xlu0 %4627, %v2857
    %v4629 = vpop.permute.xlu0 %4628
    %4631 = vset.pattern.permute.xlu0 6
    %4632 = vperm.xlu0 %4631, %v2858
    %v4633 = vpop.permute.xlu0 %4632
    %4635 = vset.pattern.permute.xlu0 6
    %4636 = vperm.xlu0 %4635, %v2859
    %v4637 = vpop.permute.xlu0 %4636
    %4639 = vset.pattern.permute.xlu0 6
    %4640 = vperm.xlu0 %4639, %v2860
    %v4641 = vpop.permute.xlu0 %4640
    %4643 = vset.pattern.permute.xlu0 6
    %4644 = vperm.xlu0 %4643, %v2861
    %v4645 = vpop.permute.xlu0 %4644
    %4647 = vset.pattern.permute.xlu0 6
    %4648 = vperm.xlu0 %4647, %v2862
    %v4649 = vpop.permute.xlu0 %4648
    %v4651 = vmul.f32 %v2778, %v4589
    %v4652 = vmul.f32 %v2779, %v4593
    %v4653 = vmul.f32 %v2780, %v4597
    %v4654 = vmul.f32 %v2781, %v4601
    %v4655 = vmul.f32 %v2782, %v4605
    %v4656 = vmul.f32 %v2783, %v4609
    %v4657 = vmul.f32 %v2784, %v4613
    %v4658 = vmul.f32 %v2785, %v4617
    %v4659 = vmul.f32 %v2786, %v4621
    %v4660 = vmul.f32 %v2787, %v4625
    %v4661 = vmul.f32 %v2788, %v4629
    %v4662 = vmul.f32 %v2789, %v4633
    %v4663 = vmul.f32 %v2790, %v4637
    %v4664 = vmul.f32 %v2791, %v4641
    %v4665 = vmul.f32 %v2792, %v4645
    %v4666 = vmul.f32 %v2777, %v4649
    %s4667 = scalar_lea.vmem [#allocation2], 896
    %v4668 = vld [vmem:[%s4667] sm:$0xff]
    %v4669 = vld [vmem:[%s4667 + $0x8] sm:$0xff]
    %v4670 = vld [vmem:[%s4667 + $0x10] sm:$0xff]
    %v4671 = vld [vmem:[%s4667 + $0x18] sm:$0xff]
    %v4672 = vld [vmem:[%s4667 + $0x20] sm:$0xff]
    %v4673 = vld [vmem:[%s4667 + $0x28] sm:$0xff]
    %v4674 = vld [vmem:[%s4667 + $0x30] sm:$0xff]
    %v4675 = vld [vmem:[%s4667 + $0x38] sm:$0xff]
    %v4676 = vld [vmem:[%s4667 + $0x40] sm:$0xff]
    %v4677 = vld [vmem:[%s4667 + $0x48] sm:$0xff]
    %v4678 = vld [vmem:[%s4667 + $0x50] sm:$0xff]
    %v4679 = vld [vmem:[%s4667 + $0x58] sm:$0xff]
    %v4680 = vld [vmem:[%s4667 + $0x60] sm:$0xff]
    %v4681 = vld [vmem:[%s4667 + $0x68] sm:$0xff]
    %v4682 = vld [vmem:[%s4667 + $0x70] sm:$0xff]
    %v4683 = vld [vmem:[%s4667 + $0x78] sm:$0xff]
    %4684 = vmatprep.subr.mxu0 0.0
    %4685 = vmatpush1.msra.mxu0 %v4683
    %4686 = vmatprep.subr.mxu0 0.0
    %4687 = vmatpush1.msra.mxu0 %v4682
    %4688 = vmatprep.subr.mxu0 0.0
    %4689 = vmatpush1.msra.mxu0 %v4681
    %4690 = vmatprep.subr.mxu0 0.0
    %4691 = vmatpush1.msra.mxu0 %v4680
    %4692 = vmatprep.subr.mxu0 0.0
    %4693 = vmatpush1.msra.mxu0 %v4679
    %4694 = vmatprep.subr.mxu0 0.0
    %4695 = vmatpush1.msra.mxu0 %v4678
    %4696 = vmatprep.subr.mxu0 0.0
    %4697 = vmatpush1.msra.mxu0 %v4677
    %4698 = vmatprep.subr.mxu0 0.0
    %4699 = vmatpush1.msra.mxu0 %v4676
    %4700 = vmatprep.subr.mxu0 0.0
    %4701 = vmatpush1.msra.mxu0 %v4675
    %4702 = vmatprep.subr.mxu0 0.0
    %4703 = vmatpush1.msra.mxu0 %v4674
    %4704 = vmatprep.subr.mxu0 0.0
    %4705 = vmatpush1.msra.mxu0 %v4673
    %4706 = vmatprep.subr.mxu0 0.0
    %4707 = vmatpush1.msra.mxu0 %v4672
    %4708 = vmatprep.subr.mxu0 0.0
    %4709 = vmatpush1.msra.mxu0 %v4671
    %4710 = vmatprep.subr.mxu0 0.0
    %4711 = vmatpush1.msra.mxu0 %v4670
    %4712 = vmatprep.subr.mxu0 0.0
    %4713 = vmatpush1.msra.mxu0 %v4669
    %4714 = vmatprep.subr.mxu0 0.0
    %4715 = vmatpush1.msra.mxu0 %v4668
    %4716 = vmatprep.subr.mxu0 0.0
    %4717 = vmatpush2.msra.mxu0 0.0
    %4718 = vmatprep.subr.mxu0 0.0
    %4719 = vmatpush2.msra.mxu0 0.0
    %4720 = vmatprep.subr.mxu0 0.0
    %4721 = vmatpush2.msra.mxu0 0.0
    %4722 = vmatprep.subr.mxu0 0.0
    %4723 = vmatpush2.msra.mxu0 0.0
    %4724 = vmatprep.subr.mxu0 0.0
    %4725 = vmatpush2.msra.mxu0 0.0
    %4726 = vmatprep.subr.mxu0 0.0
    %4727 = vmatpush2.msra.mxu0 0.0
    %4728 = vmatprep.subr.mxu0 0.0
    %4729 = vmatpush2.msra.mxu0 0.0
    %4730 = vmatprep.subr.mxu0 0.0
    %4731 = vmatpush2.msra.mxu0 0.0
    %4732 = vmatprep.subr.mxu0 0.0
    %4733 = vmatpush2.msra.mxu0 0.0
    %4734 = vmatprep.subr.mxu0 0.0
    %4735 = vmatpush2.msra.mxu0 0.0
    %4736 = vmatprep.subr.mxu0 0.0
    %4737 = vmatpush2.msra.mxu0 0.0
    %4738 = vmatprep.subr.mxu0 0.0
    %4739 = vmatpush2.msra.mxu0 0.0
    %4740 = vmatprep.subr.mxu0 0.0
    %4741 = vmatpush2.msra.mxu0 0.0
    %4742 = vmatprep.subr.mxu0 0.0
    %4743 = vmatpush2.msra.mxu0 0.0
    %4744 = vmatprep.subr.mxu0 0.0
    %4745 = vmatpush2.msra.mxu0 0.0
    %4746 = vmatprep.subr.mxu0 0.0
    %4747 = vmatpush2.msra.mxu0 0.0
    %4748 = vmatprep.mubr.f32.mxu0 0.0
    %4749 = vmatmul.mubr.f32.gmra.mxu0 %v4651
    %v4750 = vpop.f32.mrf.mxu0
    %v4751 = vadd.f32 0.0, %v4750
    %v4752 = vpop.f32.mrf.mxu0
    %4753 = vmatprep.mubr.f32.mxu0 0.0
    %4754 = vmatmul.mubr.f32.gmra.mxu0 %v4652
    %v4755 = vpop.f32.mrf.mxu0
    %v4756 = vadd.f32 0.0, %v4755
    %v4757 = vpop.f32.mrf.mxu0
    %4758 = vmatprep.mubr.f32.mxu0 0.0
    %4759 = vmatmul.mubr.f32.gmra.mxu0 %v4653
    %v4760 = vpop.f32.mrf.mxu0
    %v4761 = vadd.f32 0.0, %v4760
    %v4762 = vpop.f32.mrf.mxu0
    %4763 = vmatprep.mubr.f32.mxu0 0.0
    %4764 = vmatmul.mubr.f32.gmra.mxu0 %v4654
    %v4765 = vpop.f32.mrf.mxu0
    %v4766 = vadd.f32 0.0, %v4765
    %v4767 = vpop.f32.mrf.mxu0
    %4768 = vmatprep.mubr.f32.mxu0 0.0
    %4769 = vmatmul.mubr.f32.gmra.mxu0 %v4655
    %v4770 = vpop.f32.mrf.mxu0
    %v4771 = vadd.f32 0.0, %v4770
    %v4772 = vpop.f32.mrf.mxu0
    %4773 = vmatprep.mubr.f32.mxu0 0.0
    %4774 = vmatmul.mubr.f32.gmra.mxu0 %v4656
    %v4775 = vpop.f32.mrf.mxu0
    %v4776 = vadd.f32 0.0, %v4775
    %v4777 = vpop.f32.mrf.mxu0
    %4778 = vmatprep.mubr.f32.mxu0 0.0
    %4779 = vmatmul.mubr.f32.gmra.mxu0 %v4657
    %v4780 = vpop.f32.mrf.mxu0
    %v4781 = vadd.f32 0.0, %v4780
    %v4782 = vpop.f32.mrf.mxu0
    %4783 = vmatprep.mubr.f32.mxu0 0.0
    %4784 = vmatmul.mubr.f32.gmra.mxu0 %v4658
    %v4785 = vpop.f32.mrf.mxu0
    %v4786 = vadd.f32 0.0, %v4785
    %v4787 = vpop.f32.mrf.mxu0
    %4788 = vmatprep.mubr.f32.mxu0 0.0
    %4789 = vmatmul.mubr.f32.gmra.mxu0 %v4659
    %v4790 = vpop.f32.mrf.mxu0
    %v4791 = vadd.f32 0.0, %v4790
    %v4792 = vpop.f32.mrf.mxu0
    %4793 = vmatprep.mubr.f32.mxu0 0.0
    %4794 = vmatmul.mubr.f32.gmra.mxu0 %v4660
    %v4795 = vpop.f32.mrf.mxu0
    %v4796 = vadd.f32 0.0, %v4795
    %v4797 = vpop.f32.mrf.mxu0
    %4798 = vmatprep.mubr.f32.mxu0 0.0
    %4799 = vmatmul.mubr.f32.gmra.mxu0 %v4661
    %v4800 = vpop.f32.mrf.mxu0
    %v4801 = vadd.f32 0.0, %v4800
    %v4802 = vpop.f32.mrf.mxu0
    %4803 = vmatprep.mubr.f32.mxu0 0.0
    %4804 = vmatmul.mubr.f32.gmra.mxu0 %v4662
    %v4805 = vpop.f32.mrf.mxu0
    %v4806 = vadd.f32 0.0, %v4805
    %v4807 = vpop.f32.mrf.mxu0
    %4808 = vmatprep.mubr.f32.mxu0 0.0
    %4809 = vmatmul.mubr.f32.gmra.mxu0 %v4663
    %v4810 = vpop.f32.mrf.mxu0
    %v4811 = vadd.f32 0.0, %v4810
    %v4812 = vpop.f32.mrf.mxu0
    %4813 = vmatprep.mubr.f32.mxu0 0.0
    %4814 = vmatmul.mubr.f32.gmra.mxu0 %v4664
    %v4815 = vpop.f32.mrf.mxu0
    %v4816 = vadd.f32 0.0, %v4815
    %v4817 = vpop.f32.mrf.mxu0
    %4818 = vmatprep.mubr.f32.mxu0 0.0
    %4819 = vmatmul.mubr.f32.gmra.mxu0 %v4665
    %v4820 = vpop.f32.mrf.mxu0
    %v4821 = vadd.f32 0.0, %v4820
    %v4822 = vpop.f32.mrf.mxu0
    %4823 = vmatprep.mubr.f32.mxu0 0.0
    %4824 = vmatmul.mubr.f32.gmra.mxu0 %v4666
    %v4825 = vpop.f32.mrf.mxu0
    %v4826 = vadd.f32 0.0, %v4825
    %v4827 = vpop.f32.mrf.mxu0
    %4828 = vdwg.mxu0
    %v4829 = vadd.f32 %v4571, %v4751
    %v4830 = vadd.f32 %v4572, %v4756
    %v4831 = vadd.f32 %v4573, %v4761
    %v4832 = vadd.f32 %v4574, %v4766
    %v4833 = vadd.f32 %v4575, %v4771
    %v4834 = vadd.f32 %v4576, %v4776
    %v4835 = vadd.f32 %v4577, %v4781
    %v4836 = vadd.f32 %v4578, %v4786
    %v4837 = vadd.f32 %v4579, %v4791
    %v4838 = vadd.f32 %v4580, %v4796
    %v4839 = vadd.f32 %v4581, %v4801
    %v4840 = vadd.f32 %v4582, %v4806
    %v4841 = vadd.f32 %v4583, %v4811
    %v4842 = vadd.f32 %v4584, %v4816
    %v4843 = vadd.f32 %v4585, %v4821
    %v4844 = vadd.f32 %v4586, %v4826
    %4845 = vset.pattern.permute.xlu0 7
    %4846 = vperm.xlu0 %4845, %v2847
    %v4847 = vpop.permute.xlu0 %4846
    %4849 = vset.pattern.permute.xlu0 7
    %4850 = vperm.xlu0 %4849, %v2848
    %v4851 = vpop.permute.xlu0 %4850
    %4853 = vset.pattern.permute.xlu0 7
    %4854 = vperm.xlu0 %4853, %v2849
    %v4855 = vpop.permute.xlu0 %4854
    %4857 = vset.pattern.permute.xlu0 7
    %4858 = vperm.xlu0 %4857, %v2850
    %v4859 = vpop.permute.xlu0 %4858
    %4861 = vset.pattern.permute.xlu0 7
    %4862 = vperm.xlu0 %4861, %v2851
    %v4863 = vpop.permute.xlu0 %4862
    %4865 = vset.pattern.permute.xlu0 7
    %4866 = vperm.xlu0 %4865, %v2852
    %v4867 = vpop.permute.xlu0 %4866
    %4869 = vset.pattern.permute.xlu0 7
    %4870 = vperm.xlu0 %4869, %v2853
    %v4871 = vpop.permute.xlu0 %4870
    %4873 = vset.pattern.permute.xlu0 7
    %4874 = vperm.xlu0 %4873, %v2854
    %v4875 = vpop.permute.xlu0 %4874
    %4877 = vset.pattern.permute.xlu0 7
    %4878 = vperm.xlu0 %4877, %v2855
    %v4879 = vpop.permute.xlu0 %4878
    %4881 = vset.pattern.permute.xlu0 7
    %4882 = vperm.xlu0 %4881, %v2856
    %v4883 = vpop.permute.xlu0 %4882
    %4885 = vset.pattern.permute.xlu0 7
    %4886 = vperm.xlu0 %4885, %v2857
    %v4887 = vpop.permute.xlu0 %4886
    %4889 = vset.pattern.permute.xlu0 7
    %4890 = vperm.xlu0 %4889, %v2858
    %v4891 = vpop.permute.xlu0 %4890
    %4893 = vset.pattern.permute.xlu0 7
    %4894 = vperm.xlu0 %4893, %v2859
    %v4895 = vpop.permute.xlu0 %4894
    %4897 = vset.pattern.permute.xlu0 7
    %4898 = vperm.xlu0 %4897, %v2860
    %v4899 = vpop.permute.xlu0 %4898
    %4901 = vset.pattern.permute.xlu0 7
    %4902 = vperm.xlu0 %4901, %v2861
    %v4903 = vpop.permute.xlu0 %4902
    %4905 = vset.pattern.permute.xlu0 7
    %4906 = vperm.xlu0 %4905, %v2862
    %v4907 = vpop.permute.xlu0 %4906
    %v4909 = vmul.f32 %v3552, %v4847
    %v4910 = vmul.f32 %v3551, %v4851
    %v4911 = vmul.f32 %v3550, %v4855
    %v4912 = vmul.f32 %v3549, %v4859
    %v4913 = vmul.f32 %v3548, %v4863
    %v4914 = vmul.f32 %v3547, %v4867
    %v4915 = vmul.f32 %v3546, %v4871
    %v4916 = vmul.f32 %v3545, %v4875
    %v4917 = vmul.f32 %v3544, %v4879
    %v4918 = vmul.f32 %v3543, %v4883
    %v4919 = vmul.f32 %v3542, %v4887
    %v4920 = vmul.f32 %v3541, %v4891
    %v4921 = vmul.f32 %v3540, %v4895
    %v4922 = vmul.f32 %v3539, %v4899
    %v4923 = vmul.f32 %v3554, %v4903
    %v4924 = vmul.f32 %v3553, %v4907
    %s4925 = scalar_lea.vmem [#allocation2], 1024
    %v4926 = vld [vmem:[%s4925] sm:$0xff]
    %v4927 = vld [vmem:[%s4925 + $0x8] sm:$0xff]
    %v4928 = vld [vmem:[%s4925 + $0x10] sm:$0xff]
    %v4929 = vld [vmem:[%s4925 + $0x18] sm:$0xff]
    %v4930 = vld [vmem:[%s4925 + $0x20] sm:$0xff]
    %v4931 = vld [vmem:[%s4925 + $0x28] sm:$0xff]
    %v4932 = vld [vmem:[%s4925 + $0x30] sm:$0xff]
    %v4933 = vld [vmem:[%s4925 + $0x38] sm:$0xff]
    %v4934 = vld [vmem:[%s4925 + $0x40] sm:$0xff]
    %v4935 = vld [vmem:[%s4925 + $0x48] sm:$0xff]
    %v4936 = vld [vmem:[%s4925 + $0x50] sm:$0xff]
    %v4937 = vld [vmem:[%s4925 + $0x58] sm:$0xff]
    %v4938 = vld [vmem:[%s4925 + $0x60] sm:$0xff]
    %v4939 = vld [vmem:[%s4925 + $0x68] sm:$0xff]
    %v4940 = vld [vmem:[%s4925 + $0x70] sm:$0xff]
    %v4941 = vld [vmem:[%s4925 + $0x78] sm:$0xff]
    %4942 = vmatprep.subr.mxu0 0.0
    %4943 = vmatpush1.msra.mxu0 %v4941
    %4944 = vmatprep.subr.mxu0 0.0
    %4945 = vmatpush1.msra.mxu0 %v4940
    %4946 = vmatprep.subr.mxu0 0.0
    %4947 = vmatpush1.msra.mxu0 %v4939
    %4948 = vmatprep.subr.mxu0 0.0
    %4949 = vmatpush1.msra.mxu0 %v4938
    %4950 = vmatprep.subr.mxu0 0.0
    %4951 = vmatpush1.msra.mxu0 %v4937
    %4952 = vmatprep.subr.mxu0 0.0
    %4953 = vmatpush1.msra.mxu0 %v4936
    %4954 = vmatprep.subr.mxu0 0.0
    %4955 = vmatpush1.msra.mxu0 %v4935
    %4956 = vmatprep.subr.mxu0 0.0
    %4957 = vmatpush1.msra.mxu0 %v4934
    %4958 = vmatprep.subr.mxu0 0.0
    %4959 = vmatpush1.msra.mxu0 %v4933
    %4960 = vmatprep.subr.mxu0 0.0
    %4961 = vmatpush1.msra.mxu0 %v4932
    %4962 = vmatprep.subr.mxu0 0.0
    %4963 = vmatpush1.msra.mxu0 %v4931
    %4964 = vmatprep.subr.mxu0 0.0
    %4965 = vmatpush1.msra.mxu0 %v4930
    %4966 = vmatprep.subr.mxu0 0.0
    %4967 = vmatpush1.msra.mxu0 %v4929
    %4968 = vmatprep.subr.mxu0 0.0
    %4969 = vmatpush1.msra.mxu0 %v4928
    %4970 = vmatprep.subr.mxu0 0.0
    %4971 = vmatpush1.msra.mxu0 %v4927
    %4972 = vmatprep.subr.mxu0 0.0
    %4973 = vmatpush1.msra.mxu0 %v4926
    %4974 = vmatprep.subr.mxu0 0.0
    %4975 = vmatpush2.msra.mxu0 0.0
    %4976 = vmatprep.subr.mxu0 0.0
    %4977 = vmatpush2.msra.mxu0 0.0
    %4978 = vmatprep.subr.mxu0 0.0
    %4979 = vmatpush2.msra.mxu0 0.0
    %4980 = vmatprep.subr.mxu0 0.0
    %4981 = vmatpush2.msra.mxu0 0.0
    %4982 = vmatprep.subr.mxu0 0.0
    %4983 = vmatpush2.msra.mxu0 0.0
    %4984 = vmatprep.subr.mxu0 0.0
    %4985 = vmatpush2.msra.mxu0 0.0
    %4986 = vmatprep.subr.mxu0 0.0
    %4987 = vmatpush2.msra.mxu0 0.0
    %4988 = vmatprep.subr.mxu0 0.0
    %4989 = vmatpush2.msra.mxu0 0.0
    %4990 = vmatprep.subr.mxu0 0.0
    %4991 = vmatpush2.msra.mxu0 0.0
    %4992 = vmatprep.subr.mxu0 0.0
    %4993 = vmatpush2.msra.mxu0 0.0
    %4994 = vmatprep.subr.mxu0 0.0
    %4995 = vmatpush2.msra.mxu0 0.0
    %4996 = vmatprep.subr.mxu0 0.0
    %4997 = vmatpush2.msra.mxu0 0.0
    %4998 = vmatprep.subr.mxu0 0.0
    %4999 = vmatpush2.msra.mxu0 0.0
    %5000 = vmatprep.subr.mxu0 0.0
    %5001 = vmatpush2.msra.mxu0 0.0
    %5002 = vmatprep.subr.mxu0 0.0
    %5003 = vmatpush2.msra.mxu0 0.0
    %5004 = vmatprep.subr.mxu0 0.0
    %5005 = vmatpush2.msra.mxu0 0.0
    %5006 = vmatprep.mubr.f32.mxu0 0.0
    %5007 = vmatmul.mubr.f32.gmra.mxu0 %v4909
    %v5008 = vpop.f32.mrf.mxu0
    %v5009 = vadd.f32 0.0, %v5008
    %v5010 = vpop.f32.mrf.mxu0
    %5011 = vmatprep.mubr.f32.mxu0 0.0
    %5012 = vmatmul.mubr.f32.gmra.mxu0 %v4910
    %v5013 = vpop.f32.mrf.mxu0
    %v5014 = vadd.f32 0.0, %v5013
    %v5015 = vpop.f32.mrf.mxu0
    %5016 = vmatprep.mubr.f32.mxu0 0.0
    %5017 = vmatmul.mubr.f32.gmra.mxu0 %v4911
    %v5018 = vpop.f32.mrf.mxu0
    %v5019 = vadd.f32 0.0, %v5018
    %v5020 = vpop.f32.mrf.mxu0
    %5021 = vmatprep.mubr.f32.mxu0 0.0
    %5022 = vmatmul.mubr.f32.gmra.mxu0 %v4912
    %v5023 = vpop.f32.mrf.mxu0
    %v5024 = vadd.f32 0.0, %v5023
    %v5025 = vpop.f32.mrf.mxu0
    %5026 = vmatprep.mubr.f32.mxu0 0.0
    %5027 = vmatmul.mubr.f32.gmra.mxu0 %v4913
    %v5028 = vpop.f32.mrf.mxu0
    %v5029 = vadd.f32 0.0, %v5028
    %v5030 = vpop.f32.mrf.mxu0
    %5031 = vmatprep.mubr.f32.mxu0 0.0
    %5032 = vmatmul.mubr.f32.gmra.mxu0 %v4914
    %v5033 = vpop.f32.mrf.mxu0
    %v5034 = vadd.f32 0.0, %v5033
    %v5035 = vpop.f32.mrf.mxu0
    %5036 = vmatprep.mubr.f32.mxu0 0.0
    %5037 = vmatmul.mubr.f32.gmra.mxu0 %v4915
    %v5038 = vpop.f32.mrf.mxu0
    %v5039 = vadd.f32 0.0, %v5038
    %v5040 = vpop.f32.mrf.mxu0
    %5041 = vmatprep.mubr.f32.mxu0 0.0
    %5042 = vmatmul.mubr.f32.gmra.mxu0 %v4916
    %v5043 = vpop.f32.mrf.mxu0
    %v5044 = vadd.f32 0.0, %v5043
    %v5045 = vpop.f32.mrf.mxu0
    %5046 = vmatprep.mubr.f32.mxu0 0.0
    %5047 = vmatmul.mubr.f32.gmra.mxu0 %v4917
    %v5048 = vpop.f32.mrf.mxu0
    %v5049 = vadd.f32 0.0, %v5048
    %v5050 = vpop.f32.mrf.mxu0
    %5051 = vmatprep.mubr.f32.mxu0 0.0
    %5052 = vmatmul.mubr.f32.gmra.mxu0 %v4918
    %v5053 = vpop.f32.mrf.mxu0
    %v5054 = vadd.f32 0.0, %v5053
    %v5055 = vpop.f32.mrf.mxu0
    %5056 = vmatprep.mubr.f32.mxu0 0.0
    %5057 = vmatmul.mubr.f32.gmra.mxu0 %v4919
    %v5058 = vpop.f32.mrf.mxu0
    %v5059 = vadd.f32 0.0, %v5058
    %v5060 = vpop.f32.mrf.mxu0
    %5061 = vmatprep.mubr.f32.mxu0 0.0
    %5062 = vmatmul.mubr.f32.gmra.mxu0 %v4920
    %v5063 = vpop.f32.mrf.mxu0
    %v5064 = vadd.f32 0.0, %v5063
    %v5065 = vpop.f32.mrf.mxu0
    %5066 = vmatprep.mubr.f32.mxu0 0.0
    %5067 = vmatmul.mubr.f32.gmra.mxu0 %v4921
    %v5068 = vpop.f32.mrf.mxu0
    %v5069 = vadd.f32 0.0, %v5068
    %v5070 = vpop.f32.mrf.mxu0
    %5071 = vmatprep.mubr.f32.mxu0 0.0
    %5072 = vmatmul.mubr.f32.gmra.mxu0 %v4922
    %v5073 = vpop.f32.mrf.mxu0
    %v5074 = vadd.f32 0.0, %v5073
    %v5075 = vpop.f32.mrf.mxu0
    %5076 = vmatprep.mubr.f32.mxu0 0.0
    %5077 = vmatmul.mubr.f32.gmra.mxu0 %v4923
    %v5078 = vpop.f32.mrf.mxu0
    %v5079 = vadd.f32 0.0, %v5078
    %v5080 = vpop.f32.mrf.mxu0
    %5081 = vmatprep.mubr.f32.mxu0 0.0
    %5082 = vmatmul.mubr.f32.gmra.mxu0 %v4924
    %v5083 = vpop.f32.mrf.mxu0
    %v5084 = vadd.f32 0.0, %v5083
    %v5085 = vpop.f32.mrf.mxu0
    %5086 = vdwg.mxu0
    %v5087 = vadd.f32 %v4829, %v5009
    %v5088 = vadd.f32 %v4830, %v5014
    %v5089 = vadd.f32 %v4831, %v5019
    %v5090 = vadd.f32 %v4832, %v5024
    %v5091 = vadd.f32 %v4833, %v5029
    %v5092 = vadd.f32 %v4834, %v5034
    %v5093 = vadd.f32 %v4835, %v5039
    %v5094 = vadd.f32 %v4836, %v5044
    %v5095 = vadd.f32 %v4837, %v5049
    %v5096 = vadd.f32 %v4838, %v5054
    %v5097 = vadd.f32 %v4839, %v5059
    %v5098 = vadd.f32 %v4840, %v5064
    %v5099 = vadd.f32 %v4841, %v5069
    %v5100 = vadd.f32 %v4842, %v5074
    %v5101 = vadd.f32 %v4843, %v5079
    %v5102 = vadd.f32 %v4844, %v5084
    %v5103 = vlaneseq
    %v5104 = vshrl.u32 %v5103, 7
    %v5105 = vsub.s32 0, %v5104
    %v5106 = vrot.slane %v2797, %v5105
    %v5107 = vadd.f32 %v5087, %v5106
    %v5108 = vadd.f32 %v5088, %v5106
    %v5109 = vadd.f32 %v5089, %v5106
    %v5110 = vadd.f32 %v5090, %v5106
    %v5111 = vadd.f32 %v5091, %v5106
    %v5112 = vadd.f32 %v5092, %v5106
    %v5113 = vadd.f32 %v5093, %v5106
    %v5114 = vadd.f32 %v5094, %v5106
    %v5115 = vadd.f32 %v5095, %v5106
    %v5116 = vadd.f32 %v5096, %v5106
    %v5117 = vadd.f32 %v5097, %v5106
    %v5118 = vadd.f32 %v5098, %v5106
    %v5119 = vadd.f32 %v5099, %v5106
    %v5120 = vadd.f32 %v5100, %v5106
    %v5121 = vadd.f32 %v5101, %v5106
    %v5122 = vadd.f32 %v5102, %v5106
    %v5123 = vld [vmem:[%s3 + $0x4] sm:$0x1]
    %v5124 = vld [vmem:[%s3 + $0x5] sm:$0x1]
    %5125 = vmatprep.subr.mxu0 0.0
    %5126 = vmatpush1.msra.mxu0 %v5122
    %5127 = vmatprep.subr.mxu0 0.0
    %5128 = vmatpush1.msra.mxu0 %v5121
    %5129 = vmatprep.subr.mxu0 0.0
    %5130 = vmatpush1.msra.mxu0 %v5120
    %5131 = vmatprep.subr.mxu0 0.0
    %5132 = vmatpush1.msra.mxu0 %v5119
    %5133 = vmatprep.subr.mxu0 0.0
    %5134 = vmatpush1.msra.mxu0 %v5118
    %5135 = vmatprep.subr.mxu0 0.0
    %5136 = vmatpush1.msra.mxu0 %v5117
    %5137 = vmatprep.subr.mxu0 0.0
    %5138 = vmatpush1.msra.mxu0 %v5116
    %5139 = vmatprep.subr.mxu0 0.0
    %5140 = vmatpush1.msra.mxu0 %v5115
    %5141 = vmatprep.subr.mxu0 0.0
    %5142 = vmatpush1.msra.mxu0 %v5114
    %5143 = vmatprep.subr.mxu0 0.0
    %5144 = vmatpush1.msra.mxu0 %v5113
    %5145 = vmatprep.subr.mxu0 0.0
    %5146 = vmatpush1.msra.mxu0 %v5112
    %5147 = vmatprep.subr.mxu0 0.0
    %5148 = vmatpush1.msra.mxu0 %v5111
    %5149 = vmatprep.subr.mxu0 0.0
    %5150 = vmatpush1.msra.mxu0 %v5110
    %5151 = vmatprep.subr.mxu0 0.0
    %5152 = vmatpush1.msra.mxu0 %v5109
    %5153 = vmatprep.subr.mxu0 0.0
    %5154 = vmatpush1.msra.mxu0 %v5108
    %5155 = vmatprep.subr.mxu0 0.0
    %5156 = vmatpush1.msra.mxu0 %v5107
    %5157 = vmatprep.subr.mxu0 0.0
    %5158 = vmatpush2.msra.mxu0 0.0
    %5159 = vmatprep.subr.mxu0 0.0
    %5160 = vmatpush2.msra.mxu0 0.0
    %5161 = vmatprep.subr.mxu0 0.0
    %5162 = vmatpush2.msra.mxu0 0.0
    %5163 = vmatprep.subr.mxu0 0.0
    %5164 = vmatpush2.msra.mxu0 0.0
    %5165 = vmatprep.subr.mxu0 0.0
    %5166 = vmatpush2.msra.mxu0 0.0
    %5167 = vmatprep.subr.mxu0 0.0
    %5168 = vmatpush2.msra.mxu0 0.0
    %5169 = vmatprep.subr.mxu0 0.0
    %5170 = vmatpush2.msra.mxu0 0.0
    %5171 = vmatprep.subr.mxu0 0.0
    %5172 = vmatpush2.msra.mxu0 0.0
    %5173 = vmatprep.subr.mxu0 0.0
    %5174 = vmatpush2.msra.mxu0 0.0
    %5175 = vmatprep.subr.mxu0 0.0
    %5176 = vmatpush2.msra.mxu0 0.0
    %5177 = vmatprep.subr.mxu0 0.0
    %5178 = vmatpush2.msra.mxu0 0.0
    %5179 = vmatprep.subr.mxu0 0.0
    %5180 = vmatpush2.msra.mxu0 0.0
    %5181 = vmatprep.subr.mxu0 0.0
    %5182 = vmatpush2.msra.mxu0 0.0
    %5183 = vmatprep.subr.mxu0 0.0
    %5184 = vmatpush2.msra.mxu0 0.0
    %5185 = vmatprep.subr.mxu0 0.0
    %5186 = vmatpush2.msra.mxu0 0.0
    %5187 = vmatprep.subr.mxu0 0.0
    %5188 = vmatpush2.msra.mxu0 0.0
    %5189 = vmatprep.mubr.f32.mxu0 0.0
    %5190 = vmatmul.mubr.f32.gmra.mxu0 %v61
    %v5191 = vpop.f32.mrf.mxu0
    %v5192 = vadd.f32 0.0, %v5191
    %v5193 = vpop.f32.mrf.mxu0
    %5194 = vdwg.mxu0
    %v5195 = vmul.f32 %v5107, %v5107
    %v5196 = vmul.f32 %v5108, %v5108
    %v5197 = vmul.f32 %v5109, %v5109
    %v5198 = vmul.f32 %v5110, %v5110
    %v5199 = vmul.f32 %v5111, %v5111
    %v5200 = vmul.f32 %v5112, %v5112
    %v5201 = vmul.f32 %v5113, %v5113
    %v5202 = vmul.f32 %v5114, %v5114
    %v5203 = vmul.f32 %v5115, %v5115
    %v5204 = vmul.f32 %v5116, %v5116
    %v5205 = vmul.f32 %v5117, %v5117
    %v5206 = vmul.f32 %v5118, %v5118
    %v5207 = vmul.f32 %v5119, %v5119
    %v5208 = vmul.f32 %v5120, %v5120
    %v5209 = vmul.f32 %v5121, %v5121
    %v5210 = vmul.f32 %v5122, %v5122
    %5211 = vmatprep.subr.mxu0 0.0
    %5212 = vmatpush1.msra.mxu0 %v5210
    %5213 = vmatprep.subr.mxu0 0.0
    %5214 = vmatpush1.msra.mxu0 %v5209
    %5215 = vmatprep.subr.mxu0 0.0
    %5216 = vmatpush1.msra.mxu0 %v5208
    %5217 = vmatprep.subr.mxu0 0.0
    %5218 = vmatpush1.msra.mxu0 %v5207
    %5219 = vmatprep.subr.mxu0 0.0
    %5220 = vmatpush1.msra.mxu0 %v5206
    %5221 = vmatprep.subr.mxu0 0.0
    %5222 = vmatpush1.msra.mxu0 %v5205
    %5223 = vmatprep.subr.mxu0 0.0
    %5224 = vmatpush1.msra.mxu0 %v5204
    %5225 = vmatprep.subr.mxu0 0.0
    %5226 = vmatpush1.msra.mxu0 %v5203
    %5227 = vmatprep.subr.mxu0 0.0
    %5228 = vmatpush1.msra.mxu0 %v5202
    %5229 = vmatprep.subr.mxu0 0.0
    %5230 = vmatpush1.msra.mxu0 %v5201
    %5231 = vmatprep.subr.mxu0 0.0
    %5232 = vmatpush1.msra.mxu0 %v5200
    %5233 = vmatprep.subr.mxu0 0.0
    %5234 = vmatpush1.msra.mxu0 %v5199
    %5235 = vmatprep.subr.mxu0 0.0
    %5236 = vmatpush1.msra.mxu0 %v5198
    %5237 = vmatprep.subr.mxu0 0.0
    %5238 = vmatpush1.msra.mxu0 %v5197
    %5239 = vmatprep.subr.mxu0 0.0
    %5240 = vmatpush1.msra.mxu0 %v5196
    %5241 = vmatprep.subr.mxu0 0.0
    %5242 = vmatpush1.msra.mxu0 %v5195
    %5243 = vmatprep.subr.mxu0 0.0
    %5244 = vmatpush2.msra.mxu0 0.0
    %5245 = vmatprep.subr.mxu0 0.0
    %5246 = vmatpush2.msra.mxu0 0.0
    %5247 = vmatprep.subr.mxu0 0.0
    %5248 = vmatpush2.msra.mxu0 0.0
    %5249 = vmatprep.subr.mxu0 0.0
    %5250 = vmatpush2.msra.mxu0 0.0
    %5251 = vmatprep.subr.mxu0 0.0
    %5252 = vmatpush2.msra.mxu0 0.0
    %5253 = vmatprep.subr.mxu0 0.0
    %5254 = vmatpush2.msra.mxu0 0.0
    %5255 = vmatprep.subr.mxu0 0.0
    %5256 = vmatpush2.msra.mxu0 0.0
    %5257 = vmatprep.subr.mxu0 0.0
    %5258 = vmatpush2.msra.mxu0 0.0
    %5259 = vmatprep.subr.mxu0 0.0
    %5260 = vmatpush2.msra.mxu0 0.0
    %5261 = vmatprep.subr.mxu0 0.0
    %5262 = vmatpush2.msra.mxu0 0.0
    %5263 = vmatprep.subr.mxu0 0.0
    %5264 = vmatpush2.msra.mxu0 0.0
    %5265 = vmatprep.subr.mxu0 0.0
    %5266 = vmatpush2.msra.mxu0 0.0
    %5267 = vmatprep.subr.mxu0 0.0
    %5268 = vmatpush2.msra.mxu0 0.0
    %5269 = vmatprep.subr.mxu0 0.0
    %5270 = vmatpush2.msra.mxu0 0.0
    %5271 = vmatprep.subr.mxu0 0.0
    %5272 = vmatpush2.msra.mxu0 0.0
    %5273 = vmatprep.subr.mxu0 0.0
    %5274 = vmatpush2.msra.mxu0 0.0
    %5275 = vmatprep.mubr.f32.mxu0 0.0
    %5276 = vmatmul.mubr.f32.gmra.mxu0 %v61
    %v5277 = vpop.f32.mrf.mxu0
    %v5278 = vadd.f32 0.0, %v5277
    %v5279 = vpop.f32.mrf.mxu0
    %5280 = vdwg.mxu0
    %v5282 = vrot.slane %v5278, 6
    %v5284 = vsel %vm2585, %v5192, %v5282
    %5285 = vmatprep.subr.mxu0 0.0
    %5286 = vmatpush1.msra.mxu0 %v77
    %5287 = vmatprep.subr.mxu0 0.0
    %5288 = vmatpush1.msra.mxu0 %v76
    %5289 = vmatprep.subr.mxu0 0.0
    %5290 = vmatpush1.msra.mxu0 %v75
    %5291 = vmatprep.subr.mxu0 0.0
    %5292 = vmatpush1.msra.mxu0 %v74
    %5293 = vmatprep.subr.mxu0 0.0
    %5294 = vmatpush1.msra.mxu0 %v73
    %5295 = vmatprep.subr.mxu0 0.0
    %5296 = vmatpush1.msra.mxu0 %v72
    %5297 = vmatprep.subr.mxu0 0.0
    %5298 = vmatpush1.msra.mxu0 %v71
    %5299 = vmatprep.subr.mxu0 0.0
    %5300 = vmatpush1.msra.mxu0 %v70
    %5301 = vmatprep.subr.mxu0 0.0
    %5302 = vmatpush1.msra.mxu0 %v69
    %5303 = vmatprep.subr.mxu0 0.0
    %5304 = vmatpush1.msra.mxu0 %v68
    %5305 = vmatprep.subr.mxu0 0.0
    %5306 = vmatpush1.msra.mxu0 %v67
    %5307 = vmatprep.subr.mxu0 0.0
    %5308 = vmatpush1.msra.mxu0 %v66
    %5309 = vmatprep.subr.mxu0 0.0
    %5310 = vmatpush1.msra.mxu0 %v65
    %5311 = vmatprep.subr.mxu0 0.0
    %5312 = vmatpush1.msra.mxu0 %v64
    %5313 = vmatprep.subr.mxu0 0.0
    %5314 = vmatpush1.msra.mxu0 %v63
    %5315 = vmatprep.subr.mxu0 0.0
    %5316 = vmatpush1.msra.mxu0 %v62
    %5317 = vmatprep.subr.mxu0 0.0
    %5318 = vmatpush2.msra.mxu0 0.0
    %5319 = vmatprep.subr.mxu0 0.0
    %5320 = vmatpush2.msra.mxu0 0.0
    %5321 = vmatprep.subr.mxu0 0.0
    %5322 = vmatpush2.msra.mxu0 0.0
    %5323 = vmatprep.subr.mxu0 0.0
    %5324 = vmatpush2.msra.mxu0 0.0
    %5325 = vmatprep.subr.mxu0 0.0
    %5326 = vmatpush2.msra.mxu0 0.0
    %5327 = vmatprep.subr.mxu0 0.0
    %5328 = vmatpush2.msra.mxu0 0.0
    %5329 = vmatprep.subr.mxu0 0.0
    %5330 = vmatpush2.msra.mxu0 0.0
    %5331 = vmatprep.subr.mxu0 0.0
    %5332 = vmatpush2.msra.mxu0 0.0
    %5333 = vmatprep.subr.mxu0 0.0
    %5334 = vmatpush2.msra.mxu0 0.0
    %5335 = vmatprep.subr.mxu0 0.0
    %5336 = vmatpush2.msra.mxu0 0.0
    %5337 = vmatprep.subr.mxu0 0.0
    %5338 = vmatpush2.msra.mxu0 0.0
    %5339 = vmatprep.subr.mxu0 0.0
    %5340 = vmatpush2.msra.mxu0 0.0
    %5341 = vmatprep.subr.mxu0 0.0
    %5342 = vmatpush2.msra.mxu0 0.0
    %5343 = vmatprep.subr.mxu0 0.0
    %5344 = vmatpush2.msra.mxu0 0.0
    %5345 = vmatprep.subr.mxu0 0.0
    %5346 = vmatpush2.msra.mxu0 0.0
    %5347 = vmatprep.subr.mxu0 0.0
    %5348 = vmatpush2.msra.mxu0 0.0
    %5349 = vmatprep.mubr.f32.mxu0 0.0
    %5350 = vmatmul.mubr.f32.gmra.mxu0 %v5284
    %v5351 = vpop.f32.mrf.mxu0
    %v5352 = vadd.f32 0.0, %v5351
    %v5353 = vpop.f32.mrf.mxu0
    %5354 = vdwg.mxu0
    %v5355 = vmul.f32 %v5352, %v5352
    %v5357 = vrot.slane %v5355, 6
    %v5359 = vsub.f32 %v5352, %v5357
    %v5360 = vadd.f32 %v5359, 1e-05
    %v5361 = vrsqrt.pop %v5360
    %v5362 = vlaneseq
    %v5363 = vshrl.u32 %v5362, 7
    %v5364 = vsub.s32 0, %v5363
    %v5365 = vrot.slane %v5123, %v5364
    %v5366 = vmul.f32 %v5361, %v5365
    %v5368 = vrot.slane %v5366, 2
    %v5370 = vmul.f32 %v5352, %v5368
    %v5371 = vlaneseq
    %v5372 = vshrl.u32 %v5371, 7
    %v5373 = vsub.s32 0, %v5372
    %v5374 = vrot.slane %v5124, %v5373
    %v5375 = vsub.f32 %v5374, %v5370
    %v5377 = vunpack.c.l.s4 1966171168
    %v5378 = vunpack.c.0.s8 %v5377
    %v5379 = vlaneseq
    %v5380 = vshrl.u32 %v5379, 7
    %v5381 = vsub.s32 %v5378, %v5380
    %v5382 = vrot.slane %v5366, %v5381
    %v5383 = vcombine.high %v5382, %v5382
    %v5385 = vunpack.c.l.s4 1966171168
    %v5386 = vunpack.c.0.s8 %v5385
    %v5387 = vlaneseq
    %v5388 = vshrl.u32 %v5387, 7
    %v5389 = vsub.s32 %v5386, %v5388
    %v5390 = vrot.slane %v5382, %v5389
    %v5392 = vunpack.c.l.s4 1966171168
    %v5393 = vunpack.c.0.s8 %v5392
    %v5394 = vlaneseq
    %v5395 = vshrl.u32 %v5394, 7
    %v5396 = vsub.s32 %v5393, %v5395
    %v5397 = vrot.slane %v5383, %v5396
    %v5398 = vcombine.high %v5390, %v5390
    %v5399 = vcombine.high %v5397, %v5397
    %v5400 = vlaneseq
    %v5401 = vshrl.u32 %v5400, 7
    %v5402 = vsub.s32 0, %v5401
    %v5403 = vrot.slane %v5398, %v5402
    %v5404 = vlaneseq
    %v5405 = vshrl.u32 %v5404, 7
    %v5406 = vsub.s32 0, %v5405
    %v5407 = vrot.slane %v5399, %v5406
    %v5410 = vmul.f32 %v5107, %v5403
    %v5411 = vmul.f32 %v5108, %v5403
    %v5412 = vmul.f32 %v5109, %v5403
    %v5413 = vmul.f32 %v5110, %v5403
    %v5414 = vmul.f32 %v5111, %v5403
    %v5415 = vmul.f32 %v5112, %v5403
    %v5416 = vmul.f32 %v5113, %v5403
    %v5417 = vmul.f32 %v5114, %v5403
    %v5418 = vmul.f32 %v5115, %v5407
    %v5419 = vmul.f32 %v5116, %v5407
    %v5420 = vmul.f32 %v5117, %v5407
    %v5421 = vmul.f32 %v5118, %v5407
    %v5422 = vmul.f32 %v5119, %v5407
    %v5423 = vmul.f32 %v5120, %v5407
    %v5424 = vmul.f32 %v5121, %v5407
    %v5425 = vmul.f32 %v5122, %v5407
    %v5428 = vunpack.c.l.s4 1966171168
    %v5429 = vunpack.c.0.s8 %v5428
    %v5430 = vlaneseq
    %v5431 = vshrl.u32 %v5430, 7
    %v5432 = vsub.s32 %v5429, %v5431
    %v5433 = vrot.slane %v5375, %v5432
    %v5434 = vcombine.high %v5433, %v5433
    %v5436 = vunpack.c.l.s4 1966171168
    %v5437 = vunpack.c.0.s8 %v5436
    %v5438 = vlaneseq
    %v5439 = vshrl.u32 %v5438, 7
    %v5440 = vsub.s32 %v5437, %v5439
    %v5441 = vrot.slane %v5433, %v5440
    %v5443 = vunpack.c.l.s4 1966171168
    %v5444 = vunpack.c.0.s8 %v5443
    %v5445 = vlaneseq
    %v5446 = vshrl.u32 %v5445, 7
    %v5447 = vsub.s32 %v5444, %v5446
    %v5448 = vrot.slane %v5434, %v5447
    %v5449 = vlaneseq
    %v5450 = vshrl.u32 %v5449, 7
    %v5451 = vsub.s32 0, %v5450
    %v5452 = vrot.slane %v5441, %v5451
    %v5453 = vlaneseq
    %v5454 = vshrl.u32 %v5453, 7
    %v5455 = vsub.s32 0, %v5454
    %v5456 = vrot.slane %v5448, %v5455
    %v5459 = vadd.f32 %v5410, %v5452
    %v5460 = vadd.f32 %v5411, %v5452
    %v5461 = vadd.f32 %v5412, %v5452
    %v5462 = vadd.f32 %v5413, %v5452
    %v5463 = vadd.f32 %v5414, %v5452
    %v5464 = vadd.f32 %v5415, %v5452
    %v5465 = vadd.f32 %v5416, %v5452
    %v5466 = vadd.f32 %v5417, %v5452
    %v5467 = vadd.f32 %v5418, %v5456
    %v5468 = vadd.f32 %v5419, %v5456
    %v5469 = vadd.f32 %v5420, %v5456
    %v5470 = vadd.f32 %v5421, %v5456
    %v5471 = vadd.f32 %v5422, %v5456
    %v5472 = vadd.f32 %v5423, %v5456
    %v5473 = vadd.f32 %v5424, %v5456
    %v5474 = vadd.f32 %v5425, %v5456
    %v5475 = vadd.f32 %v5459, %v78
    %v5476 = vadd.f32 %v5460, %v79
    %v5477 = vadd.f32 %v5461, %v80
    %v5478 = vadd.f32 %v5462, %v81
    %v5479 = vadd.f32 %v5463, %v82
    %v5480 = vadd.f32 %v5464, %v83
    %v5481 = vadd.f32 %v5465, %v84
    %v5482 = vadd.f32 %v5466, %v85
    %v5483 = vadd.f32 %v5467, %v86
    %v5484 = vadd.f32 %v5468, %v87
    %v5485 = vadd.f32 %v5469, %v88
    %v5486 = vadd.f32 %v5470, %v89
    %v5487 = vadd.f32 %v5471, %v90
    %v5488 = vadd.f32 %v5472, %v91
    %v5489 = vadd.f32 %v5473, %v92
    %v5490 = vadd.f32 %v5474, %v93
    %v5491 = vmax.f32 %v5475, 0.0
    %v5492 = vmax.f32 %v5476, 0.0
    %v5493 = vmax.f32 %v5477, 0.0
    %v5494 = vmax.f32 %v5478, 0.0
    %v5495 = vmax.f32 %v5479, 0.0
    %v5496 = vmax.f32 %v5480, 0.0
    %v5497 = vmax.f32 %v5481, 0.0
    %v5498 = vmax.f32 %v5482, 0.0
    %v5499 = vmax.f32 %v5483, 0.0
    %v5500 = vmax.f32 %v5484, 0.0
    %v5501 = vmax.f32 %v5485, 0.0
    %v5502 = vmax.f32 %v5486, 0.0
    %v5503 = vmax.f32 %v5487, 0.0
    %v5504 = vmax.f32 %v5488, 0.0
    %v5505 = vmax.f32 %v5489, 0.0
    %v5506 = vmax.f32 %v5490, 0.0
    %5507 = vst [vmem:[#allocation9] sm:$0xff] %v5491
    %5508 = vst [vmem:[#allocation9 + $0x8] sm:$0xff] %v5492
    %5509 = vst [vmem:[#allocation9 + $0x10] sm:$0xff] %v5493
    %5510 = vst [vmem:[#allocation9 + $0x18] sm:$0xff] %v5494
    %5511 = vst [vmem:[#allocation9 + $0x20] sm:$0xff] %v5495
    %5512 = vst [vmem:[#allocation9 + $0x28] sm:$0xff] %v5496
    %5513 = vst [vmem:[#allocation9 + $0x30] sm:$0xff] %v5497
    %5514 = vst [vmem:[#allocation9 + $0x38] sm:$0xff] %v5498
    %5515 = vst [vmem:[#allocation9 + $0x40] sm:$0xff] %v5499
    %5516 = vst [vmem:[#allocation9 + $0x48] sm:$0xff] %v5500
    %5517 = vst [vmem:[#allocation9 + $0x50] sm:$0xff] %v5501
    %5518 = vst [vmem:[#allocation9 + $0x58] sm:$0xff] %v5502
    %5519 = vst [vmem:[#allocation9 + $0x60] sm:$0xff] %v5503
    %5520 = vst [vmem:[#allocation9 + $0x68] sm:$0xff] %v5504
    %5521 = vst [vmem:[#allocation9 + $0x70] sm:$0xff] %v5505
    %5522 = vst [vmem:[#allocation9 + $0x78] sm:$0xff] %v5506
    // Predicated region
    $region34: #{resblock_forward.1} parent=1 // pred_check
      _
    $region35: #{resblock_forward.1} parent=1 // pred_check_branch
      %5524 = sbr.rel (0) target = $region37
    $region36: #{resblock_forward.1} parent=1 // pred_region
      %s5526 = ssub.s32 2048, 2048
      %5527 = vsyncadd [#allocation6], %s5526
      %s5528 = sshll.u32 [#allocation9], 4
      %s5529 = int_to_ptr.vmem [resolvable:$true] %s5528
      %5534 = dma.vmem_to_hbm [thread:$0]  %s5529, 2048, %s6, [#allocation6], 128, 128, 8
    $region37: #{resblock_forward.1} parent=1 // pred_fallthru
      _
    // Predicated region
    $region38: #{resblock_forward.1} parent=1 // pred_check
      _
    $region39: #{resblock_forward.1} parent=1 // pred_check_branch
      %5536 = sbr.rel (0) target = $region41
    $region40: #{resblock_forward.1} parent=1 // pred_region
      %5537 = dma.done [#allocation6], 2048
    $region41: #{resblock_forward.1} parent=1 // pred_fallthru
      _
    %5538 = vsyncpa [#allocation5], 1
    %5539 = vsyncpa [#allocation8], 1
    %5540 = vsyncpa [#allocation6], 1
  %5541 = vsyncmov [#allocation3]
  %s5542 = vpop.sfrf %5541
  %p5543 = scmp.eq.s32.totalorder %s5542, 0
  %p5544 = pneg %p5543
  %5546 = shalt.err (%p5544)

</llo_original>
